<compile_context>
chip_gen: v7x
topology: tpu7x:2x2x1
jax: 0.10.0
libtpu: 0.0.40
codegen_flags: <defaults>
</compile_context>

<pallas_src>
from functools import partial

import numpy as np
import jax
import jax.numpy as jnp
from jax.experimental import pallas as pl
from jax.experimental.pallas import tpu as pltpu

# ----------------------------- configuration -------------------------------
B = 4                    # batch
NUM_IMG_CLASSES = 1000   # img_rep logits dim (matches nn.Embedding(1000, W))
TOPK = 4                 # args.topk_classes
W = 16                   # word_vec_size
H = 16                   # output_size (GRU hidden size)
V = 32                   # vocab_size
T = 8                    # targets.size(1)  (seq length including <start> slot)
NUM_LAYERS = 1           # TODO(synk): multi-layer GRU + inter-layer dropout not implemented
BN_EPS = 1e-5


# ------------------------------ Pallas kernel -------------------------------
def _fused_gru_attn_vocab_kernel(seq_len,
                                 emb_ref,    # (T*Bp, W)   f32 teacher-forced inputs
                                 mask_ref,   # (T*Bp, 1)   f32 validity mask (t < real_len)
                                 cls_ref,    # (Bp, K*W)   f32 class embeddings, flattened
                                 wih_ref,    # (W, 3H)     GRU input weights (r|z|n)
                                 whh_ref,    # (H, 3H)     GRU hidden weights (r|z|n)
                                 b_ref,      # (2, 3H)     row0: x-path bias, row1: [0,0,bhh_n]
                                 attnq_ref,  # (H, K*W)    attn weight lane-tiled K times
                                 vwh_ref,    # (H, V)      vocab proj (hidden part)
                                 vwc_ref,    # (W, V)      vocab proj (context part)
                                 vb_ref,     # (1, V)
                                 out_ref,    # (T*Bp, V)   logits
                                 gx_scr,     # VMEM (T*Bp, 3H) scratch
                                 outs_scr):  # VMEM (T*Bp, H)  scratch
    TB, Wn = emb_ref.shape
    Hn = whh_ref.shape[0]
    KWn = cls_ref.shape[1]
    Kn = KWn // Wn
    Bp = TB // seq_len

    # ---- hoisted input-path GRU matmul (off the recurrent critical path),
    #      spilled to VMEM scratch so it does not stay live across the loop ----
    gx_scr[...] = (jnp.dot(emb_ref[...], wih_ref[...],
                           preferred_element_type=jnp.float32) + b_ref[0:1, :])

    whh = whh_ref[...]
    b_hn = b_ref[1:2, :]   # zeros except the n-gate hidden bias (folded at init)

    # ---- recurrence: one fused h @ W_hh push + gate nonlinearities per step.
    #      Fully unrolled (T small & static): static slices, LLO visibility.
    h = jnp.zeros((Bp, Hn), jnp.float32)
    for t in range(seq_len):
        lo = t * Bp
        gx = gx_scr[lo:lo + Bp, :]                                        # (Bp, 3H)
        gh = jnp.dot(h, whh, preferred_element_type=jnp.float32) + b_hn   # (Bp, 3H)
        r = jax.nn.sigmoid(gx[:, :Hn] + gh[:, :Hn])
        z = jax.nn.sigmoid(gx[:, Hn:2 * Hn] + gh[:, Hn:2 * Hn])
        n = jnp.tanh(gx[:, 2 * Hn:] + r * gh[:, 2 * Hn:])
        h = (1.0 - z) * n + z * h
        outs_scr[lo:lo + Bp, :] = h

    # pack/pad_packed semantics: emitted GRU outputs past real_len are zero.
    outs = outs_scr[...] * mask_ref[...]                                  # (TB, H)

    # ---- batched class attention, fully 2-D (no (TB,K,W) temporaries) ----
    # cls broadcast over T as an in-kernel sublane concat (cheap, VMEM-resident).
    cls_tb = jnp.concatenate([cls_ref[...]] * seq_len, axis=0)            # (TB, K*W)
    # q pre-tiled along lanes via the pre-tiled attention weight.
    q_tiled = jnp.dot(outs, attnq_ref[...],
                      preferred_element_type=jnp.float32)                 # (TB, K*W)

    # constant 0/1 selection matrices (built once per call from iotas; VPU-cheap)
    j_k = jax.lax.broadcasted_iota(jnp.int32, (KWn, Kn), 0)
    k_k = jax.lax.broadcasted_iota(jnp.int32, (KWn, Kn), 1) * Wn
    sel_k = ((j_k >= k_k) & (j_k < k_k + Wn)).astype(jnp.float32)         # (KW, K) sum over w
    j_b = jax.lax.broadcasted_iota(jnp.int32, (Kn, KWn), 1)
    k_b = jax.lax.broadcasted_iota(jnp.int32, (Kn, KWn), 0) * Wn
    sel_b = ((j_b >= k_b) & (j_b < k_b + Wn)).astype(jnp.float32)         # (K, KW) broadcast k
    eye_w = (jax.lax.broadcasted_iota(jnp.int32, (Wn, Wn), 0)
             == jax.lax.broadcasted_iota(jnp.int32, (Wn, Wn), 1)).astype(jnp.float32)
    sel_w = jnp.concatenate([eye_w] * Kn, axis=0)                         # (KW, W) sum over k

    scores = jnp.dot(q_tiled * cls_tb, sel_k,
                     preferred_element_type=jnp.float32)                  # (TB, K)
    scores = scores - jnp.max(scores, axis=1, keepdims=True)
    e = jnp.exp(scores)
    alpha = e / jnp.sum(e, axis=1, keepdims=True)     # exact softmax (PyTorch parity)
    alpha_t = jnp.dot(alpha, sel_b, preferred_element_type=jnp.float32)   # (TB, KW)
    ct = jnp.dot(alpha_t * cls_tb, sel_w,
                 preferred_element_type=jnp.float32)                      # (TB, W)

    # t == 0 uses a zero context vector (rows 0 .. Bp-1 are the t=0 rows)
    row = jax.lax.broadcasted_iota(jnp.int32, (TB, 1), 0)
    ct = ct * (row >= Bp).astype(ct.dtype)

    # ---- vocab projection: two matmuls accumulated (no lane-axis concat) ----
    out_ref[...] = (jnp.dot(outs, vwh_ref[...], preferred_element_type=jnp.float32)
                    + jnp.dot(ct, vwc_ref[...], preferred_element_type=jnp.float32)
                    + vb_ref[...])


def fused_gru_attn_vocab(emb_tbw, real_lens, class_emb_all, kp):
    Tn, Bn, Wn = emb_tbw.shape
    Hn = kp["whh"].shape[0]
    Vn = kp["vb"].shape[1]
    Kn = class_emb_all.shape[1]

    # ---- pad batch to a multiple of 8 rows (full sublane occupancy) ----
    Bp = max(8, ((Bn + 7) // 8) * 8)
    pad = Bp - Bn
    emb_p = jnp.pad(emb_tbw, ((0, 0), (0, pad), (0, 0)))
    lens_p = jnp.pad(real_lens.astype(jnp.int32), (0, pad))
    # class embeddings passed once, flattened 2-D (no replication over T)
    cls2d = jnp.pad(class_emb_all, ((0, pad), (0, 0), (0, 0))).reshape(Bp, Kn * Wn)

    TB = Tn * Bp
    emb_flat = emb_p.reshape(TB, Wn)
    # validity mask (t < real_len), precomputed once
    mask = (jnp.arange(Tn, dtype=jnp.int32)[:, None] < lens_p[None, :])
    mask = mask.astype(jnp.float32).reshape(TB, 1)

    vmem = pl.BlockSpec(memory_space=pltpu.MemorySpace.VMEM)
    out_flat = pl.pallas_call(
        partial(_fused_gru_attn_vocab_kernel, Tn),
        out_shape=jax.ShapeDtypeStruct((TB, Vn), jnp.float32),
        in_specs=[vmem] * 10,
        out_specs=vmem,
        scratch_shapes=[pltpu.VMEM((TB, 3 * Hn), jnp.float32),   # gx spill
                        pltpu.VMEM((TB, Hn), jnp.float32)],      # per-step outputs
    )(
        emb_flat, mask, cls2d,
        kp["wih"], kp["whh"], kp["bias"],
        kp["attnq"], kp["vwh"], kp["vwc"], kp["vb"],
    )

    return out_flat.reshape(Tn, Bp, Vn)[:, :Bn, :]   # (T, B, V)


# ------------------------------ parameters ----------------------------------
def init_params(key):
    ks = jax.random.split(key, 11)
    scale = 0.1
    p = {
        "class_emb": scale * jax.random.normal(ks[0], (1000, W), jnp.float32),
        "word_emb":  scale * jax.random.normal(ks[1], (V, W), jnp.float32),
        "proj_w":    scale * jax.random.normal(ks[2], (W, W), jnp.float32),
        "proj_b":    scale * jax.random.normal(ks[3], (W,), jnp.float32),
        "bn_gamma":  jnp.ones((W,), jnp.float32),
        "bn_beta":   jnp.zeros((W,), jnp.float32),
        "wih":       scale * jax.random.normal(ks[4], (W, 3 * H), jnp.float32),
        "whh":       scale * jax.random.normal(ks[5], (H, 3 * H), jnp.float32),
        "bih":       scale * jax.random.normal(ks[6], (1, 3 * H), jnp.float32),
        "bhh":       scale * jax.random.normal(ks[7], (1, 3 * H), jnp.float32),
        "attn_w":    jax.random.uniform(ks[8], (H, W), jnp.float32),
        "vwh":       scale * jax.random.normal(ks[9], (H, V), jnp.float32),
        "vwc":       scale * jax.random.normal(ks[10], (W, V), jnp.float32),
        "vb":        jnp.zeros((1, V), jnp.float32),
    }
    return p


def prepare_kernel_params(p, topk=TOPK):
    """One-time, out-of-the-hot-path preprocessing of parameter-derived tensors."""
    Hn = p["whh"].shape[0]
    bih, bhh = p["bih"], p["bhh"]
    # r/z hidden biases fold into the x-path bias; bhh_n must stay inside r*(.)
    b_x = jnp.concatenate([bih[:, :2 * Hn] + bhh[:, :2 * Hn], bih[:, 2 * Hn:]], axis=1)
    b_hn = jnp.concatenate([jnp.zeros((1, 2 * Hn), jnp.float32), bhh[:, 2 * Hn:]], axis=1)
    kp = {
        "wih":   p["wih"],                                   # (W, 3H)
        "whh":   p["whh"],                                   # (H, 3H)
        "bias":  jnp.concatenate([b_x, b_hn], axis=0),       # (2, 3H)
        "attnq": jnp.tile(p["attn_w"], (1, topk)),           # (H, K*W) lane-tiled
        "vwh":   p["vwh"],
        "vwc":   p["vwc"],
        "vb":    p["vb"],
        # glue params (unchanged values)
        "class_emb": p["class_emb"], "word_emb": p["word_emb"],
        "proj_w": p["proj_w"], "proj_b": p["proj_b"],
        "bn_gamma": p["bn_gamma"], "bn_beta": p["bn_beta"],
    }
    return kp


# ------------------------------ glue (plain JAX) ----------------------------
def _encoder_glue(params, img_rep, targets):
    # top-k image classes -> class embeddings
    _, argmax = jax.lax.top_k(img_rep, TOPK)                 # (B, K)
    class_emb_all = params["class_emb"][argmax]              # (B, K, W)
    class_emb = jnp.mean(class_emb_all, axis=1)              # (B, W)
    # linear projection + BatchNorm1d (training-mode batch statistics)
    proj = class_emb @ params["proj_w"] + params["proj_b"]
    mu = jnp.mean(proj, axis=0, keepdims=True)
    var = jnp.var(proj, axis=0, keepdims=True)
    proj = (proj - mu) / jnp.sqrt(var + BN_EPS) * params["bn_gamma"] + params["bn_beta"]
    # teacher-forced inputs: [<start>=img projection, emb(targets[:, :-1])]
    tok_emb = params["word_emb"][targets[:, :-1]]            # (B, T-1, W)
    emb_inps = jnp.concatenate([proj[:, None, :], tok_emb], axis=1)  # (B, T, W)
    return emb_inps, class_emb_all


@jax.jit
def forward(kparams, img_rep, targets, real_lens):
    emb_inps, class_emb_all = _encoder_glue(kparams, img_rep, targets)
    emb_tbw = jnp.transpose(emb_inps, (1, 0, 2))             # (T, B, W) time-major
    out_tbv = fused_gru_attn_vocab(emb_tbw, real_lens, class_emb_all, kparams)
    return jnp.transpose(out_tbv, (1, 0, 2))                 # (B, T, V)


# ------------------------------ pure-JAX reference --------------------------
def reference_forward(params, img_rep, targets, real_lens):
    emb_inps, cls = _encoder_glue(params, img_rep, targets)
    Bn, Tn, Wn = emb_inps.shape
    Hn = params["whh"].shape[0]
    h = jnp.zeros((Bn, Hn), jnp.float32)
    outs = []
    for t in range(Tn):
        x = emb_inps[:, t, :]
        gx = x @ params["wih"] + params["bih"]
        gh = h @ params["whh"] + params["bhh"]
        r = jax.nn.sigmoid(gx[:, :Hn] + gh[:, :Hn])
        z = jax.nn.sigmoid(gx[:, Hn:2 * Hn] + gh[:, Hn:2 * Hn])
        n = jnp.tanh(gx[:, 2 * Hn:] + r * gh[:, 2 * Hn:])
        h = (1.0 - z) * n + z * h
        out_t = h * (t < real_lens)[:, None].astype(jnp.float32)
        if t == 0:
            ct = jnp.zeros((Bn, Wn), jnp.float32)
        else:
            q = out_t @ params["attn_w"]
            s = jnp.einsum("bw,bkw->bk", q, cls)
            a = jax.nn.softmax(s, axis=1)
            ct = jnp.einsum("bk,bkw->bw", a, cls)
        outs.append(out_t @ params["vwh"] + ct @ params["vwc"] + params["vb"])
    return jnp.stack(outs, axis=1)


# ----------------------------------- main ------------------------------------
if __name__ == "__main__":
    key = jax.random.PRNGKey(0)
    k_par, k_img, k_tgt = jax.random.split(key, 3)

    params = init_params(k_par)
    kparams = prepare_kernel_params(params)   # one-time weight prep (not per call)

    img_rep = jax.random.normal(k_img, (B, NUM_IMG_CLASSES), jnp.float32)
    targets = jax.random.randint(k_tgt, (B, T), 0, V, dtype=jnp.int32)
    real_lens = jnp.array([T, T - 3, 2, T - 1], dtype=jnp.int32)

    out = forward(kparams, img_rep, targets, real_lens)
    out = jax.block_until_ready(out)
    assert out.shape == (B, T, V), out.shape

    ref = reference_forward(params, img_rep, targets, real_lens)
    np.testing.assert_allclose(np.asarray(out), np.asarray(ref),
                               atol=2e-3, rtol=2e-3)
    print("KERNEL_OK")
</pallas_src>

<mosaic_0001>
module attributes {stable_mosaic.version = 11 : i64} {
  func.func @_fused_gru_attn_vocab_kernel(%arg0: memref<64x16xf32, #tpu.memory_space<vmem>>, %arg1: memref<64x1xf32, #tpu.memory_space<vmem>>, %arg2: memref<8x64xf32, #tpu.memory_space<vmem>>, %arg3: memref<16x48xf32, #tpu.memory_space<vmem>>, %arg4: memref<16x48xf32, #tpu.memory_space<vmem>>, %arg5: memref<2x48xf32, #tpu.memory_space<vmem>>, %arg6: memref<16x64xf32, #tpu.memory_space<vmem>>, %arg7: memref<16x32xf32, #tpu.memory_space<vmem>>, %arg8: memref<16x32xf32, #tpu.memory_space<vmem>>, %arg9: memref<1x32xf32, #tpu.memory_space<vmem>>, %arg10: memref<64x32xf32, #tpu.memory_space<vmem>>, %arg11: memref<64x48xf32, #tpu.memory_space<vmem>>, %arg12: memref<64x16xf32, #tpu.memory_space<vmem>>) attributes {dimension_semantics = [], scalar_prefetch = 0 : i64, scratch_operands = 2 : i64, tpu.core_type = #tpu.core_type<tc>} {
    %c0 = arith.constant 0 : index
    %c0_0 = arith.constant 0 : index
    %0 = vector.load %arg0[%c0, %c0_0] : memref<64x16xf32, #tpu.memory_space<vmem>>, vector<64x16xf32>
    %c0_1 = arith.constant 0 : index
    %c0_2 = arith.constant 0 : index
    %1 = vector.load %arg3[%c0_1, %c0_2] : memref<16x48xf32, #tpu.memory_space<vmem>>, vector<16x48xf32>
    %cst = arith.constant dense<0.000000e+00> : vector<64x48xf32>
    %2 = tpu.matmul %0, %1, %cst {dimension_numbers = #tpu.dot_dimension_numbers<[1], [0], [0], [1], [0, 0, 1, 1], [], []>} : vector<64x16xf32>, vector<16x48xf32>, vector<64x48xf32> -> vector<64x48xf32>
    %c0_3 = arith.constant 0 : index
    %c0_4 = arith.constant 0 : index
    %3 = vector.load %arg5[%c0_3, %c0_4] : memref<2x48xf32, #tpu.memory_space<vmem>>, vector<1x48xf32>
    %4 = vector.broadcast %3 : vector<1x48xf32> to vector<64x48xf32>
    %5 = arith.addf %2, %4 : vector<64x48xf32>
    %c0_5 = arith.constant 0 : index
    %c0_6 = arith.constant 0 : index
    %6 = vector.load %arg11[%c0_5, %c0_6] : memref<64x48xf32, #tpu.memory_space<vmem>>, vector<64x48xf32>
    tpu.vector_store %arg11[%c0_5, %c0_6], %5 {strides = array<i32>} : memref<64x48xf32, #tpu.memory_space<vmem>>, vector<64x48xf32>,
    %c0_7 = arith.constant 0 : index
    %c0_8 = arith.constant 0 : index
    %7 = vector.load %arg4[%c0_7, %c0_8] : memref<16x48xf32, #tpu.memory_space<vmem>>, vector<16x48xf32>
    %c1 = arith.constant 1 : index
    %c0_9 = arith.constant 0 : index
    %8 = vector.load %arg5[%c1, %c0_9] : memref<2x48xf32, #tpu.memory_space<vmem>>, vector<1x48xf32>
    %cst_10 = arith.constant 0.000000e+00 : f32
    %9 = vector.broadcast %cst_10 : f32 to vector<8x16xf32>
    %c0_11 = arith.constant 0 : index
    %c0_12 = arith.constant 0 : index
    %10 = vector.load %arg11[%c0_11, %c0_12] : memref<64x48xf32, #tpu.memory_space<vmem>>, vector<8x48xf32>
    %cst_13 = arith.constant dense<0.000000e+00> : vector<8x48xf32>
    %11 = tpu.matmul %9, %7, %cst_13 {dimension_numbers = #tpu.dot_dimension_numbers<[1], [0], [0], [1], [0, 0, 1, 1], [], []>} : vector<8x16xf32>, vector<16x48xf32>, vector<8x48xf32> -> vector<8x48xf32>
    %12 = vector.broadcast %8 : vector<1x48xf32> to vector<8x48xf32>
    %13 = arith.addf %11, %12 : vector<8x48xf32>
    %14 = vector.extract_strided_slice %10 {offsets = [0, 0], sizes = [8, 16], strides = [1, 1]} : vector<8x48xf32> to vector<8x16xf32>
    %15 = vector.extract_strided_slice %13 {offsets = [0, 0], sizes = [8, 16], strides = [1, 1]} : vector<8x48xf32> to vector<8x16xf32>
    %16 = arith.addf %14, %15 : vector<8x16xf32>
    %17 = arith.negf %16 : vector<8x16xf32>
    %18 = math.exp %17 : vector<8x16xf32>
    %cst_14 = arith.constant 1.000000e+00 : f32
    %19 = vector.broadcast %cst_14 : f32 to vector<8x16xf32>
    %20 = arith.addf %19, %18 : vector<8x16xf32>
    %21 = arith.divf %19, %20 : vector<8x16xf32>
    %22 = vector.extract_strided_slice %10 {offsets = [0, 16], sizes = [8, 16], strides = [1, 1]} : vector<8x48xf32> to vector<8x16xf32>
    %23 = vector.extract_strided_slice %13 {offsets = [0, 16], sizes = [8, 16], strides = [1, 1]} : vector<8x48xf32> to vector<8x16xf32>
    %24 = arith.addf %22, %23 : vector<8x16xf32>
    %25 = arith.negf %24 : vector<8x16xf32>
    %26 = math.exp %25 : vector<8x16xf32>
    %cst_15 = arith.constant 1.000000e+00 : f32
    %27 = vector.broadcast %cst_15 : f32 to vector<8x16xf32>
    %28 = arith.addf %27, %26 : vector<8x16xf32>
    %29 = arith.divf %27, %28 : vector<8x16xf32>
    %30 = vector.extract_strided_slice %10 {offsets = [0, 32], sizes = [8, 16], strides = [1, 1]} : vector<8x48xf32> to vector<8x16xf32>
    %31 = vector.extract_strided_slice %13 {offsets = [0, 32], sizes = [8, 16], strides = [1, 1]} : vector<8x48xf32> to vector<8x16xf32>
    %32 = arith.mulf %21, %31 : vector<8x16xf32>
    %33 = arith.addf %30, %32 : vector<8x16xf32>
    %34 = math.tanh %33 : vector<8x16xf32>
    %cst_16 = arith.constant 1.000000e+00 : f32
    %35 = vector.broadcast %cst_16 : f32 to vector<8x16xf32>
    %36 = arith.subf %35, %29 : vector<8x16xf32>
    %37 = arith.mulf %36, %34 : vector<8x16xf32>
    %38 = arith.mulf %29, %9 : vector<8x16xf32>
    %39 = arith.addf %37, %38 : vector<8x16xf32>
    %c0_17 = arith.constant 0 : index
    %c0_18 = arith.constant 0 : index
    %40 = vector.load %arg12[%c0_17, %c0_18] : memref<64x16xf32, #tpu.memory_space<vmem>>, vector<8x16xf32>
    tpu.vector_store %arg12[%c0_17, %c0_18], %39 {strides = array<i32>} : memref<64x16xf32, #tpu.memory_space<vmem>>, vector<8x16xf32>,
    %c8 = arith.constant 8 : index
    %c0_19 = arith.constant 0 : index
    %41 = vector.load %arg11[%c8, %c0_19] : memref<64x48xf32, #tpu.memory_space<vmem>>, vector<8x48xf32>
    %cst_20 = arith.constant dense<0.000000e+00> : vector<8x48xf32>
    %42 = tpu.matmul %39, %7, %cst_20 {dimension_numbers = #tpu.dot_dimension_numbers<[1], [0], [0], [1], [0, 0, 1, 1], [], []>} : vector<8x16xf32>, vector<16x48xf32>, vector<8x48xf32> -> vector<8x48xf32>
    %43 = vector.broadcast %8 : vector<1x48xf32> to vector<8x48xf32>
    %44 = arith.addf %42, %43 : vector<8x48xf32>
    %45 = vector.extract_strided_slice %41 {offsets = [0, 0], sizes = [8, 16], strides = [1, 1]} : vector<8x48xf32> to vector<8x16xf32>
    %46 = vector.extract_strided_slice %44 {offsets = [0, 0], sizes = [8, 16], strides = [1, 1]} : vector<8x48xf32> to vector<8x16xf32>
    %47 = arith.addf %45, %46 : vector<8x16xf32>
    %48 = arith.negf %47 : vector<8x16xf32>
    %49 = math.exp %48 : vector<8x16xf32>
    %cst_21 = arith.constant 1.000000e+00 : f32
    %50 = vector.broadcast %cst_21 : f32 to vector<8x16xf32>
    %51 = arith.addf %50, %49 : vector<8x16xf32>
    %52 = arith.divf %50, %51 : vector<8x16xf32>
    %53 = vector.extract_strided_slice %41 {offsets = [0, 16], sizes = [8, 16], strides = [1, 1]} : vector<8x48xf32> to vector<8x16xf32>
    %54 = vector.extract_strided_slice %44 {offsets = [0, 16], sizes = [8, 16], strides = [1, 1]} : vector<8x48xf32> to vector<8x16xf32>
    %55 = arith.addf %53, %54 : vector<8x16xf32>
    %56 = arith.negf %55 : vector<8x16xf32>
    %57 = math.exp %56 : vector<8x16xf32>
    %cst_22 = arith.constant 1.000000e+00 : f32
    %58 = vector.broadcast %cst_22 : f32 to vector<8x16xf32>
    %59 = arith.addf %58, %57 : vector<8x16xf32>
    %60 = arith.divf %58, %59 : vector<8x16xf32>
    %61 = vector.extract_strided_slice %41 {offsets = [0, 32], sizes = [8, 16], strides = [1, 1]} : vector<8x48xf32> to vector<8x16xf32>
    %62 = vector.extract_strided_slice %44 {offsets = [0, 32], sizes = [8, 16], strides = [1, 1]} : vector<8x48xf32> to vector<8x16xf32>
    %63 = arith.mulf %52, %62 : vector<8x16xf32>
    %64 = arith.addf %61, %63 : vector<8x16xf32>
    %65 = math.tanh %64 : vector<8x16xf32>
    %cst_23 = arith.constant 1.000000e+00 : f32
    %66 = vector.broadcast %cst_23 : f32 to vector<8x16xf32>
    %67 = arith.subf %66, %60 : vector<8x16xf32>
    %68 = arith.mulf %67, %65 : vector<8x16xf32>
    %69 = arith.mulf %60, %39 : vector<8x16xf32>
    %70 = arith.addf %68, %69 : vector<8x16xf32>
    %c8_24 = arith.constant 8 : index
    %c0_25 = arith.constant 0 : index
    %71 = vector.load %arg12[%c8_24, %c0_25] : memref<64x16xf32, #tpu.memory_space<vmem>>, vector<8x16xf32>
    tpu.vector_store %arg12[%c8_24, %c0_25], %70 {strides = array<i32>} : memref<64x16xf32, #tpu.memory_space<vmem>>, vector<8x16xf32>,
    %c16 = arith.constant 16 : index
    %c0_26 = arith.constant 0 : index
    %72 = vector.load %arg11[%c16, %c0_26] : memref<64x48xf32, #tpu.memory_space<vmem>>, vector<8x48xf32>
    %cst_27 = arith.constant dense<0.000000e+00> : vector<8x48xf32>
    %73 = tpu.matmul %70, %7, %cst_27 {dimension_numbers = #tpu.dot_dimension_numbers<[1], [0], [0], [1], [0, 0, 1, 1], [], []>} : vector<8x16xf32>, vector<16x48xf32>, vector<8x48xf32> -> vector<8x48xf32>
    %74 = vector.broadcast %8 : vector<1x48xf32> to vector<8x48xf32>
    %75 = arith.addf %73, %74 : vector<8x48xf32>
    %76 = vector.extract_strided_slice %72 {offsets = [0, 0], sizes = [8, 16], strides = [1, 1]} : vector<8x48xf32> to vector<8x16xf32>
    %77 = vector.extract_strided_slice %75 {offsets = [0, 0], sizes = [8, 16], strides = [1, 1]} : vector<8x48xf32> to vector<8x16xf32>
    %78 = arith.addf %76, %77 : vector<8x16xf32>
    %79 = arith.negf %78 : vector<8x16xf32>
    %80 = math.exp %79 : vector<8x16xf32>
    %cst_28 = arith.constant 1.000000e+00 : f32
    %81 = vector.broadcast %cst_28 : f32 to vector<8x16xf32>
    %82 = arith.addf %81, %80 : vector<8x16xf32>
    %83 = arith.divf %81, %82 : vector<8x16xf32>
    %84 = vector.extract_strided_slice %72 {offsets = [0, 16], sizes = [8, 16], strides = [1, 1]} : vector<8x48xf32> to vector<8x16xf32>
    %85 = vector.extract_strided_slice %75 {offsets = [0, 16], sizes = [8, 16], strides = [1, 1]} : vector<8x48xf32> to vector<8x16xf32>
    %86 = arith.addf %84, %85 : vector<8x16xf32>
    %87 = arith.negf %86 : vector<8x16xf32>
    %88 = math.exp %87 : vector<8x16xf32>
    %cst_29 = arith.constant 1.000000e+00 : f32
    %89 = vector.broadcast %cst_29 : f32 to vector<8x16xf32>
    %90 = arith.addf %89, %88 : vector<8x16xf32>
    %91 = arith.divf %89, %90 : vector<8x16xf32>
    %92 = vector.extract_strided_slice %72 {offsets = [0, 32], sizes = [8, 16], strides = [1, 1]} : vector<8x48xf32> to vector<8x16xf32>
    %93 = vector.extract_strided_slice %75 {offsets = [0, 32], sizes = [8, 16], strides = [1, 1]} : vector<8x48xf32> to vector<8x16xf32>
    %94 = arith.mulf %83, %93 : vector<8x16xf32>
    %95 = arith.addf %92, %94 : vector<8x16xf32>
    %96 = math.tanh %95 : vector<8x16xf32>
    %cst_30 = arith.constant 1.000000e+00 : f32
    %97 = vector.broadcast %cst_30 : f32 to vector<8x16xf32>
    %98 = arith.subf %97, %91 : vector<8x16xf32>
    %99 = arith.mulf %98, %96 : vector<8x16xf32>
    %100 = arith.mulf %91, %70 : vector<8x16xf32>
    %101 = arith.addf %99, %100 : vector<8x16xf32>
    %c16_31 = arith.constant 16 : index
    %c0_32 = arith.constant 0 : index
    %102 = vector.load %arg12[%c16_31, %c0_32] : memref<64x16xf32, #tpu.memory_space<vmem>>, vector<8x16xf32>
    tpu.vector_store %arg12[%c16_31, %c0_32], %101 {strides = array<i32>} : memref<64x16xf32, #tpu.memory_space<vmem>>, vector<8x16xf32>,
    %c24 = arith.constant 24 : index
    %c0_33 = arith.constant 0 : index
    %103 = vector.load %arg11[%c24, %c0_33] : memref<64x48xf32, #tpu.memory_space<vmem>>, vector<8x48xf32>
    %cst_34 = arith.constant dense<0.000000e+00> : vector<8x48xf32>
    %104 = tpu.matmul %101, %7, %cst_34 {dimension_numbers = #tpu.dot_dimension_numbers<[1], [0], [0], [1], [0, 0, 1, 1], [], []>} : vector<8x16xf32>, vector<16x48xf32>, vector<8x48xf32> -> vector<8x48xf32>
    %105 = vector.broadcast %8 : vector<1x48xf32> to vector<8x48xf32>
    %106 = arith.addf %104, %105 : vector<8x48xf32>
    %107 = vector.extract_strided_slice %103 {offsets = [0, 0], sizes = [8, 16], strides = [1, 1]} : vector<8x48xf32> to vector<8x16xf32>
    %108 = vector.extract_strided_slice %106 {offsets = [0, 0], sizes = [8, 16], strides = [1, 1]} : vector<8x48xf32> to vector<8x16xf32>
    %109 = arith.addf %107, %108 : vector<8x16xf32>
    %110 = arith.negf %109 : vector<8x16xf32>
    %111 = math.exp %110 : vector<8x16xf32>
    %cst_35 = arith.constant 1.000000e+00 : f32
    %112 = vector.broadcast %cst_35 : f32 to vector<8x16xf32>
    %113 = arith.addf %112, %111 : vector<8x16xf32>
    %114 = arith.divf %112, %113 : vector<8x16xf32>
    %115 = vector.extract_strided_slice %103 {offsets = [0, 16], sizes = [8, 16], strides = [1, 1]} : vector<8x48xf32> to vector<8x16xf32>
    %116 = vector.extract_strided_slice %106 {offsets = [0, 16], sizes = [8, 16], strides = [1, 1]} : vector<8x48xf32> to vector<8x16xf32>
    %117 = arith.addf %115, %116 : vector<8x16xf32>
    %118 = arith.negf %117 : vector<8x16xf32>
    %119 = math.exp %118 : vector<8x16xf32>
    %cst_36 = arith.constant 1.000000e+00 : f32
    %120 = vector.broadcast %cst_36 : f32 to vector<8x16xf32>
    %121 = arith.addf %120, %119 : vector<8x16xf32>
    %122 = arith.divf %120, %121 : vector<8x16xf32>
    %123 = vector.extract_strided_slice %103 {offsets = [0, 32], sizes = [8, 16], strides = [1, 1]} : vector<8x48xf32> to vector<8x16xf32>
    %124 = vector.extract_strided_slice %106 {offsets = [0, 32], sizes = [8, 16], strides = [1, 1]} : vector<8x48xf32> to vector<8x16xf32>
    %125 = arith.mulf %114, %124 : vector<8x16xf32>
    %126 = arith.addf %123, %125 : vector<8x16xf32>
    %127 = math.tanh %126 : vector<8x16xf32>
    %cst_37 = arith.constant 1.000000e+00 : f32
    %128 = vector.broadcast %cst_37 : f32 to vector<8x16xf32>
    %129 = arith.subf %128, %122 : vector<8x16xf32>
    %130 = arith.mulf %129, %127 : vector<8x16xf32>
    %131 = arith.mulf %122, %101 : vector<8x16xf32>
    %132 = arith.addf %130, %131 : vector<8x16xf32>
    %c24_38 = arith.constant 24 : index
    %c0_39 = arith.constant 0 : index
    %133 = vector.load %arg12[%c24_38, %c0_39] : memref<64x16xf32, #tpu.memory_space<vmem>>, vector<8x16xf32>
    tpu.vector_store %arg12[%c24_38, %c0_39], %132 {strides = array<i32>} : memref<64x16xf32, #tpu.memory_space<vmem>>, vector<8x16xf32>,
    %c32 = arith.constant 32 : index
    %c0_40 = arith.constant 0 : index
    %134 = vector.load %arg11[%c32, %c0_40] : memref<64x48xf32, #tpu.memory_space<vmem>>, vector<8x48xf32>
    %cst_41 = arith.constant dense<0.000000e+00> : vector<8x48xf32>
    %135 = tpu.matmul %132, %7, %cst_41 {dimension_numbers = #tpu.dot_dimension_numbers<[1], [0], [0], [1], [0, 0, 1, 1], [], []>} : vector<8x16xf32>, vector<16x48xf32>, vector<8x48xf32> -> vector<8x48xf32>
    %136 = vector.broadcast %8 : vector<1x48xf32> to vector<8x48xf32>
    %137 = arith.addf %135, %136 : vector<8x48xf32>
    %138 = vector.extract_strided_slice %134 {offsets = [0, 0], sizes = [8, 16], strides = [1, 1]} : vector<8x48xf32> to vector<8x16xf32>
    %139 = vector.extract_strided_slice %137 {offsets = [0, 0], sizes = [8, 16], strides = [1, 1]} : vector<8x48xf32> to vector<8x16xf32>
    %140 = arith.addf %138, %139 : vector<8x16xf32>
    %141 = arith.negf %140 : vector<8x16xf32>
    %142 = math.exp %141 : vector<8x16xf32>
    %cst_42 = arith.constant 1.000000e+00 : f32
    %143 = vector.broadcast %cst_42 : f32 to vector<8x16xf32>
    %144 = arith.addf %143, %142 : vector<8x16xf32>
    %145 = arith.divf %143, %144 : vector<8x16xf32>
    %146 = vector.extract_strided_slice %134 {offsets = [0, 16], sizes = [8, 16], strides = [1, 1]} : vector<8x48xf32> to vector<8x16xf32>
    %147 = vector.extract_strided_slice %137 {offsets = [0, 16], sizes = [8, 16], strides = [1, 1]} : vector<8x48xf32> to vector<8x16xf32>
    %148 = arith.addf %146, %147 : vector<8x16xf32>
    %149 = arith.negf %148 : vector<8x16xf32>
    %150 = math.exp %149 : vector<8x16xf32>
    %cst_43 = arith.constant 1.000000e+00 : f32
    %151 = vector.broadcast %cst_43 : f32 to vector<8x16xf32>
    %152 = arith.addf %151, %150 : vector<8x16xf32>
    %153 = arith.divf %151, %152 : vector<8x16xf32>
    %154 = vector.extract_strided_slice %134 {offsets = [0, 32], sizes = [8, 16], strides = [1, 1]} : vector<8x48xf32> to vector<8x16xf32>
    %155 = vector.extract_strided_slice %137 {offsets = [0, 32], sizes = [8, 16], strides = [1, 1]} : vector<8x48xf32> to vector<8x16xf32>
    %156 = arith.mulf %145, %155 : vector<8x16xf32>
    %157 = arith.addf %154, %156 : vector<8x16xf32>
    %158 = math.tanh %157 : vector<8x16xf32>
    %cst_44 = arith.constant 1.000000e+00 : f32
    %159 = vector.broadcast %cst_44 : f32 to vector<8x16xf32>
    %160 = arith.subf %159, %153 : vector<8x16xf32>
    %161 = arith.mulf %160, %158 : vector<8x16xf32>
    %162 = arith.mulf %153, %132 : vector<8x16xf32>
    %163 = arith.addf %161, %162 : vector<8x16xf32>
    %c32_45 = arith.constant 32 : index
    %c0_46 = arith.constant 0 : index
    %164 = vector.load %arg12[%c32_45, %c0_46] : memref<64x16xf32, #tpu.memory_space<vmem>>, vector<8x16xf32>
    tpu.vector_store %arg12[%c32_45, %c0_46], %163 {strides = array<i32>} : memref<64x16xf32, #tpu.memory_space<vmem>>, vector<8x16xf32>,
    %c40 = arith.constant 40 : index
    %c0_47 = arith.constant 0 : index
    %165 = vector.load %arg11[%c40, %c0_47] : memref<64x48xf32, #tpu.memory_space<vmem>>, vector<8x48xf32>
    %cst_48 = arith.constant dense<0.000000e+00> : vector<8x48xf32>
    %166 = tpu.matmul %163, %7, %cst_48 {dimension_numbers = #tpu.dot_dimension_numbers<[1], [0], [0], [1], [0, 0, 1, 1], [], []>} : vector<8x16xf32>, vector<16x48xf32>, vector<8x48xf32> -> vector<8x48xf32>
    %167 = vector.broadcast %8 : vector<1x48xf32> to vector<8x48xf32>
    %168 = arith.addf %166, %167 : vector<8x48xf32>
    %169 = vector.extract_strided_slice %165 {offsets = [0, 0], sizes = [8, 16], strides = [1, 1]} : vector<8x48xf32> to vector<8x16xf32>
    %170 = vector.extract_strided_slice %168 {offsets = [0, 0], sizes = [8, 16], strides = [1, 1]} : vector<8x48xf32> to vector<8x16xf32>
    %171 = arith.addf %169, %170 : vector<8x16xf32>
    %172 = arith.negf %171 : vector<8x16xf32>
    %173 = math.exp %172 : vector<8x16xf32>
    %cst_49 = arith.constant 1.000000e+00 : f32
    %174 = vector.broadcast %cst_49 : f32 to vector<8x16xf32>
    %175 = arith.addf %174, %173 : vector<8x16xf32>
    %176 = arith.divf %174, %175 : vector<8x16xf32>
    %177 = vector.extract_strided_slice %165 {offsets = [0, 16], sizes = [8, 16], strides = [1, 1]} : vector<8x48xf32> to vector<8x16xf32>
    %178 = vector.extract_strided_slice %168 {offsets = [0, 16], sizes = [8, 16], strides = [1, 1]} : vector<8x48xf32> to vector<8x16xf32>
    %179 = arith.addf %177, %178 : vector<8x16xf32>
    %180 = arith.negf %179 : vector<8x16xf32>
    %181 = math.exp %180 : vector<8x16xf32>
    %cst_50 = arith.constant 1.000000e+00 : f32
    %182 = vector.broadcast %cst_50 : f32 to vector<8x16xf32>
    %183 = arith.addf %182, %181 : vector<8x16xf32>
    %184 = arith.divf %182, %183 : vector<8x16xf32>
    %185 = vector.extract_strided_slice %165 {offsets = [0, 32], sizes = [8, 16], strides = [1, 1]} : vector<8x48xf32> to vector<8x16xf32>
    %186 = vector.extract_strided_slice %168 {offsets = [0, 32], sizes = [8, 16], strides = [1, 1]} : vector<8x48xf32> to vector<8x16xf32>
    %187 = arith.mulf %176, %186 : vector<8x16xf32>
    %188 = arith.addf %185, %187 : vector<8x16xf32>
    %189 = math.tanh %188 : vector<8x16xf32>
    %cst_51 = arith.constant 1.000000e+00 : f32
    %190 = vector.broadcast %cst_51 : f32 to vector<8x16xf32>
    %191 = arith.subf %190, %184 : vector<8x16xf32>
    %192 = arith.mulf %191, %189 : vector<8x16xf32>
    %193 = arith.mulf %184, %163 : vector<8x16xf32>
    %194 = arith.addf %192, %193 : vector<8x16xf32>
    %c40_52 = arith.constant 40 : index
    %c0_53 = arith.constant 0 : index
    %195 = vector.load %arg12[%c40_52, %c0_53] : memref<64x16xf32, #tpu.memory_space<vmem>>, vector<8x16xf32>
    tpu.vector_store %arg12[%c40_52, %c0_53], %194 {strides = array<i32>} : memref<64x16xf32, #tpu.memory_space<vmem>>, vector<8x16xf32>,
    %c48 = arith.constant 48 : index
    %c0_54 = arith.constant 0 : index
    %196 = vector.load %arg11[%c48, %c0_54] : memref<64x48xf32, #tpu.memory_space<vmem>>, vector<8x48xf32>
    %cst_55 = arith.constant dense<0.000000e+00> : vector<8x48xf32>
    %197 = tpu.matmul %194, %7, %cst_55 {dimension_numbers = #tpu.dot_dimension_numbers<[1], [0], [0], [1], [0, 0, 1, 1], [], []>} : vector<8x16xf32>, vector<16x48xf32>, vector<8x48xf32> -> vector<8x48xf32>
    %198 = vector.broadcast %8 : vector<1x48xf32> to vector<8x48xf32>
    %199 = arith.addf %197, %198 : vector<8x48xf32>
    %200 = vector.extract_strided_slice %196 {offsets = [0, 0], sizes = [8, 16], strides = [1, 1]} : vector<8x48xf32> to vector<8x16xf32>
    %201 = vector.extract_strided_slice %199 {offsets = [0, 0], sizes = [8, 16], strides = [1, 1]} : vector<8x48xf32> to vector<8x16xf32>
    %202 = arith.addf %200, %201 : vector<8x16xf32>
    %203 = arith.negf %202 : vector<8x16xf32>
    %204 = math.exp %203 : vector<8x16xf32>
    %cst_56 = arith.constant 1.000000e+00 : f32
    %205 = vector.broadcast %cst_56 : f32 to vector<8x16xf32>
    %206 = arith.addf %205, %204 : vector<8x16xf32>
    %207 = arith.divf %205, %206 : vector<8x16xf32>
    %208 = vector.extract_strided_slice %196 {offsets = [0, 16], sizes = [8, 16], strides = [1, 1]} : vector<8x48xf32> to vector<8x16xf32>
    %209 = vector.extract_strided_slice %199 {offsets = [0, 16], sizes = [8, 16], strides = [1, 1]} : vector<8x48xf32> to vector<8x16xf32>
    %210 = arith.addf %208, %209 : vector<8x16xf32>
    %211 = arith.negf %210 : vector<8x16xf32>
    %212 = math.exp %211 : vector<8x16xf32>
    %cst_57 = arith.constant 1.000000e+00 : f32
    %213 = vector.broadcast %cst_57 : f32 to vector<8x16xf32>
    %214 = arith.addf %213, %212 : vector<8x16xf32>
    %215 = arith.divf %213, %214 : vector<8x16xf32>
    %216 = vector.extract_strided_slice %196 {offsets = [0, 32], sizes = [8, 16], strides = [1, 1]} : vector<8x48xf32> to vector<8x16xf32>
    %217 = vector.extract_strided_slice %199 {offsets = [0, 32], sizes = [8, 16], strides = [1, 1]} : vector<8x48xf32> to vector<8x16xf32>
    %218 = arith.mulf %207, %217 : vector<8x16xf32>
    %219 = arith.addf %216, %218 : vector<8x16xf32>
    %220 = math.tanh %219 : vector<8x16xf32>
    %cst_58 = arith.constant 1.000000e+00 : f32
    %221 = vector.broadcast %cst_58 : f32 to vector<8x16xf32>
    %222 = arith.subf %221, %215 : vector<8x16xf32>
    %223 = arith.mulf %222, %220 : vector<8x16xf32>
    %224 = arith.mulf %215, %194 : vector<8x16xf32>
    %225 = arith.addf %223, %224 : vector<8x16xf32>
    %c48_59 = arith.constant 48 : index
    %c0_60 = arith.constant 0 : index
    %226 = vector.load %arg12[%c48_59, %c0_60] : memref<64x16xf32, #tpu.memory_space<vmem>>, vector<8x16xf32>
    tpu.vector_store %arg12[%c48_59, %c0_60], %225 {strides = array<i32>} : memref<64x16xf32, #tpu.memory_space<vmem>>, vector<8x16xf32>,
    %c56 = arith.constant 56 : index
    %c0_61 = arith.constant 0 : index
    %227 = vector.load %arg11[%c56, %c0_61] : memref<64x48xf32, #tpu.memory_space<vmem>>, vector<8x48xf32>
    %cst_62 = arith.constant dense<0.000000e+00> : vector<8x48xf32>
    %228 = tpu.matmul %225, %7, %cst_62 {dimension_numbers = #tpu.dot_dimension_numbers<[1], [0], [0], [1], [0, 0, 1, 1], [], []>} : vector<8x16xf32>, vector<16x48xf32>, vector<8x48xf32> -> vector<8x48xf32>
    %229 = vector.broadcast %8 : vector<1x48xf32> to vector<8x48xf32>
    %230 = arith.addf %228, %229 : vector<8x48xf32>
    %231 = vector.extract_strided_slice %227 {offsets = [0, 0], sizes = [8, 16], strides = [1, 1]} : vector<8x48xf32> to vector<8x16xf32>
    %232 = vector.extract_strided_slice %230 {offsets = [0, 0], sizes = [8, 16], strides = [1, 1]} : vector<8x48xf32> to vector<8x16xf32>
    %233 = arith.addf %231, %232 : vector<8x16xf32>
    %234 = arith.negf %233 : vector<8x16xf32>
    %235 = math.exp %234 : vector<8x16xf32>
    %cst_63 = arith.constant 1.000000e+00 : f32
    %236 = vector.broadcast %cst_63 : f32 to vector<8x16xf32>
    %237 = arith.addf %236, %235 : vector<8x16xf32>
    %238 = arith.divf %236, %237 : vector<8x16xf32>
    %239 = vector.extract_strided_slice %227 {offsets = [0, 16], sizes = [8, 16], strides = [1, 1]} : vector<8x48xf32> to vector<8x16xf32>
    %240 = vector.extract_strided_slice %230 {offsets = [0, 16], sizes = [8, 16], strides = [1, 1]} : vector<8x48xf32> to vector<8x16xf32>
    %241 = arith.addf %239, %240 : vector<8x16xf32>
    %242 = arith.negf %241 : vector<8x16xf32>
    %243 = math.exp %242 : vector<8x16xf32>
    %cst_64 = arith.constant 1.000000e+00 : f32
    %244 = vector.broadcast %cst_64 : f32 to vector<8x16xf32>
    %245 = arith.addf %244, %243 : vector<8x16xf32>
    %246 = arith.divf %244, %245 : vector<8x16xf32>
    %247 = vector.extract_strided_slice %227 {offsets = [0, 32], sizes = [8, 16], strides = [1, 1]} : vector<8x48xf32> to vector<8x16xf32>
    %248 = vector.extract_strided_slice %230 {offsets = [0, 32], sizes = [8, 16], strides = [1, 1]} : vector<8x48xf32> to vector<8x16xf32>
    %249 = arith.mulf %238, %248 : vector<8x16xf32>
    %250 = arith.addf %247, %249 : vector<8x16xf32>
    %251 = math.tanh %250 : vector<8x16xf32>
    %cst_65 = arith.constant 1.000000e+00 : f32
    %252 = vector.broadcast %cst_65 : f32 to vector<8x16xf32>
    %253 = arith.subf %252, %246 : vector<8x16xf32>
    %254 = arith.mulf %253, %251 : vector<8x16xf32>
    %255 = arith.mulf %246, %225 : vector<8x16xf32>
    %256 = arith.addf %254, %255 : vector<8x16xf32>
    %c56_66 = arith.constant 56 : index
    %c0_67 = arith.constant 0 : index
    %257 = vector.load %arg12[%c56_66, %c0_67] : memref<64x16xf32, #tpu.memory_space<vmem>>, vector<8x16xf32>
    tpu.vector_store %arg12[%c56_66, %c0_67], %256 {strides = array<i32>} : memref<64x16xf32, #tpu.memory_space<vmem>>, vector<8x16xf32>,
    %c0_68 = arith.constant 0 : index
    %c0_69 = arith.constant 0 : index
    %258 = vector.load %arg12[%c0_68, %c0_69] : memref<64x16xf32, #tpu.memory_space<vmem>>, vector<64x16xf32>
    %c0_70 = arith.constant 0 : index
    %c0_71 = arith.constant 0 : index
    %259 = vector.load %arg1[%c0_70, %c0_71] : memref<64x1xf32, #tpu.memory_space<vmem>>, vector<64x1xf32>
    %260 = vector.broadcast %259 : vector<64x1xf32> to vector<64x16xf32>
    %261 = arith.mulf %258, %260 : vector<64x16xf32>
    %c0_72 = arith.constant 0 : index
    %c0_73 = arith.constant 0 : index
    %262 = vector.load %arg2[%c0_72, %c0_73] : memref<8x64xf32, #tpu.memory_space<vmem>>, vector<8x64xf32>
    %263 = tpu.concatenate %262, %262, %262, %262, %262, %262, %262, %262 in 0 : vector<8x64xf32>, vector<8x64xf32>, vector<8x64xf32>, vector<8x64xf32>, vector<8x64xf32>, vector<8x64xf32>, vector<8x64xf32>, vector<8x64xf32> -> vector<64x64xf32>
    %c0_74 = arith.constant 0 : index
    %c0_75 = arith.constant 0 : index
    %264 = vector.load %arg6[%c0_74, %c0_75] : memref<16x64xf32, #tpu.memory_space<vmem>>, vector<16x64xf32>
    %cst_76 = arith.constant dense<0.000000e+00> : vector<64x64xf32>
    %265 = tpu.matmul %261, %264, %cst_76 {dimension_numbers = #tpu.dot_dimension_numbers<[1], [0], [0], [1], [0, 0, 1, 1], [], []>} : vector<64x16xf32>, vector<16x64xf32>, vector<64x64xf32> -> vector<64x64xf32>
    %266 = tpu.iota {dimensions = array<i32: 0>} : vector<64x4xi32>
    %267 = tpu.iota {dimensions = array<i32: 1>} : vector<64x4xi32>
    %c16_i32 = arith.constant 16 : i32
    %268 = vector.broadcast %c16_i32 : i32 to vector<64x4xi32>
    %269 = arith.muli %267, %268 : vector<64x4xi32>
    %270 = arith.cmpi sge, %266, %269 : vector<64x4xi32>
    %c16_i32_77 = arith.constant 16 : i32
    %271 = vector.broadcast %c16_i32_77 : i32 to vector<64x4xi32>
    %272 = arith.addi %269, %271 : vector<64x4xi32>
    %273 = arith.cmpi slt, %266, %272 : vector<64x4xi32>
    %274 = arith.andi %270, %273 : vector<64x4xi1>
    %275 = arith.extui %274 : vector<64x4xi1> to vector<64x4xi32>
    %276 = arith.sitofp %275 : vector<64x4xi32> to vector<64x4xf32>
    %277 = tpu.iota {dimensions = array<i32: 1>} : vector<4x64xi32>
    %278 = tpu.iota {dimensions = array<i32: 0>} : vector<4x64xi32>
    %c16_i32_78 = arith.constant 16 : i32
    %279 = vector.broadcast %c16_i32_78 : i32 to vector<4x64xi32>
    %280 = arith.muli %278, %279 : vector<4x64xi32>
    %281 = arith.cmpi sge, %277, %280 : vector<4x64xi32>
    %c16_i32_79 = arith.constant 16 : i32
    %282 = vector.broadcast %c16_i32_79 : i32 to vector<4x64xi32>
    %283 = arith.addi %280, %282 : vector<4x64xi32>
    %284 = arith.cmpi slt, %277, %283 : vector<4x64xi32>
    %285 = arith.andi %281, %284 : vector<4x64xi1>
    %286 = arith.extui %285 : vector<4x64xi1> to vector<4x64xi32>
    %287 = arith.sitofp %286 : vector<4x64xi32> to vector<4x64xf32>
    %288 = tpu.iota {dimensions = array<i32: 0>} : vector<16x16xi32>
    %289 = tpu.iota {dimensions = array<i32: 1>} : vector<16x16xi32>
    %290 = arith.cmpi eq, %288, %289 : vector<16x16xi32>
    %291 = arith.extui %290 : vector<16x16xi1> to vector<16x16xi32>
    %292 = arith.sitofp %291 : vector<16x16xi32> to vector<16x16xf32>
    %293 = tpu.concatenate %292, %292, %292, %292 in 0 : vector<16x16xf32>, vector<16x16xf32>, vector<16x16xf32>, vector<16x16xf32> -> vector<64x16xf32>
    %294 = arith.mulf %265, %263 : vector<64x64xf32>
    %cst_80 = arith.constant dense<0.000000e+00> : vector<64x4xf32>
    %295 = tpu.matmul %294, %276, %cst_80 {dimension_numbers = #tpu.dot_dimension_numbers<[1], [0], [0], [1], [0, 0, 1, 1], [], []>} : vector<64x64xf32>, vector<64x4xf32>, vector<64x4xf32> -> vector<64x4xf32>
    %cst_81 = arith.constant dense<0xFF800000> : vector<64xf32>
    %296 = vector.multi_reduction <maximumf>, %295, %cst_81 [1] : vector<64x4xf32> to vector<64xf32>
    %297 = vector.shape_cast %296 : vector<64xf32> to vector<64x1xf32>
    %298 = vector.broadcast %297 : vector<64x1xf32> to vector<64x4xf32>
    %299 = arith.subf %295, %298 : vector<64x4xf32>
    %300 = math.exp %299 : vector<64x4xf32>
    %cst_82 = arith.constant dense<0.000000e+00> : vector<64xf32>
    %301 = vector.multi_reduction <add>, %300, %cst_82 [1] : vector<64x4xf32> to vector<64xf32>
    %302 = vector.shape_cast %301 : vector<64xf32> to vector<64x1xf32>
    %303 = vector.broadcast %302 : vector<64x1xf32> to vector<64x4xf32>
    %304 = arith.divf %300, %303 : vector<64x4xf32>
    %cst_83 = arith.constant dense<0.000000e+00> : vector<64x64xf32>
    %305 = tpu.matmul %304, %287, %cst_83 {dimension_numbers = #tpu.dot_dimension_numbers<[1], [0], [0], [1], [0, 0, 1, 1], [], []>} : vector<64x4xf32>, vector<4x64xf32>, vector<64x64xf32> -> vector<64x64xf32>
    %306 = arith.mulf %305, %263 : vector<64x64xf32>
    %cst_84 = arith.constant dense<0.000000e+00> : vector<64x16xf32>
    %307 = tpu.matmul %306, %293, %cst_84 {dimension_numbers = #tpu.dot_dimension_numbers<[1], [0], [0], [1], [0, 0, 1, 1], [], []>} : vector<64x64xf32>, vector<64x16xf32>, vector<64x16xf32> -> vector<64x16xf32>
    %308 = tpu.iota {dimensions = array<i32: 0>} : vector<64x1xi32>
    %c8_i32 = arith.constant 8 : i32
    %309 = vector.broadcast %c8_i32 : i32 to vector<64x1xi32>
    %310 = arith.cmpi sge, %308, %309 : vector<64x1xi32>
    %311 = arith.extui %310 : vector<64x1xi1> to vector<64x1xi32>
    %312 = arith.sitofp %311 : vector<64x1xi32> to vector<64x1xf32>
    %313 = vector.broadcast %312 : vector<64x1xf32> to vector<64x16xf32>
    %314 = arith.mulf %307, %313 : vector<64x16xf32>
    %c0_85 = arith.constant 0 : index
    %c0_86 = arith.constant 0 : index
    %315 = vector.load %arg7[%c0_85, %c0_86] : memref<16x32xf32, #tpu.memory_space<vmem>>, vector<16x32xf32>
    %cst_87 = arith.constant dense<0.000000e+00> : vector<64x32xf32>
    %316 = tpu.matmul %261, %315, %cst_87 {dimension_numbers = #tpu.dot_dimension_numbers<[1], [0], [0], [1], [0, 0, 1, 1], [], []>} : vector<64x16xf32>, vector<16x32xf32>, vector<64x32xf32> -> vector<64x32xf32>
    %c0_88 = arith.constant 0 : index
    %c0_89 = arith.constant 0 : index
    %317 = vector.load %arg8[%c0_88, %c0_89] : memref<16x32xf32, #tpu.memory_space<vmem>>, vector<16x32xf32>
    %cst_90 = arith.constant dense<0.000000e+00> : vector<64x32xf32>
    %318 = tpu.matmul %314, %317, %cst_90 {dimension_numbers = #tpu.dot_dimension_numbers<[1], [0], [0], [1], [0, 0, 1, 1], [], []>} : vector<64x16xf32>, vector<16x32xf32>, vector<64x32xf32> -> vector<64x32xf32>
    %319 = arith.addf %316, %318 : vector<64x32xf32>
    %c0_91 = arith.constant 0 : index
    %c0_92 = arith.constant 0 : index
    %320 = vector.load %arg9[%c0_91, %c0_92] : memref<1x32xf32, #tpu.memory_space<vmem>>, vector<1x32xf32>
    %321 = vector.broadcast %320 : vector<1x32xf32> to vector<64x32xf32>
    %322 = arith.addf %319, %321 : vector<64x32xf32>
    %c0_93 = arith.constant 0 : index
    %c0_94 = arith.constant 0 : index
    %323 = vector.load %arg10[%c0_93, %c0_94] : memref<64x32xf32, #tpu.memory_space<vmem>>, vector<64x32xf32>
    tpu.vector_store %arg10[%c0_93, %c0_94], %322 {strides = array<i32>} : memref<64x32xf32, #tpu.memory_space<vmem>>, vector<64x32xf32>,
    return
  }
}

</mosaic_0001>

<llo_original>
// kernel: custom-call
$region0: #{custom-call}
  #allocation0 [shape = 'u32[8,128]{1,0}', space=vmem, size = 0x1000, scoped, tag = 'scratch']
  #allocation1 [shape = 'u32[8,128]{1,0}', space=vmem, size = 0x1000, scoped, tag = 'scratch']
  #allocation2 [shape = 'u32[8,128]{1,0}', space=vmem, size = 0x1000, scoped, tag = 'scratch']
  #allocation3 [shape = 'u32[8,128]{1,0}', space=vmem, size = 0x1000, scoped, tag = 'scratch']
  #allocation4 [shape = 'u32[8,128]{1,0}', space=vmem, size = 0x1000, scoped, tag = 'scratch']
  #allocation5 [shape = 'u32[8,128]{1,0}', space=vmem, size = 0x1000, scoped, tag = 'scratch']
  #allocation6 [shape = 'u32[8,128]{1,0}', space=vmem, size = 0x1000, scoped, tag = 'scratch']
  %s0 = inlined_call_operand.vmem [shape: f32[4,1000], index: 0, kind: input, shape index: {}]
  %s1 = inlined_call_operand.hbm [shape: f32[4,4], index: 1, kind: output, shape index: {0}]
  %s2 = inlined_call_operand.vmem [shape: s32[4,4], index: 2, kind: output, shape index: {1}]
  %3 = xla_tuple %s1, %s2
  %4 = xla_tuple 2147483648, 2147483647
  $region1: #{custom-call} parent=0
    #allocation7 [shape = 'u8[4096]{0}', space=vmem, size = 0x1000, scoped, tag = 'operand span for operand 1']
    #allocation8 [shape = 'u8[2048]{0}', space=vmem, size = 0x800, scoped, tag = 'packed  for operand 1']
    #allocation9 [shape = 's32[1]{0}', space=sflag, size = 0x4, scoped, tag = 'scoped memory for custom-call']
    #allocation10 [shape = 'u8[4096]{0}', space=vmem, size = 0x1000, scoped, tag = 'operand span for operand 2']
    #allocation11 [shape = 'u8[2048]{0}', space=vmem, size = 0x800, scoped, tag = 'packed  for operand 2']
    #allocation12 [shape = 'f32[4,4]{1,0:T(8,128)}', space=vmem, size = 0x1000, scoped, tag = 'scoped memory for custom-call']
    #allocation13 [shape = 'f32[4,4]{1,0:T(8,128)}', space=vmem, size = 0x1000, scoped, tag = 'scoped memory for custom-call']
    #allocation14 [shape = 's32[4,4]{1,0:T(8,128)}', space=vmem, size = 0x1000, scoped, tag = 'scoped memory for custom-call']
    #allocation15 [shape = 's32[4,4]{1,0:T(8,128)}', space=vmem, size = 0x1000, scoped, tag = 'scoped memory for custom-call']
    %5 = vsyncpa [#allocation9], 0
    %6 = xla_tuple [#allocation7], [#allocation10]
    %7 = vst [vmem:[#allocation12] sm:$0xff] 2147483648
    %8 = vst [vmem:[#allocation14] sm:$0xff] 2147483647
    %9 = xla_tuple [#allocation12], [#allocation14]
    %10 = xla_tuple [#allocation13], [#allocation15]
    $region2: #{custom-call} parent=1
      #allocation16 [shape = 'u8[16384]{0}', space=vmem, size = 0x4000, scoped, tag = 'operand span for operand 0']
      #allocation17 [shape = 's32[4096]{0}', space=vmem, size = 0x4000, scoped, tag = 'scoped memory for custom-call']
      // Predicated region
      $region3: #{custom-call} parent=2 // pred_check
        _
      $region4: #{custom-call} parent=2 // pred_check_branch
        %12 = sbr.rel (0) target = $region6
      $region5: #{custom-call} parent=2 // pred_region
        // Predicated region
        $region7: #{custom-call} parent=5 // pred_check
          _
        $region8: #{custom-call} parent=5 // pred_check_branch
          %14 = sbr.rel (0) target = $region10
        $region9: #{custom-call} parent=5 // pred_region
          // Predicated region
          $region11: #{custom-call} parent=9 // pred_check
            _
          $region12: #{custom-call} parent=9 // pred_check_branch
            %16 = sbr.rel (0) target = $region14
          $region13: #{custom-call} parent=9 // pred_region
            loop: start=0, step=1, limit=1
            $region15: #{custom-call} parent=13 // loop_pre_header
              _
            $region16: #{custom-call} parent=13 // loop_header
              %s18 = sphi 0, %s22
              %p19 = scmp.ge.s32.totalorder %s18, 1
              %s23 = sphi %s0, %s0
              %s24 = sphi [#allocation16], [#allocation16]
            $region17: #{custom-call} parent=13 // loop_header_branch
              %21 = sbr.rel (%p19) target = $region21
            $region18: #{custom-call} parent=13 // loop_body
              %v25 = vld [vmem:[%s23] sm:$0xff]
              %26 = vst [vmem:[%s24] sm:$0xff] %v25
              %v27 = vld [vmem:[%s23 + $0x8] sm:$0xff]
              %28 = vst [vmem:[%s24 + $0x8] sm:$0xff] %v27
              %v29 = vld [vmem:[%s23 + $0x10] sm:$0xff]
              %30 = vst [vmem:[%s24 + $0x10] sm:$0xff] %v29
              %v31 = vld [vmem:[%s23 + $0x18] sm:$0xff]
              %32 = vst [vmem:[%s24 + $0x18] sm:$0xff] %v31
            $region19: #{custom-call} parent=13 // loop_footer
              %s22 = sadd.s32 1, %s18
            $region20: #{custom-call} parent=13 // loop_footer_branch
              %17 = sbr.rel target = $region16
            $region21: #{custom-call} parent=13 // loop_exit
              _
          $region14: #{custom-call} parent=9 // pred_fallthru
            _
          // Predicated region
          $region22: #{custom-call} parent=9 // pred_check
            _
          $region23: #{custom-call} parent=9 // pred_check_branch
            %34 = sbr.rel target = $region25
          $region24: #{custom-call} parent=9 // pred_region
            _
          $region25: #{custom-call} parent=9 // pred_fallthru
            _
        $region10: #{custom-call} parent=5 // pred_fallthru
          _
        %35 = vnop
      $region6: #{custom-call} parent=2 // pred_fallthru
        _
      // Predicated region
      $region26: #{custom-call} parent=2 // pred_check
        _
      $region27: #{custom-call} parent=2 // pred_check_branch
        %37 = sbr.rel (0) target = $region29
      $region28: #{custom-call} parent=2 // pred_region
        _
      $region29: #{custom-call} parent=2 // pred_fallthru
        _
      %v38 = vlaneseq
      %v39 = vand.u32 %v38, 127
      %v40 = vlaneseq
      %v41 = vshrl.u32 %v40, 7
      %v42 = vshrl.u32 %v41, 2
      %v43 = vand.u32 %v41, 3
      %v44 = vmul.u32 %v42, 128
      %v45 = vadd.s32 %v39, %v44
      %v47 = vld [vmem:[#allocation16] sm:$0xff]
      %vm48 = vcmp.lt.s32.totalorder %v47, 0
      %v49 = vsub.s32 2147483647, %v47
      %v50 = vsel %vm48, %v49, %v47
      %vm52 = vcmp.lt.s32.totalorder %v45, 1000
      %v53 = vsel %vm52, %v50, 2147483648
      %54 = vst [vmem:[#allocation16] sm:$0xff] %v53
      %s55 = scalar_lea.vmem [#allocation16], 8
      %v56 = vld [vmem:[%s55] sm:$0xff]
      %vm57 = vcmp.lt.s32.totalorder %v56, 0
      %v58 = vsub.s32 2147483647, %v56
      %v59 = vsel %vm57, %v58, %v56
      %v60 = vadd.s32 %v45, 256
      %vm61 = vcmp.lt.s32.totalorder %v60, 1000
      %v62 = vsel %vm61, %v59, 2147483648
      %63 = vst [vmem:[%s55] sm:$0xff] %v62
      %s64 = scalar_lea.vmem [#allocation16], 16
      %v65 = vld [vmem:[%s64] sm:$0xff]
      %vm66 = vcmp.lt.s32.totalorder %v65, 0
      %v67 = vsub.s32 2147483647, %v65
      %v68 = vsel %vm66, %v67, %v65
      %v69 = vadd.s32 %v45, 512
      %vm70 = vcmp.lt.s32.totalorder %v69, 1000
      %v71 = vsel %vm70, %v68, 2147483648
      %72 = vst [vmem:[%s64] sm:$0xff] %v71
      %s73 = scalar_lea.vmem [#allocation16], 24
      %v74 = vld [vmem:[%s73] sm:$0xff]
      %vm75 = vcmp.lt.s32.totalorder %v74, 0
      %v76 = vsub.s32 2147483647, %v74
      %v77 = vsel %vm75, %v76, %v74
      %v78 = vadd.s32 %v45, 768
      %vm79 = vcmp.lt.s32.totalorder %v78, 1000
      %v80 = vsel %vm79, %v77, 2147483648
      %81 = vst [vmem:[%s73] sm:$0xff] %v80
      %v82 = vlaneseq
      %v83 = vand.u32 %v82, 127
      %v84 = vlaneseq
      %v85 = vshrl.u32 %v84, 7
      %v86 = vshrl.u32 %v85, 2
      %v87 = vand.u32 %v85, 3
      %v88 = vmul.u32 %v86, 128
      %v89 = vadd.s32 %v83, %v88
      %92 = vst [vmem:[#allocation17] sm:$0xff] %v89
      %v93 = vadd.s32 %v89, 256
      %s94 = scalar_lea.vmem [#allocation17], 8
      %95 = vst [vmem:[%s94] sm:$0xff] %v93
      %v96 = vadd.s32 %v89, 512
      %s97 = scalar_lea.vmem [#allocation17], 16
      %98 = vst [vmem:[%s97] sm:$0xff] %v96
      %v99 = vadd.s32 %v89, 768
      %s100 = scalar_lea.vmem [#allocation17], 24
      %101 = vst [vmem:[%s100] sm:$0xff] %v99
      %102 = xla_tuple [#allocation16], [#allocation17]
      %103 = vst [vmem:[#allocation13] sm:$0xff] 2147483648
      %104 = vst [vmem:[#allocation15] sm:$0xff] 2147483647
      %105 = xla_tuple [#allocation13], [#allocation15]
      loop: start=0, step=1, limit=4
      $region30: #{custom-call} parent=2 // loop_pre_header
        _
      $region31: #{custom-call} parent=2 // loop_header
        %s107 = sphi 0, %s111
        %p108 = scmp.ge.s32.totalorder %s107, 4
      $region32: #{custom-call} parent=2 // loop_header_branch
        %110 = sbr.rel (%p108) target = $region36
      $region33: #{custom-call} parent=2 // loop_body
        %v112 = vld [vmem:[#allocation16] sm:$0xff]
        %v113 = vld [vmem:[#allocation17] sm:$0xff]
        %114 = xla_tuple %v112, %v113
        %s115 = scalar_lea.vmem [#allocation16], 8
        %v116 = vld [vmem:[%s115] sm:$0xff]
        %s117 = scalar_lea.vmem [#allocation17], 8
        %v118 = vld [vmem:[%s117] sm:$0xff]
        %119 = xla_tuple %v116, %v118
        %vm120 = vcmp.gt.s32.totalorder %v116, %v112
        %vm121 = vcmp.eq.s32.totalorder %v116, %v112
        %vm122 = vcmp.lt.s32.totalorder %v118, %v113
        %vm123 = vmand %vm121, %vm122
        %vm124 = vmor %vm120, %vm123
        %v125 = vsel %vm124, %v116, %v112
        %v126 = vsel %vm124, %v118, %v113
        %127 = xla_tuple %v125, %v126
        %s128 = scalar_lea.vmem [#allocation16], 16
        %v129 = vld [vmem:[%s128] sm:$0xff]
        %s130 = scalar_lea.vmem [#allocation17], 16
        %v131 = vld [vmem:[%s130] sm:$0xff]
        %132 = xla_tuple %v129, %v131
        %vm133 = vcmp.gt.s32.totalorder %v129, %v125
        %vm134 = vcmp.eq.s32.totalorder %v129, %v125
        %vm135 = vcmp.lt.s32.totalorder %v131, %v126
        %vm136 = vmand %vm134, %vm135
        %vm137 = vmor %vm133, %vm136
        %v138 = vsel %vm137, %v129, %v125
        %v139 = vsel %vm137, %v131, %v126
        %140 = xla_tuple %v138, %v139
        %s141 = scalar_lea.vmem [#allocation16], 24
        %v142 = vld [vmem:[%s141] sm:$0xff]
        %s143 = scalar_lea.vmem [#allocation17], 24
        %v144 = vld [vmem:[%s143] sm:$0xff]
        %145 = xla_tuple %v142, %v144
        %vm146 = vcmp.gt.s32.totalorder %v142, %v138
        %vm147 = vcmp.eq.s32.totalorder %v142, %v138
        %vm148 = vcmp.lt.s32.totalorder %v144, %v139
        %vm149 = vmand %vm147, %vm148
        %vm150 = vmor %vm146, %vm149
        %v151 = vsel %vm150, %v142, %v138
        %v152 = vsel %vm150, %v144, %v139
        %153 = xla_tuple %v151, %v152
        %v154 = vrot.slane %v151, 4
        %v155 = vrot.slane %v152, 4
        %156 = xla_tuple %v154, %v155
        %vm157 = vcmp.gt.s32.totalorder %v154, %v151
        %vm158 = vcmp.eq.s32.totalorder %v154, %v151
        %vm159 = vcmp.lt.s32.totalorder %v155, %v152
        %vm160 = vmand %vm158, %vm159
        %vm161 = vmor %vm157, %vm160
        %v162 = vsel %vm161, %v154, %v151
        %v163 = vsel %vm161, %v155, %v152
        %164 = xla_tuple %v162, %v163
        %165 = vxpose.xlu0.b32.start [1/16] %v162, 128
        %166 = vxpose.xlu0.b32.cont [2/16] %v162, 128
        %167 = vxpose.xlu0.b32.cont [3/16] %v162, 128
        %168 = vxpose.xlu0.b32.cont [4/16] %v162, 128
        %169 = vxpose.xlu0.b32.cont [5/16] %v162, 128
        %170 = vxpose.xlu0.b32.cont [6/16] %v162, 128
        %171 = vxpose.xlu0.b32.cont [7/16] %v162, 128
        %172 = vxpose.xlu0.b32.cont [8/16] %v162, 128
        %173 = vxpose.xlu0.b32.cont [9/16] %v162, 128
        %174 = vxpose.xlu0.b32.cont [10/16] %v162, 128
        %175 = vxpose.xlu0.b32.cont [11/16] %v162, 128
        %176 = vxpose.xlu0.b32.cont [12/16] %v162, 128
        %177 = vxpose.xlu0.b32.cont [13/16] %v162, 128
        %178 = vxpose.xlu0.b32.cont [14/16] %v162, 128
        %179 = vxpose.xlu0.b32.cont [15/16] %v162, 128
        %180 = vxpose.xlu0.b32.end [16/16] %v162, 128
        %v181 = vpop.trf.xlu0
        %v182 = vpop.trf.xlu0
        %v183 = vpop.trf.xlu0
        %v184 = vpop.trf.xlu0
        %v185 = vpop.trf.xlu0
        %v186 = vpop.trf.xlu0
        %v187 = vpop.trf.xlu0
        %v188 = vpop.trf.xlu0
        %v189 = vpop.trf.xlu0
        %v190 = vpop.trf.xlu0
        %v191 = vpop.trf.xlu0
        %v192 = vpop.trf.xlu0
        %v193 = vpop.trf.xlu0
        %v194 = vpop.trf.xlu0
        %v195 = vpop.trf.xlu0
        %v196 = vpop.trf.xlu0
        %197 = vxpose.xlu0.b32.start [1/16] %v163, 128
        %198 = vxpose.xlu0.b32.cont [2/16] %v163, 128
        %199 = vxpose.xlu0.b32.cont [3/16] %v163, 128
        %200 = vxpose.xlu0.b32.cont [4/16] %v163, 128
        %201 = vxpose.xlu0.b32.cont [5/16] %v163, 128
        %202 = vxpose.xlu0.b32.cont [6/16] %v163, 128
        %203 = vxpose.xlu0.b32.cont [7/16] %v163, 128
        %204 = vxpose.xlu0.b32.cont [8/16] %v163, 128
        %205 = vxpose.xlu0.b32.cont [9/16] %v163, 128
        %206 = vxpose.xlu0.b32.cont [10/16] %v163, 128
        %207 = vxpose.xlu0.b32.cont [11/16] %v163, 128
        %208 = vxpose.xlu0.b32.cont [12/16] %v163, 128
        %209 = vxpose.xlu0.b32.cont [13/16] %v163, 128
        %210 = vxpose.xlu0.b32.cont [14/16] %v163, 128
        %211 = vxpose.xlu0.b32.cont [15/16] %v163, 128
        %212 = vxpose.xlu0.b32.end [16/16] %v163, 128
        %v213 = vpop.trf.xlu0
        %v214 = vpop.trf.xlu0
        %v215 = vpop.trf.xlu0
        %v216 = vpop.trf.xlu0
        %v217 = vpop.trf.xlu0
        %v218 = vpop.trf.xlu0
        %v219 = vpop.trf.xlu0
        %v220 = vpop.trf.xlu0
        %v221 = vpop.trf.xlu0
        %v222 = vpop.trf.xlu0
        %v223 = vpop.trf.xlu0
        %v224 = vpop.trf.xlu0
        %v225 = vpop.trf.xlu0
        %v226 = vpop.trf.xlu0
        %v227 = vpop.trf.xlu0
        %v228 = vpop.trf.xlu0
        %229 = xla_tuple %v181, %v213
        %230 = xla_tuple %v182, %v214
        %vm231 = vcmp.gt.s32.totalorder %v182, %v181
        %vm232 = vcmp.eq.s32.totalorder %v182, %v181
        %vm233 = vcmp.lt.s32.totalorder %v214, %v213
        %vm234 = vmand %vm232, %vm233
        %vm235 = vmor %vm231, %vm234
        %v236 = vsel %vm235, %v182, %v181
        %v237 = vsel %vm235, %v214, %v213
        %238 = xla_tuple %v236, %v237
        %239 = xla_tuple %v183, %v215
        %vm240 = vcmp.gt.s32.totalorder %v183, %v236
        %vm241 = vcmp.eq.s32.totalorder %v183, %v236
        %vm242 = vcmp.lt.s32.totalorder %v215, %v237
        %vm243 = vmand %vm241, %vm242
        %vm244 = vmor %vm240, %vm243
        %v245 = vsel %vm244, %v183, %v236
        %v246 = vsel %vm244, %v215, %v237
        %247 = xla_tuple %v245, %v246
        %248 = xla_tuple %v184, %v216
        %vm249 = vcmp.gt.s32.totalorder %v184, %v245
        %vm250 = vcmp.eq.s32.totalorder %v184, %v245
        %vm251 = vcmp.lt.s32.totalorder %v216, %v246
        %vm252 = vmand %vm250, %vm251
        %vm253 = vmor %vm249, %vm252
        %v254 = vsel %vm253, %v184, %v245
        %v255 = vsel %vm253, %v216, %v246
        %256 = xla_tuple %v254, %v255
        %257 = xla_tuple %v185, %v217
        %vm258 = vcmp.gt.s32.totalorder %v185, %v254
        %vm259 = vcmp.eq.s32.totalorder %v185, %v254
        %vm260 = vcmp.lt.s32.totalorder %v217, %v255
        %vm261 = vmand %vm259, %vm260
        %vm262 = vmor %vm258, %vm261
        %v263 = vsel %vm262, %v185, %v254
        %v264 = vsel %vm262, %v217, %v255
        %265 = xla_tuple %v263, %v264
        %266 = xla_tuple %v186, %v218
        %vm267 = vcmp.gt.s32.totalorder %v186, %v263
        %vm268 = vcmp.eq.s32.totalorder %v186, %v263
        %vm269 = vcmp.lt.s32.totalorder %v218, %v264
        %vm270 = vmand %vm268, %vm269
        %vm271 = vmor %vm267, %vm270
        %v272 = vsel %vm271, %v186, %v263
        %v273 = vsel %vm271, %v218, %v264
        %274 = xla_tuple %v272, %v273
        %275 = xla_tuple %v187, %v219
        %vm276 = vcmp.gt.s32.totalorder %v187, %v272
        %vm277 = vcmp.eq.s32.totalorder %v187, %v272
        %vm278 = vcmp.lt.s32.totalorder %v219, %v273
        %vm279 = vmand %vm277, %vm278
        %vm280 = vmor %vm276, %vm279
        %v281 = vsel %vm280, %v187, %v272
        %v282 = vsel %vm280, %v219, %v273
        %283 = xla_tuple %v281, %v282
        %284 = xla_tuple %v188, %v220
        %vm285 = vcmp.gt.s32.totalorder %v188, %v281
        %vm286 = vcmp.eq.s32.totalorder %v188, %v281
        %vm287 = vcmp.lt.s32.totalorder %v220, %v282
        %vm288 = vmand %vm286, %vm287
        %vm289 = vmor %vm285, %vm288
        %v290 = vsel %vm289, %v188, %v281
        %v291 = vsel %vm289, %v220, %v282
        %292 = xla_tuple %v290, %v291
        %293 = xla_tuple %v189, %v221
        %vm294 = vcmp.gt.s32.totalorder %v189, %v290
        %vm295 = vcmp.eq.s32.totalorder %v189, %v290
        %vm296 = vcmp.lt.s32.totalorder %v221, %v291
        %vm297 = vmand %vm295, %vm296
        %vm298 = vmor %vm294, %vm297
        %v299 = vsel %vm298, %v189, %v290
        %v300 = vsel %vm298, %v221, %v291
        %301 = xla_tuple %v299, %v300
        %302 = xla_tuple %v190, %v222
        %vm303 = vcmp.gt.s32.totalorder %v190, %v299
        %vm304 = vcmp.eq.s32.totalorder %v190, %v299
        %vm305 = vcmp.lt.s32.totalorder %v222, %v300
        %vm306 = vmand %vm304, %vm305
        %vm307 = vmor %vm303, %vm306
        %v308 = vsel %vm307, %v190, %v299
        %v309 = vsel %vm307, %v222, %v300
        %310 = xla_tuple %v308, %v309
        %311 = xla_tuple %v191, %v223
        %vm312 = vcmp.gt.s32.totalorder %v191, %v308
        %vm313 = vcmp.eq.s32.totalorder %v191, %v308
        %vm314 = vcmp.lt.s32.totalorder %v223, %v309
        %vm315 = vmand %vm313, %vm314
        %vm316 = vmor %vm312, %vm315
        %v317 = vsel %vm316, %v191, %v308
        %v318 = vsel %vm316, %v223, %v309
        %319 = xla_tuple %v317, %v318
        %320 = xla_tuple %v192, %v224
        %vm321 = vcmp.gt.s32.totalorder %v192, %v317
        %vm322 = vcmp.eq.s32.totalorder %v192, %v317
        %vm323 = vcmp.lt.s32.totalorder %v224, %v318
        %vm324 = vmand %vm322, %vm323
        %vm325 = vmor %vm321, %vm324
        %v326 = vsel %vm325, %v192, %v317
        %v327 = vsel %vm325, %v224, %v318
        %328 = xla_tuple %v326, %v327
        %329 = xla_tuple %v193, %v225
        %vm330 = vcmp.gt.s32.totalorder %v193, %v326
        %vm331 = vcmp.eq.s32.totalorder %v193, %v326
        %vm332 = vcmp.lt.s32.totalorder %v225, %v327
        %vm333 = vmand %vm331, %vm332
        %vm334 = vmor %vm330, %vm333
        %v335 = vsel %vm334, %v193, %v326
        %v336 = vsel %vm334, %v225, %v327
        %337 = xla_tuple %v335, %v336
        %338 = xla_tuple %v194, %v226
        %vm339 = vcmp.gt.s32.totalorder %v194, %v335
        %vm340 = vcmp.eq.s32.totalorder %v194, %v335
        %vm341 = vcmp.lt.s32.totalorder %v226, %v336
        %vm342 = vmand %vm340, %vm341
        %vm343 = vmor %vm339, %vm342
        %v344 = vsel %vm343, %v194, %v335
        %v345 = vsel %vm343, %v226, %v336
        %346 = xla_tuple %v344, %v345
        %347 = xla_tuple %v195, %v227
        %vm348 = vcmp.gt.s32.totalorder %v195, %v344
        %vm349 = vcmp.eq.s32.totalorder %v195, %v344
        %vm350 = vcmp.lt.s32.totalorder %v227, %v345
        %vm351 = vmand %vm349, %vm350
        %vm352 = vmor %vm348, %vm351
        %v353 = vsel %vm352, %v195, %v344
        %v354 = vsel %vm352, %v227, %v345
        %355 = xla_tuple %v353, %v354
        %356 = xla_tuple %v196, %v228
        %vm357 = vcmp.gt.s32.totalorder %v196, %v353
        %vm358 = vcmp.eq.s32.totalorder %v196, %v353
        %vm359 = vcmp.lt.s32.totalorder %v228, %v354
        %vm360 = vmand %vm358, %vm359
        %vm361 = vmor %vm357, %vm360
        %v362 = vsel %vm361, %v196, %v353
        %v363 = vsel %vm361, %v228, %v354
        %364 = xla_tuple %v362, %v363
        %v365 = vrot.slane %v362, 1
        %v366 = vrot.slane %v363, 1
        %367 = xla_tuple %v365, %v366
        %vm368 = vcmp.gt.s32.totalorder %v365, %v362
        %vm369 = vcmp.eq.s32.totalorder %v365, %v362
        %vm370 = vcmp.lt.s32.totalorder %v366, %v363
        %vm371 = vmand %vm369, %vm370
        %vm372 = vmor %vm368, %vm371
        %v373 = vsel %vm372, %v365, %v362
        %v374 = vsel %vm372, %v366, %v363
        %375 = xla_tuple %v373, %v374
        %v376 = vrot.slane %v373, 1
        %v377 = vrot.slane %v374, 1
        %378 = xla_tuple %v376, %v377
        %vm379 = vcmp.gt.s32.totalorder %v376, %v373
        %vm380 = vcmp.eq.s32.totalorder %v376, %v373
        %vm381 = vcmp.lt.s32.totalorder %v377, %v374
        %vm382 = vmand %vm380, %vm381
        %vm383 = vmor %vm379, %vm382
        %v384 = vsel %vm383, %v376, %v373
        %v385 = vsel %vm383, %v377, %v374
        %386 = xla_tuple %v384, %v385
        %v387 = vrot.slane %v384, 1
        %v388 = vrot.slane %v385, 1
        %389 = xla_tuple %v387, %v388
        %vm390 = vcmp.gt.s32.totalorder %v387, %v384
        %vm391 = vcmp.eq.s32.totalorder %v387, %v384
        %vm392 = vcmp.lt.s32.totalorder %v388, %v385
        %vm393 = vmand %vm391, %vm392
        %vm394 = vmor %vm390, %vm393
        %v395 = vsel %vm394, %v387, %v384
        %v396 = vsel %vm394, %v388, %v385
        %397 = xla_tuple %v395, %v396
        %v398 = vrot.slane %v395, 1
        %v399 = vrot.slane %v396, 1
        %400 = xla_tuple %v398, %v399
        %vm401 = vcmp.gt.s32.totalorder %v398, %v395
        %vm402 = vcmp.eq.s32.totalorder %v398, %v395
        %vm403 = vcmp.lt.s32.totalorder %v399, %v396
        %vm404 = vmand %vm402, %vm403
        %vm405 = vmor %vm401, %vm404
        %v406 = vsel %vm405, %v398, %v395
        %v407 = vsel %vm405, %v399, %v396
        %408 = xla_tuple %v406, %v407
        %v409 = vrot.slane %v406, 1
        %v410 = vrot.slane %v407, 1
        %411 = xla_tuple %v409, %v410
        %vm412 = vcmp.gt.s32.totalorder %v409, %v406
        %vm413 = vcmp.eq.s32.totalorder %v409, %v406
        %vm414 = vcmp.lt.s32.totalorder %v410, %v407
        %vm415 = vmand %vm413, %vm414
        %vm416 = vmor %vm412, %vm415
        %v417 = vsel %vm416, %v409, %v406
        %v418 = vsel %vm416, %v410, %v407
        %419 = xla_tuple %v417, %v418
        %v420 = vrot.slane %v417, 1
        %v421 = vrot.slane %v418, 1
        %422 = xla_tuple %v420, %v421
        %vm423 = vcmp.gt.s32.totalorder %v420, %v417
        %vm424 = vcmp.eq.s32.totalorder %v420, %v417
        %vm425 = vcmp.lt.s32.totalorder %v421, %v418
        %vm426 = vmand %vm424, %vm425
        %vm427 = vmor %vm423, %vm426
        %v428 = vsel %vm427, %v420, %v417
        %v429 = vsel %vm427, %v421, %v418
        %430 = xla_tuple %v428, %v429
        %v431 = vrot.slane %v428, 1
        %v432 = vrot.slane %v429, 1
        %433 = xla_tuple %v431, %v432
        %vm434 = vcmp.gt.s32.totalorder %v431, %v428
        %vm435 = vcmp.eq.s32.totalorder %v431, %v428
        %vm436 = vcmp.lt.s32.totalorder %v432, %v429
        %vm437 = vmand %vm435, %vm436
        %vm438 = vmor %vm434, %vm437
        %v439 = vsel %vm438, %v431, %v428
        %v440 = vsel %vm438, %v432, %v429
        %441 = xla_tuple %v439, %v440
        %s442 = scalar_lea.vmem [#allocation13], %s107
        %443 = vst [vmem:[%s442] sm:$0x1] %v439
        %s444 = scalar_lea.vmem [#allocation15], %s107
        %445 = vst [vmem:[%s444] sm:$0x1] %v440
        %446 = xla_tuple %443, %445
        %447 = vxpose.xlu0.b32.start [1/16] %v440, 128
        %448 = vxpose.xlu0.b32.cont [2/16] 0.0, 128
        %449 = vxpose.xlu0.b32.cont [3/16] 0.0, 128
        %450 = vxpose.xlu0.b32.cont [4/16] 0.0, 128
        %451 = vxpose.xlu0.b32.cont [5/16] 0.0, 128
        %452 = vxpose.xlu0.b32.cont [6/16] 0.0, 128
        %453 = vxpose.xlu0.b32.cont [7/16] 0.0, 128
        %454 = vxpose.xlu0.b32.cont [8/16] 0.0, 128
        %455 = vxpose.xlu0.b32.cont [9/16] 0.0, 128
        %456 = vxpose.xlu0.b32.cont [10/16] 0.0, 128
        %457 = vxpose.xlu0.b32.cont [11/16] 0.0, 128
        %458 = vxpose.xlu0.b32.cont [12/16] 0.0, 128
        %459 = vxpose.xlu0.b32.cont [13/16] 0.0, 128
        %460 = vxpose.xlu0.b32.cont [14/16] 0.0, 128
        %461 = vxpose.xlu0.b32.cont [15/16] 0.0, 128
        %462 = vxpose.xlu0.b32.end [16/16] 0.0, 128
        %v463 = vpop.trf.xlu0
        %v464 = vpop.trf.xlu0
        %v465 = vpop.trf.xlu0
        %v466 = vpop.trf.xlu0
        %v467 = vpop.trf.xlu0
        %v468 = vpop.trf.xlu0
        %v469 = vpop.trf.xlu0
        %v470 = vpop.trf.xlu0
        %v471 = vpop.trf.xlu0
        %v472 = vpop.trf.xlu0
        %v473 = vpop.trf.xlu0
        %v474 = vpop.trf.xlu0
        %v475 = vpop.trf.xlu0
        %v476 = vpop.trf.xlu0
        %v477 = vpop.trf.xlu0
        %v478 = vpop.trf.xlu0
        %s479 = vtos %v463
        %s480 = sshrl.u32 %s479, 8
        %p481 = scmp.lt.s32.totalorder %s479, 0
        %s482 = ssub.s32 0, %s479
        %s483 = scalar_select %p481, %s482, %s479
        %s484 = sand.u32 %s483, 255
        %s485 = ssub.s32 0, %s484
        %s486 = scalar_select %p481, %s485, %s484
        %s487 = sshrl.u32 %s486, 7
        %s488 = smul.u32 %s487, 512
        %s489 = sand.u32 %s486, 127
        %s490 = sadd.s32 %s488, %s489
        %v491 = vlaneseq
        %v492 = vstv %s490
        %vm494 = vcmp.eq.s32.totalorder %v491, %v492
        %s495 = smul.addr %s480, 8
        %s496 = scalar_lea.vmem [#allocation16], %s495
        %497 = vst.msk [vmem:[%s496] sm:$0xff] %vm494, 2147483648
        %s498 = smul.addr %s480, 8
        %s499 = scalar_lea.vmem [#allocation17], %s498
        %500 = vst.msk [vmem:[%s499] sm:$0xff] %vm494, 2147483647
        %501 = xla_tuple %497, %500
        %v502 = vrot.slane %v463, 1
        %s503 = vtos %v502
        %s504 = sshrl.u32 %s503, 8
        %p505 = scmp.lt.s32.totalorder %s503, 0
        %s506 = ssub.s32 0, %s503
        %s507 = scalar_select %p505, %s506, %s503
        %s508 = sand.u32 %s507, 255
        %s509 = ssub.s32 0, %s508
        %s510 = scalar_select %p505, %s509, %s508
        %s511 = sshrl.u32 %s510, 7
        %s512 = smul.u32 %s511, 512
        %s513 = sand.u32 %s510, 127
        %s514 = sadd.s32 %s512, %s513
        %v515 = vlaneseq
        %v516 = vstv %s514
        %v517 = vadd.s32 %v516, 128
        %vm518 = vcmp.eq.s32.totalorder %v515, %v517
        %s519 = smul.addr %s504, 8
        %s520 = scalar_lea.vmem [#allocation16], %s519
        %521 = vst.msk [vmem:[%s520] sm:$0xff] %vm518, 2147483648
        %s522 = smul.addr %s504, 8
        %s523 = scalar_lea.vmem [#allocation17], %s522
        %524 = vst.msk [vmem:[%s523] sm:$0xff] %vm518, 2147483647
        %525 = xla_tuple %521, %524
        %v526 = vrot.slane %v502, 1
        %s527 = vtos %v526
        %s528 = sshrl.u32 %s527, 8
        %p529 = scmp.lt.s32.totalorder %s527, 0
        %s530 = ssub.s32 0, %s527
        %s531 = scalar_select %p529, %s530, %s527
        %s532 = sand.u32 %s531, 255
        %s533 = ssub.s32 0, %s532
        %s534 = scalar_select %p529, %s533, %s532
        %s535 = sshrl.u32 %s534, 7
        %s536 = smul.u32 %s535, 512
        %s537 = sand.u32 %s534, 127
        %s538 = sadd.s32 %s536, %s537
        %v539 = vlaneseq
        %v540 = vstv %s538
        %v541 = vadd.s32 %v540, 256
        %vm542 = vcmp.eq.s32.totalorder %v539, %v541
        %s543 = smul.addr %s528, 8
        %s544 = scalar_lea.vmem [#allocation16], %s543
        %545 = vst.msk [vmem:[%s544] sm:$0xff] %vm542, 2147483648
        %s546 = smul.addr %s528, 8
        %s547 = scalar_lea.vmem [#allocation17], %s546
        %548 = vst.msk [vmem:[%s547] sm:$0xff] %vm542, 2147483647
        %549 = xla_tuple %545, %548
        %v550 = vrot.slane %v526, 1
        %s551 = vtos %v550
        %s552 = sshrl.u32 %s551, 8
        %p553 = scmp.lt.s32.totalorder %s551, 0
        %s554 = ssub.s32 0, %s551
        %s555 = scalar_select %p553, %s554, %s551
        %s556 = sand.u32 %s555, 255
        %s557 = ssub.s32 0, %s556
        %s558 = scalar_select %p553, %s557, %s556
        %s559 = sshrl.u32 %s558, 7
        %s560 = smul.u32 %s559, 512
        %s561 = sand.u32 %s558, 127
        %s562 = sadd.s32 %s560, %s561
        %v563 = vlaneseq
        %v564 = vstv %s562
        %v565 = vadd.s32 %v564, 384
        %vm566 = vcmp.eq.s32.totalorder %v563, %v565
        %s567 = smul.addr %s552, 8
        %s568 = scalar_lea.vmem [#allocation16], %s567
        %569 = vst.msk [vmem:[%s568] sm:$0xff] %vm566, 2147483648
        %s570 = smul.addr %s552, 8
        %s571 = scalar_lea.vmem [#allocation17], %s570
        %572 = vst.msk [vmem:[%s571] sm:$0xff] %vm566, 2147483647
        %573 = xla_tuple %569, %572
        %v574 = vrot.slane %v550, 1
      $region34: #{custom-call} parent=2 // loop_footer
        %s111 = sadd.s32 1, %s107
      $region35: #{custom-call} parent=2 // loop_footer_branch
        %106 = sbr.rel target = $region31
      $region36: #{custom-call} parent=2 // loop_exit
        _
      %s575 = scalar_lea.vmem [#allocation13], 7
      %v576 = vld [vmem:[%s575] ss:$-1 sm:$0xff]
      %s577 = scalar_lea.vmem [#allocation13], 7
      %v578 = vld [vmem:[%s577] ss:$-1 sm:$0xff]
      %579 = vst [vmem:[#allocation13] sm:$0xff] %v578
      %580 = vst [vmem:[#allocation13] sm:$0xff] %v576
      %s581 = scalar_lea.vmem [#allocation15], 7
      %v582 = vld [vmem:[%s581] ss:$-1 sm:$0xff]
      %s583 = scalar_lea.vmem [#allocation15], 7
      %v584 = vld [vmem:[%s583] ss:$-1 sm:$0xff]
      %585 = vst [vmem:[#allocation15] sm:$0xff] %v584
      %586 = vst [vmem:[#allocation15] sm:$0xff] %v582
      %587 = xla_tuple %580, %586
      %v588 = vld [vmem:[#allocation12] sm:$0xff]
      %v589 = vld [vmem:[#allocation14] sm:$0xff]
      %590 = xla_tuple %v588, %v589
      %v591 = vld [vmem:[#allocation13] sm:$0xff]
      %v592 = vld [vmem:[#allocation15] sm:$0xff]
      %593 = xla_tuple %v591, %v592
      %vm594 = vcmp.gt.s32.totalorder %v588, %v591
      %vm595 = vcmp.eq.s32.totalorder %v588, %v591
      %vm596 = vcmp.lt.s32.totalorder %v589, %v592
      %vm597 = vmand %vm595, %vm596
      %vm598 = vmor %vm594, %vm597
      %v599 = vsel %vm598, %v588, %v591
      %600 = vst [vmem:[#allocation12] sm:$0xff] %v599
      %v601 = vsel %vm598, %v591, %v588
      %602 = vst [vmem:[#allocation13] sm:$0xff] %v601
      %v603 = vsel %vm598, %v589, %v592
      %604 = vst [vmem:[#allocation14] sm:$0xff] %v603
      %v605 = vsel %vm598, %v592, %v589
      %606 = vst [vmem:[#allocation15] sm:$0xff] %v605
      %607 = xla_tuple %602, %606
      %608 = xla_tuple [#allocation12], [#allocation14]
      %v609 = vld [vmem:[#allocation12] sm:$0xff]
      %v610 = vld [vmem:[#allocation14] sm:$0xff]
      %611 = xla_tuple %v609, %v610
      %v613 = vunpack.c.l.s4 839939668
      %v614 = vunpack.c.0.s8 %v613
      %v615 = vlaneseq
      %v616 = vshrl.u32 %v615, 7
      %v617 = vsub.s32 %v614, %v616
      %v618 = vrot.slane %v609, %v617
      %v620 = vunpack.c.l.s4 839939668
      %v621 = vunpack.c.0.s8 %v620
      %v622 = vlaneseq
      %v623 = vshrl.u32 %v622, 7
      %v624 = vsub.s32 %v621, %v623
      %v625 = vrot.slane %v610, %v624
      %626 = xla_tuple %v618, %v625
      %vm627 = vcmp.gt.s32.totalorder %v609, %v618
      %vm628 = vcmp.eq.s32.totalorder %v609, %v618
      %vm629 = vcmp.lt.s32.totalorder %v610, %v625
      %vm630 = vmand %vm628, %vm629
      %vm631 = vmor %vm627, %vm630
      %v632 = vlaneseq
      %v633 = vshrl.u32 %v632, 7
      %v634 = vand.u32 %v633, 4
      %vm635 = vcmp.ne.s32.totalorder %v634, 0
      %vm636 = vmxor %vm631, %vm635
      %v637 = vsel %vm636, %v609, %v618
      %v638 = vsel %vm636, %v610, %v625
      %639 = xla_tuple %v637, %v638
      %v641 = vunpack.c.l.s4 1417023538
      %v642 = vunpack.c.0.s8 %v641
      %v643 = vlaneseq
      %v644 = vshrl.u32 %v643, 7
      %v645 = vsub.s32 %v642, %v644
      %v646 = vrot.slane %v637, %v645
      %v648 = vunpack.c.l.s4 1417023538
      %v649 = vunpack.c.0.s8 %v648
      %v650 = vlaneseq
      %v651 = vshrl.u32 %v650, 7
      %v652 = vsub.s32 %v649, %v651
      %v653 = vrot.slane %v638, %v652
      %654 = xla_tuple %v646, %v653
      %vm655 = vcmp.gt.s32.totalorder %v637, %v646
      %vm656 = vcmp.eq.s32.totalorder %v637, %v646
      %vm657 = vcmp.lt.s32.totalorder %v638, %v653
      %vm658 = vmand %vm656, %vm657
      %vm659 = vmor %vm655, %vm658
      %v660 = vlaneseq
      %v661 = vshrl.u32 %v660, 7
      %v662 = vand.u32 %v661, 2
      %vm663 = vcmp.ne.s32.totalorder %v662, 0
      %vm664 = vmxor %vm659, %vm663
      %v665 = vsel %vm664, %v637, %v646
      %v666 = vsel %vm664, %v638, %v653
      %667 = xla_tuple %v665, %v666
      %v669 = vunpack.c.l.s4 1732584193
      %v670 = vunpack.c.0.s8 %v669
      %v671 = vlaneseq
      %v672 = vshrl.u32 %v671, 7
      %v673 = vsub.s32 %v670, %v672
      %v674 = vrot.slane %v665, %v673
      %v676 = vunpack.c.l.s4 1732584193
      %v677 = vunpack.c.0.s8 %v676
      %v678 = vlaneseq
      %v679 = vshrl.u32 %v678, 7
      %v680 = vsub.s32 %v677, %v679
      %v681 = vrot.slane %v666, %v680
      %682 = xla_tuple %v674, %v681
      %vm683 = vcmp.gt.s32.totalorder %v665, %v674
      %vm684 = vcmp.eq.s32.totalorder %v665, %v674
      %vm685 = vcmp.lt.s32.totalorder %v666, %v681
      %vm686 = vmand %vm684, %vm685
      %vm687 = vmor %vm683, %vm686
      %v688 = vlaneseq
      %v689 = vshrl.u32 %v688, 7
      %v690 = vand.u32 %v689, 1
      %vm691 = vcmp.ne.s32.totalorder %v690, 0
      %vm692 = vmxor %vm687, %vm691
      %v693 = vsel %vm692, %v665, %v674
      %v694 = vsel %vm692, %v666, %v681
      %695 = xla_tuple %v693, %v694
      %696 = vst [vmem:[#allocation12] sm:$0xff] %v693
      %697 = vst [vmem:[#allocation14] sm:$0xff] %v694
      %698 = xla_tuple %696, %697
      %v699 = vld [vmem:[#allocation12] sm:$0xff]
      %v700 = vld [vmem:[#allocation14] sm:$0xff]
      %701 = xla_tuple %v699, %v700
      %v703 = vunpack.c.l.s4 839939668
      %v704 = vunpack.c.0.s8 %v703
      %v705 = vlaneseq
      %v706 = vshrl.u32 %v705, 7
      %v707 = vsub.s32 %v704, %v706
      %v708 = vrot.slane %v699, %v707
      %v710 = vunpack.c.l.s4 839939668
      %v711 = vunpack.c.0.s8 %v710
      %v712 = vlaneseq
      %v713 = vshrl.u32 %v712, 7
      %v714 = vsub.s32 %v711, %v713
      %v715 = vrot.slane %v700, %v714
      %716 = xla_tuple %v708, %v715
      %vm717 = vcmp.gt.s32.totalorder %v699, %v708
      %vm718 = vcmp.eq.s32.totalorder %v699, %v708
      %vm719 = vcmp.lt.s32.totalorder %v700, %v715
      %vm720 = vmand %vm718, %vm719
      %vm721 = vmor %vm717, %vm720
      %v722 = vlaneseq
      %v723 = vshrl.u32 %v722, 7
      %v724 = vand.u32 %v723, 4
      %vm725 = vcmp.ne.s32.totalorder %v724, 0
      %vm726 = vmxor %vm721, %vm725
      %v727 = vsel %vm726, %v699, %v708
      %v728 = vsel %vm726, %v700, %v715
      %729 = xla_tuple %v727, %v728
      %v731 = vunpack.c.l.s4 1417023538
      %v732 = vunpack.c.0.s8 %v731
      %v733 = vlaneseq
      %v734 = vshrl.u32 %v733, 7
      %v735 = vsub.s32 %v732, %v734
      %v736 = vrot.slane %v727, %v735
      %v738 = vunpack.c.l.s4 1417023538
      %v739 = vunpack.c.0.s8 %v738
      %v740 = vlaneseq
      %v741 = vshrl.u32 %v740, 7
      %v742 = vsub.s32 %v739, %v741
      %v743 = vrot.slane %v728, %v742
      %744 = xla_tuple %v736, %v743
      %vm745 = vcmp.gt.s32.totalorder %v727, %v736
      %vm746 = vcmp.eq.s32.totalorder %v727, %v736
      %vm747 = vcmp.lt.s32.totalorder %v728, %v743
      %vm748 = vmand %vm746, %vm747
      %vm749 = vmor %vm745, %vm748
      %v750 = vlaneseq
      %v751 = vshrl.u32 %v750, 7
      %v752 = vand.u32 %v751, 2
      %vm753 = vcmp.ne.s32.totalorder %v752, 0
      %vm754 = vmxor %vm749, %vm753
      %v755 = vsel %vm754, %v727, %v736
      %v756 = vsel %vm754, %v728, %v743
      %757 = xla_tuple %v755, %v756
      %v759 = vunpack.c.l.s4 1732584193
      %v760 = vunpack.c.0.s8 %v759
      %v761 = vlaneseq
      %v762 = vshrl.u32 %v761, 7
      %v763 = vsub.s32 %v760, %v762
      %v764 = vrot.slane %v755, %v763
      %v766 = vunpack.c.l.s4 1732584193
      %v767 = vunpack.c.0.s8 %v766
      %v768 = vlaneseq
      %v769 = vshrl.u32 %v768, 7
      %v770 = vsub.s32 %v767, %v769
      %v771 = vrot.slane %v756, %v770
      %772 = xla_tuple %v764, %v771
      %vm773 = vcmp.gt.s32.totalorder %v755, %v764
      %vm774 = vcmp.eq.s32.totalorder %v755, %v764
      %vm775 = vcmp.lt.s32.totalorder %v756, %v771
      %vm776 = vmand %vm774, %vm775
      %vm777 = vmor %vm773, %vm776
      %v778 = vlaneseq
      %v779 = vshrl.u32 %v778, 7
      %v780 = vand.u32 %v779, 1
      %vm781 = vcmp.ne.s32.totalorder %v780, 0
      %vm782 = vmxor %vm777, %vm781
      %v783 = vsel %vm782, %v755, %v764
      %v784 = vsel %vm782, %v756, %v771
      %785 = xla_tuple %v783, %v784
      %786 = vst [vmem:[#allocation12] sm:$0xff] %v783
      %787 = vst [vmem:[#allocation14] sm:$0xff] %v784
      %788 = xla_tuple %786, %787
      %789 = xla_tuple [#allocation13], [#allocation15]
      %v790 = vld [vmem:[#allocation13] sm:$0xff]
      %v791 = vld [vmem:[#allocation15] sm:$0xff]
      %792 = xla_tuple %v790, %v791
      %v794 = vunpack.c.l.s4 839939668
      %v795 = vunpack.c.0.s8 %v794
      %v796 = vlaneseq
      %v797 = vshrl.u32 %v796, 7
      %v798 = vsub.s32 %v795, %v797
      %v799 = vrot.slane %v790, %v798
      %v801 = vunpack.c.l.s4 839939668
      %v802 = vunpack.c.0.s8 %v801
      %v803 = vlaneseq
      %v804 = vshrl.u32 %v803, 7
      %v805 = vsub.s32 %v802, %v804
      %v806 = vrot.slane %v791, %v805
      %807 = xla_tuple %v799, %v806
      %vm808 = vcmp.gt.s32.totalorder %v790, %v799
      %vm809 = vcmp.eq.s32.totalorder %v790, %v799
      %vm810 = vcmp.lt.s32.totalorder %v791, %v806
      %vm811 = vmand %vm809, %vm810
      %vm812 = vmor %vm808, %vm811
      %v813 = vlaneseq
      %v814 = vshrl.u32 %v813, 7
      %v815 = vand.u32 %v814, 4
      %vm816 = vcmp.ne.s32.totalorder %v815, 0
      %vm817 = vmxor %vm812, %vm816
      %v818 = vsel %vm817, %v790, %v799
      %v819 = vsel %vm817, %v791, %v806
      %820 = xla_tuple %v818, %v819
      %v822 = vunpack.c.l.s4 1417023538
      %v823 = vunpack.c.0.s8 %v822
      %v824 = vlaneseq
      %v825 = vshrl.u32 %v824, 7
      %v826 = vsub.s32 %v823, %v825
      %v827 = vrot.slane %v818, %v826
      %v829 = vunpack.c.l.s4 1417023538
      %v830 = vunpack.c.0.s8 %v829
      %v831 = vlaneseq
      %v832 = vshrl.u32 %v831, 7
      %v833 = vsub.s32 %v830, %v832
      %v834 = vrot.slane %v819, %v833
      %835 = xla_tuple %v827, %v834
      %vm836 = vcmp.gt.s32.totalorder %v818, %v827
      %vm837 = vcmp.eq.s32.totalorder %v818, %v827
      %vm838 = vcmp.lt.s32.totalorder %v819, %v834
      %vm839 = vmand %vm837, %vm838
      %vm840 = vmor %vm836, %vm839
      %v841 = vlaneseq
      %v842 = vshrl.u32 %v841, 7
      %v843 = vand.u32 %v842, 2
      %vm844 = vcmp.ne.s32.totalorder %v843, 0
      %vm845 = vmxor %vm840, %vm844
      %v846 = vsel %vm845, %v818, %v827
      %v847 = vsel %vm845, %v819, %v834
      %848 = xla_tuple %v846, %v847
      %v850 = vunpack.c.l.s4 1732584193
      %v851 = vunpack.c.0.s8 %v850
      %v852 = vlaneseq
      %v853 = vshrl.u32 %v852, 7
      %v854 = vsub.s32 %v851, %v853
      %v855 = vrot.slane %v846, %v854
      %v857 = vunpack.c.l.s4 1732584193
      %v858 = vunpack.c.0.s8 %v857
      %v859 = vlaneseq
      %v860 = vshrl.u32 %v859, 7
      %v861 = vsub.s32 %v858, %v860
      %v862 = vrot.slane %v847, %v861
      %863 = xla_tuple %v855, %v862
      %vm864 = vcmp.gt.s32.totalorder %v846, %v855
      %vm865 = vcmp.eq.s32.totalorder %v846, %v855
      %vm866 = vcmp.lt.s32.totalorder %v847, %v862
      %vm867 = vmand %vm865, %vm866
      %vm868 = vmor %vm864, %vm867
      %v869 = vlaneseq
      %v870 = vshrl.u32 %v869, 7
      %v871 = vand.u32 %v870, 1
      %vm872 = vcmp.ne.s32.totalorder %v871, 0
      %vm873 = vmxor %vm868, %vm872
      %v874 = vsel %vm873, %v846, %v855
      %v875 = vsel %vm873, %v847, %v862
      %876 = xla_tuple %v874, %v875
      %877 = vst [vmem:[#allocation13] sm:$0xff] %v874
      %878 = vst [vmem:[#allocation15] sm:$0xff] %v875
      %879 = xla_tuple %877, %878
      %v880 = vld [vmem:[#allocation13] sm:$0xff]
      %v881 = vld [vmem:[#allocation15] sm:$0xff]
      %882 = xla_tuple %v880, %v881
      %v884 = vunpack.c.l.s4 839939668
      %v885 = vunpack.c.0.s8 %v884
      %v886 = vlaneseq
      %v887 = vshrl.u32 %v886, 7
      %v888 = vsub.s32 %v885, %v887
      %v889 = vrot.slane %v880, %v888
      %v891 = vunpack.c.l.s4 839939668
      %v892 = vunpack.c.0.s8 %v891
      %v893 = vlaneseq
      %v894 = vshrl.u32 %v893, 7
      %v895 = vsub.s32 %v892, %v894
      %v896 = vrot.slane %v881, %v895
      %897 = xla_tuple %v889, %v896
      %vm898 = vcmp.gt.s32.totalorder %v880, %v889
      %vm899 = vcmp.eq.s32.totalorder %v880, %v889
      %vm900 = vcmp.lt.s32.totalorder %v881, %v896
      %vm901 = vmand %vm899, %vm900
      %vm902 = vmor %vm898, %vm901
      %v903 = vlaneseq
      %v904 = vshrl.u32 %v903, 7
      %v905 = vand.u32 %v904, 4
      %vm906 = vcmp.ne.s32.totalorder %v905, 0
      %vm907 = vmxor %vm902, %vm906
      %v908 = vsel %vm907, %v880, %v889
      %v909 = vsel %vm907, %v881, %v896
      %910 = xla_tuple %v908, %v909
      %v912 = vunpack.c.l.s4 1417023538
      %v913 = vunpack.c.0.s8 %v912
      %v914 = vlaneseq
      %v915 = vshrl.u32 %v914, 7
      %v916 = vsub.s32 %v913, %v915
      %v917 = vrot.slane %v908, %v916
      %v919 = vunpack.c.l.s4 1417023538
      %v920 = vunpack.c.0.s8 %v919
      %v921 = vlaneseq
      %v922 = vshrl.u32 %v921, 7
      %v923 = vsub.s32 %v920, %v922
      %v924 = vrot.slane %v909, %v923
      %925 = xla_tuple %v917, %v924
      %vm926 = vcmp.gt.s32.totalorder %v908, %v917
      %vm927 = vcmp.eq.s32.totalorder %v908, %v917
      %vm928 = vcmp.lt.s32.totalorder %v909, %v924
      %vm929 = vmand %vm927, %vm928
      %vm930 = vmor %vm926, %vm929
      %v931 = vlaneseq
      %v932 = vshrl.u32 %v931, 7
      %v933 = vand.u32 %v932, 2
      %vm934 = vcmp.ne.s32.totalorder %v933, 0
      %vm935 = vmxor %vm930, %vm934
      %v936 = vsel %vm935, %v908, %v917
      %v937 = vsel %vm935, %v909, %v924
      %938 = xla_tuple %v936, %v937
      %v940 = vunpack.c.l.s4 1732584193
      %v941 = vunpack.c.0.s8 %v940
      %v942 = vlaneseq
      %v943 = vshrl.u32 %v942, 7
      %v944 = vsub.s32 %v941, %v943
      %v945 = vrot.slane %v936, %v944
      %v947 = vunpack.c.l.s4 1732584193
      %v948 = vunpack.c.0.s8 %v947
      %v949 = vlaneseq
      %v950 = vshrl.u32 %v949, 7
      %v951 = vsub.s32 %v948, %v950
      %v952 = vrot.slane %v937, %v951
      %953 = xla_tuple %v945, %v952
      %vm954 = vcmp.gt.s32.totalorder %v936, %v945
      %vm955 = vcmp.eq.s32.totalorder %v936, %v945
      %vm956 = vcmp.lt.s32.totalorder %v937, %v952
      %vm957 = vmand %vm955, %vm956
      %vm958 = vmor %vm954, %vm957
      %v959 = vlaneseq
      %v960 = vshrl.u32 %v959, 7
      %v961 = vand.u32 %v960, 1
      %vm962 = vcmp.ne.s32.totalorder %v961, 0
      %vm963 = vmxor %vm958, %vm962
      %v964 = vsel %vm963, %v936, %v945
      %v965 = vsel %vm963, %v937, %v952
      %966 = xla_tuple %v964, %v965
      %967 = vst [vmem:[#allocation13] sm:$0xff] %v964
      %968 = vst [vmem:[#allocation15] sm:$0xff] %v965
      %969 = xla_tuple %967, %968
    %v970 = vld [vmem:[#allocation12] sm:$0xff]
    %vm971 = vcmp.lt.s32.totalorder %v970, 0
    %v972 = vsub.s32 2147483647, %v970
    %v973 = vsel %vm971, %v972, %v970
    %974 = vst [vmem:[#allocation12] sm:$0xff] %v973
    %v975 = vld [vmem:[#allocation12] sm:$0xff]
    %976 = vxpose.xlu0.b32.start.end [1/1] (short) %v975, 128
    %v977 = vpop.trf.xlu0
    %v978 = vpop.trf.xlu0
    %v979 = vpop.trf.xlu0
    %v980 = vpop.trf.xlu0
    %v981 = vpop.trf.xlu0
    %v982 = vpop.trf.xlu0
    %v983 = vpop.trf.xlu0
    %v984 = vpop.trf.xlu0
    %v985 = vpop.trf.xlu0
    %v986 = vpop.trf.xlu0
    %v987 = vpop.trf.xlu0
    %v988 = vpop.trf.xlu0
    %v989 = vpop.trf.xlu0
    %v990 = vpop.trf.xlu0
    %v991 = vpop.trf.xlu0
    %v992 = vpop.trf.xlu0
    %993 = vst [vmem:[#allocation7] sm:$0xff] %v977
    %v994 = vld [vmem:[#allocation14] sm:$0xff]
    %995 = vxpose.xlu0.b32.start.end [1/1] (short) %v994, 128
    %v996 = vpop.trf.xlu0
    %v997 = vpop.trf.xlu0
    %v998 = vpop.trf.xlu0
    %v999 = vpop.trf.xlu0
    %v1000 = vpop.trf.xlu0
    %v1001 = vpop.trf.xlu0
    %v1002 = vpop.trf.xlu0
    %v1003 = vpop.trf.xlu0
    %v1004 = vpop.trf.xlu0
    %v1005 = vpop.trf.xlu0
    %v1006 = vpop.trf.xlu0
    %v1007 = vpop.trf.xlu0
    %v1008 = vpop.trf.xlu0
    %v1009 = vpop.trf.xlu0
    %v1010 = vpop.trf.xlu0
    %v1011 = vpop.trf.xlu0
    %1012 = vst [vmem:[#allocation10] sm:$0xff] %v996
    %s1014 = sshllo.u32 0, 4
    %v1016 = vld [vmem:[#allocation7] sm:%s1014]
    %s1017 = sshllo.u32 0, 4
    %1018 = vst [vmem:[#allocation8] sm:%s1017] %v1016
    %s1020 = sshllo.u32 0, 4
    %v1022 = vld [vmem:[#allocation10] sm:%s1020]
    %s1023 = sshllo.u32 0, 4
    %1024 = vst [vmem:[#allocation11] sm:%s1023] %v1022
    %s1026 = ssub.s32 64, 64
    %1027 = vsyncadd [#allocation9], %s1026
    %s1029 = sshll.u32 [#allocation8], 4
    %s1030 = int_to_ptr.vmem [resolvable:$true] %s1029
    %1032 = dma.vmem_to_hbm [thread:$0]  %s1030, 64, %s1, [#allocation9]
    // Predicated region
    $region37: #{custom-call} parent=1 // pred_check
      _
    $region38: #{custom-call} parent=1 // pred_check_branch
      %1034 = sbr.rel (0) target = $region40
    $region39: #{custom-call} parent=1 // pred_region
      // Predicated region
      $region41: #{custom-call} parent=39 // pred_check
        _
      $region42: #{custom-call} parent=39 // pred_check_branch
        %1036 = sbr.rel target = $region44
      $region43: #{custom-call} parent=39 // pred_region
        // Predicated region
        $region56: #{custom-call} parent=43 // pred_check
          _
        $region57: #{custom-call} parent=43 // pred_check_branch
          %1051 = sbr.rel (0) target = $region59
        $region58: #{custom-call} parent=43 // pred_region
          loop: start=0, step=1, limit=1
          $region60: #{custom-call} parent=58 // loop_pre_header
            _
          $region61: #{custom-call} parent=58 // loop_header
            %s1054 = sphi 0, %s1058
            %p1055 = scmp.ge.s32.totalorder %s1054, 1
            %s1059 = sphi [#allocation11], [#allocation11]
            %s1060 = sphi %s2, %s2
          $region62: #{custom-call} parent=58 // loop_header_branch
            %1057 = sbr.rel (%p1055) target = $region66
          $region63: #{custom-call} parent=58 // loop_body
            %v1061 = vld [vmem:[%s1059] sm:$0xf]
            %1062 = vst [vmem:[%s1060] sm:$0xf] %v1061
          $region64: #{custom-call} parent=58 // loop_footer
            %s1058 = sadd.s32 1, %s1054
          $region65: #{custom-call} parent=58 // loop_footer_branch
            %1053 = sbr.rel target = $region61
          $region66: #{custom-call} parent=58 // loop_exit
            _
        $region59: #{custom-call} parent=43 // pred_fallthru
          _
      $region44: #{custom-call} parent=39 // pred_fallthru
        _
      // Predicated region
      $region45: #{custom-call} parent=39 // pred_check
        _
      $region46: #{custom-call} parent=39 // pred_check_branch
        %1038 = sbr.rel (0) target = $region48
      $region47: #{custom-call} parent=39 // pred_region
        loop: start=0, step=1, limit=1
        $region49: #{custom-call} parent=47 // loop_pre_header
          _
        $region50: #{custom-call} parent=47 // loop_header
          %s1041 = sphi 0, %s1045
          %p1042 = scmp.ge.s32.totalorder %s1041, 1
          %s1046 = sphi [#allocation11], [#allocation11]
          %s1047 = sphi %s2, %s2
        $region51: #{custom-call} parent=47 // loop_header_branch
          %1044 = sbr.rel (%p1042) target = $region55
        $region52: #{custom-call} parent=47 // loop_body
          %v1048 = vld [vmem:[%s1046] sm:$0xf]
          %1049 = vst [vmem:[%s1047] sm:$0xf] %v1048
        $region53: #{custom-call} parent=47 // loop_footer
          %s1045 = sadd.s32 1, %s1041
        $region54: #{custom-call} parent=47 // loop_footer_branch
          %1040 = sbr.rel target = $region50
        $region55: #{custom-call} parent=47 // loop_exit
          _
      $region48: #{custom-call} parent=39 // pred_fallthru
        _
    $region40: #{custom-call} parent=1 // pred_fallthru
      _
    %1063 = vnop
    %1064 = dma.done [#allocation9], 64
    %1065 = vsyncpa [#allocation9], 1

// kernel: forward.1
$region0: #{forward.1}
  #allocation0 [shape = 'u32[]', space=smem, size = 0x4, offset = 0x4, fixed_abs, tag = 'smem constant byte address 0x4 - core index']
  #allocation1 [shape = 'u32[144,128]{1,0:T(1,128)}', space=vmem, size = 0x12000, scoped, tag = 'internal scratch']
  #allocation2 [shape = 'f32[64,48]{1,0:T(8,128)}', space=vmem, size = 0x8000, scoped, tag = 'scratch operand']
  #allocation3 [shape = 'f32[64,16]{1,0:T(8,128)}', space=vmem, size = 0x8000, scoped, tag = 'scratch operand']
  %s0 = inlined_call_operand.vmem [shape: f32[64,16], index: 0, kind: input, shape index: {}]
  %s1 = inlined_call_operand.vmem [shape: f32[64,1], index: 1, kind: input, shape index: {}]
  %s2 = inlined_call_operand.vmem [shape: f32[8,64], index: 2, kind: input, shape index: {}]
  %s3 = inlined_call_operand.vmem [shape: f32[16,48], index: 3, kind: input, shape index: {}]
  %s4 = inlined_call_operand.vmem [shape: f32[16,48], index: 4, kind: input, shape index: {}]
  %s5 = inlined_call_operand.vmem [shape: f32[2,48], index: 5, kind: input, shape index: {}]
  %s6 = inlined_call_operand.vmem [shape: f32[16,64], index: 6, kind: input, shape index: {}]
  %s7 = inlined_call_operand.vmem [shape: f32[16,32], index: 7, kind: input, shape index: {}]
  %s8 = inlined_call_operand.vmem [shape: f32[16,32], index: 8, kind: input, shape index: {}]
  %s9 = inlined_call_operand.vmem [shape: f32[1,32], index: 9, kind: input, shape index: {}]
  %s10 = inlined_call_operand.vmem [shape: f32[64,32], index: 10, kind: output, shape index: {}]
  %s11 = sld [smem:[#allocation0]]
  $region50: #{forward.1} parent=0
    _
  %s13 = ssub.s32 1, %s11
  %s14 = scalar_select 0, %s13, %s11
  // Predicated region
  $region2: #{forward.1} parent=0 // pred_check
    _
  $region3: #{forward.1} parent=0 // pred_check_branch
    %16 = sbr.rel (0) target = $region5
  $region4: #{forward.1} parent=0 // pred_region
    _
  $region5: #{forward.1} parent=0 // pred_fallthru
    _
  // Predicated region
  $region6: #{forward.1} parent=0 // pred_check
    _
  $region7: #{forward.1} parent=0 // pred_check_branch
    %18 = sbr.rel (0) target = $region9
  $region8: #{forward.1} parent=0 // pred_region
    _
  $region9: #{forward.1} parent=0 // pred_fallthru
    _
  // Predicated region
  $region10: #{forward.1} parent=0 // pred_check
    _
  $region11: #{forward.1} parent=0 // pred_check_branch
    %20 = sbr.rel (0) target = $region13
  $region12: #{forward.1} parent=0 // pred_region
    _
  $region13: #{forward.1} parent=0 // pred_fallthru
    _
  // Predicated region
  $region14: #{forward.1} parent=0 // pred_check
    _
  $region15: #{forward.1} parent=0 // pred_check_branch
    %22 = sbr.rel (0) target = $region17
  $region16: #{forward.1} parent=0 // pred_region
    _
  $region17: #{forward.1} parent=0 // pred_fallthru
    _
  // Predicated region
  $region18: #{forward.1} parent=0 // pred_check
    _
  $region19: #{forward.1} parent=0 // pred_check_branch
    %24 = sbr.rel (0) target = $region21
  $region20: #{forward.1} parent=0 // pred_region
    _
  $region21: #{forward.1} parent=0 // pred_fallthru
    _
  // Predicated region
  $region22: #{forward.1} parent=0 // pred_check
    _
  $region23: #{forward.1} parent=0 // pred_check_branch
    %26 = sbr.rel (0) target = $region25
  $region24: #{forward.1} parent=0 // pred_region
    _
  $region25: #{forward.1} parent=0 // pred_fallthru
    _
  // Predicated region
  $region26: #{forward.1} parent=0 // pred_check
    _
  $region27: #{forward.1} parent=0 // pred_check_branch
    %28 = sbr.rel (0) target = $region29
  $region28: #{forward.1} parent=0 // pred_region
    _
  $region29: #{forward.1} parent=0 // pred_fallthru
    _
  // Predicated region
  $region30: #{forward.1} parent=0 // pred_check
    _
  $region31: #{forward.1} parent=0 // pred_check_branch
    %30 = sbr.rel (0) target = $region33
  $region32: #{forward.1} parent=0 // pred_region
    _
  $region33: #{forward.1} parent=0 // pred_fallthru
    _
  // Predicated region
  $region34: #{forward.1} parent=0 // pred_check
    _
  $region35: #{forward.1} parent=0 // pred_check_branch
    %32 = sbr.rel (0) target = $region37
  $region36: #{forward.1} parent=0 // pred_region
    _
  $region37: #{forward.1} parent=0 // pred_fallthru
    _
  // Predicated region
  $region38: #{forward.1} parent=0 // pred_check
    _
  $region39: #{forward.1} parent=0 // pred_check_branch
    %34 = sbr.rel (0) target = $region41
  $region40: #{forward.1} parent=0 // pred_region
    _
  $region41: #{forward.1} parent=0 // pred_fallthru
    _
  %v35 = vld [vmem:[%s0] sm:$0xff]
  %v36 = vld [vmem:[%s0 + $0x8] sm:$0xff]
  %v37 = vld [vmem:[%s0 + $0x10] sm:$0xff]
  %v38 = vld [vmem:[%s0 + $0x18] sm:$0xff]
  %v39 = vld [vmem:[%s0 + $0x20] sm:$0xff]
  %v40 = vld [vmem:[%s0 + $0x28] sm:$0xff]
  %v41 = vld [vmem:[%s0 + $0x30] sm:$0xff]
  %v42 = vld [vmem:[%s0 + $0x38] sm:$0xff]
  %v43 = vld [vmem:[%s3] sm:$0xff]
  %v44 = vld [vmem:[%s3 + $0x8] sm:$0xff]
  %v45 = vld [vmem:[%s5] sm:$0x1]
  %v46 = vlaneseq
  %v47 = vshrl.u32 %v46, 7
  %v48 = vsub.s32 0, %v47
  %v49 = vrot.slane %v45, %v48
  %vm50 = vcmask 130048
  %v52 = vsel %vm50, %v35, 0
  %v55 = vsel %vm50, %v36, 0
  %v58 = vsel %vm50, %v37, 0
  %v61 = vsel %vm50, %v38, 0
  %v64 = vsel %vm50, %v39, 0
  %v67 = vsel %vm50, %v40, 0
  %v70 = vsel %vm50, %v41, 0
  %v73 = vsel %vm50, %v42, 0
  %75 = vmatprep.subr.mxu0 0.0
  %76 = vmatpush1.msra.mxu0 %v43
  %77 = vmatprep.subr.mxu0 0.0
  %78 = vmatpush1.msra.mxu0 %v44
  %79 = vmatprep.subr.mxu0 0.0
  %80 = vmatpush1.msra.mxu0 0.0
  %81 = vmatprep.subr.mxu0 0.0
  %82 = vmatpush1.msra.mxu0 0.0
  %83 = vmatprep.subr.mxu0 0.0
  %84 = vmatpush1.msra.mxu0 0.0
  %85 = vmatprep.subr.mxu0 0.0
  %86 = vmatpush1.msra.mxu0 0.0
  %87 = vmatprep.subr.mxu0 0.0
  %88 = vmatpush1.msra.mxu0 0.0
  %89 = vmatprep.subr.mxu0 0.0
  %90 = vmatpush1.msra.mxu0 0.0
  %91 = vmatprep.subr.mxu0 0.0
  %92 = vmatpush1.msra.mxu0 0.0
  %93 = vmatprep.subr.mxu0 0.0
  %94 = vmatpush1.msra.mxu0 0.0
  %95 = vmatprep.subr.mxu0 0.0
  %96 = vmatpush1.msra.mxu0 0.0
  %97 = vmatprep.subr.mxu0 0.0
  %98 = vmatpush1.msra.mxu0 0.0
  %99 = vmatprep.subr.mxu0 0.0
  %100 = vmatpush1.msra.mxu0 0.0
  %101 = vmatprep.subr.mxu0 0.0
  %102 = vmatpush1.msra.mxu0 0.0
  %103 = vmatprep.subr.mxu0 0.0
  %104 = vmatpush1.msra.mxu0 0.0
  %105 = vmatprep.subr.mxu0 0.0
  %106 = vmatpush1.msra.mxu0 0.0
  %107 = vmatprep.subr.mxu0 0.0
  %108 = vmatpush1.msra.mxu0 0.0
  %109 = vmatprep.subr.mxu0 0.0
  %110 = vmatpush1.msra.mxu0 0.0
  %111 = vmatprep.subr.mxu0 0.0
  %112 = vmatpush1.msra.mxu0 0.0
  %113 = vmatprep.subr.mxu0 0.0
  %114 = vmatpush1.msra.mxu0 0.0
  %115 = vmatprep.subr.mxu0 0.0
  %116 = vmatpush1.msra.mxu0 0.0
  %117 = vmatprep.subr.mxu0 0.0
  %118 = vmatpush1.msra.mxu0 0.0
  %119 = vmatprep.subr.mxu0 0.0
  %120 = vmatpush1.msra.mxu0 0.0
  %121 = vmatprep.subr.mxu0 0.0
  %122 = vmatpush1.msra.mxu0 0.0
  %123 = vmatprep.subr.mxu0 0.0
  %124 = vmatpush1.msra.mxu0 0.0
  %125 = vmatprep.subr.mxu0 0.0
  %126 = vmatpush1.msra.mxu0 0.0
  %127 = vmatprep.subr.mxu0 0.0
  %128 = vmatpush1.msra.mxu0 0.0
  %129 = vmatprep.subr.mxu0 0.0
  %130 = vmatpush1.msra.mxu0 0.0
  %131 = vmatprep.subr.mxu0 0.0
  %132 = vmatpush1.msra.mxu0 0.0
  %133 = vmatprep.subr.mxu0 0.0
  %134 = vmatpush1.msra.mxu0 0.0
  %135 = vmatprep.subr.mxu0 0.0
  %136 = vmatpush1.msra.mxu0 0.0
  %137 = vmatprep.subr.mxu0 0.0
  %138 = vmatpush1.msra.mxu0 0.0
  %139 = vmatprep.mubr.f32.mxu0 0.0
  %140 = vmatmul.mubr.f32.gmra.mrb[0].mxu0 %v52
  %v141 = vpop.f32.mrb[0].mxu0
  %v142 = vadd.f32 %v49, %v141
  %v143 = vpop.f32.mrb[0].mxu0
  %144 = vmatprep.mubr.f32.mxu0 0.0
  %145 = vmatmul.mubr.f32.gmra.mrb[0].mxu0 %v55
  %v146 = vpop.f32.mrb[0].mxu0
  %v147 = vadd.f32 %v49, %v146
  %v148 = vpop.f32.mrb[0].mxu0
  %149 = vmatprep.mubr.f32.mxu0 0.0
  %150 = vmatmul.mubr.f32.gmra.mrb[0].mxu0 %v58
  %v151 = vpop.f32.mrb[0].mxu0
  %v152 = vadd.f32 %v49, %v151
  %v153 = vpop.f32.mrb[0].mxu0
  %154 = vmatprep.mubr.f32.mxu0 0.0
  %155 = vmatmul.mubr.f32.gmra.mrb[0].mxu0 %v61
  %v156 = vpop.f32.mrb[0].mxu0
  %v157 = vadd.f32 %v49, %v156
  %v158 = vpop.f32.mrb[0].mxu0
  %159 = vmatprep.mubr.f32.mxu0 0.0
  %160 = vmatmul.mubr.f32.gmra.mrb[0].mxu0 %v64
  %v161 = vpop.f32.mrb[0].mxu0
  %v162 = vadd.f32 %v49, %v161
  %v163 = vpop.f32.mrb[0].mxu0
  %164 = vmatprep.mubr.f32.mxu0 0.0
  %165 = vmatmul.mubr.f32.gmra.mrb[0].mxu0 %v67
  %v166 = vpop.f32.mrb[0].mxu0
  %v167 = vadd.f32 %v49, %v166
  %v168 = vpop.f32.mrb[0].mxu0
  %169 = vmatprep.mubr.f32.mxu0 0.0
  %170 = vmatmul.mubr.f32.gmra.mrb[0].mxu0 %v70
  %v171 = vpop.f32.mrb[0].mxu0
  %v172 = vadd.f32 %v49, %v171
  %v173 = vpop.f32.mrb[0].mxu0
  %174 = vmatprep.mubr.f32.mxu0 0.0
  %175 = vmatmul.mubr.f32.gmra.mrb[0].mxu0 %v73
  %v176 = vpop.f32.mrb[0].mxu0
  %v177 = vadd.f32 %v49, %v176
  %v178 = vpop.f32.mrb[0].mxu0
  %179 = vdwg.mxu0
  %vm180 = vcmask 392192
  %181 = vst.msk [vmem:[#allocation2] sm:$0xff] %vm180, %v142
  %182 = vst.msk [vmem:[#allocation2 + $0x8] sm:$0xff] %vm180, %v147
  %183 = vst.msk [vmem:[#allocation2 + $0x10] sm:$0xff] %vm180, %v152
  %184 = vst.msk [vmem:[#allocation2 + $0x18] sm:$0xff] %vm180, %v157
  %185 = vst.msk [vmem:[#allocation2 + $0x20] sm:$0xff] %vm180, %v162
  %186 = vst.msk [vmem:[#allocation2 + $0x28] sm:$0xff] %vm180, %v167
  %187 = vst.msk [vmem:[#allocation2 + $0x30] sm:$0xff] %vm180, %v172
  %188 = vst.msk [vmem:[#allocation2 + $0x38] sm:$0xff] %vm180, %v177
  %v189 = vld [vmem:[%s4] sm:$0xff]
  %v190 = vld [vmem:[%s4 + $0x8] sm:$0xff]
  %v191 = vld [vmem:[%s5 + $0x1] sm:$0x1]
  %v192 = vld [vmem:[#allocation2] sm:$0xff]
  %v193 = vlaneseq
  %v194 = vshrl.u32 %v193, 7
  %v195 = vsub.s32 0, %v194
  %v196 = vrot.slane %v191, %v195
  %v198 = vsel %vm50, 0.0, 0
  %200 = vmatprep.subr.mxu0 0.0
  %201 = vmatpush1.msra.mxu0 %v189
  %202 = vmatprep.subr.mxu0 0.0
  %203 = vmatpush1.msra.mxu0 %v190
  %204 = vmatprep.subr.mxu0 0.0
  %205 = vmatpush1.msra.mxu0 0.0
  %206 = vmatprep.subr.mxu0 0.0
  %207 = vmatpush1.msra.mxu0 0.0
  %208 = vmatprep.subr.mxu0 0.0
  %209 = vmatpush1.msra.mxu0 0.0
  %210 = vmatprep.subr.mxu0 0.0
  %211 = vmatpush1.msra.mxu0 0.0
  %212 = vmatprep.subr.mxu0 0.0
  %213 = vmatpush1.msra.mxu0 0.0
  %214 = vmatprep.subr.mxu0 0.0
  %215 = vmatpush1.msra.mxu0 0.0
  %216 = vmatprep.subr.mxu0 0.0
  %217 = vmatpush1.msra.mxu0 0.0
  %218 = vmatprep.subr.mxu0 0.0
  %219 = vmatpush1.msra.mxu0 0.0
  %220 = vmatprep.subr.mxu0 0.0
  %221 = vmatpush1.msra.mxu0 0.0
  %222 = vmatprep.subr.mxu0 0.0
  %223 = vmatpush1.msra.mxu0 0.0
  %224 = vmatprep.subr.mxu0 0.0
  %225 = vmatpush1.msra.mxu0 0.0
  %226 = vmatprep.subr.mxu0 0.0
  %227 = vmatpush1.msra.mxu0 0.0
  %228 = vmatprep.subr.mxu0 0.0
  %229 = vmatpush1.msra.mxu0 0.0
  %230 = vmatprep.subr.mxu0 0.0
  %231 = vmatpush1.msra.mxu0 0.0
  %232 = vmatprep.subr.mxu0 0.0
  %233 = vmatpush1.msra.mxu0 0.0
  %234 = vmatprep.subr.mxu0 0.0
  %235 = vmatpush1.msra.mxu0 0.0
  %236 = vmatprep.subr.mxu0 0.0
  %237 = vmatpush1.msra.mxu0 0.0
  %238 = vmatprep.subr.mxu0 0.0
  %239 = vmatpush1.msra.mxu0 0.0
  %240 = vmatprep.subr.mxu0 0.0
  %241 = vmatpush1.msra.mxu0 0.0
  %242 = vmatprep.subr.mxu0 0.0
  %243 = vmatpush1.msra.mxu0 0.0
  %244 = vmatprep.subr.mxu0 0.0
  %245 = vmatpush1.msra.mxu0 0.0
  %246 = vmatprep.subr.mxu0 0.0
  %247 = vmatpush1.msra.mxu0 0.0
  %248 = vmatprep.subr.mxu0 0.0
  %249 = vmatpush1.msra.mxu0 0.0
  %250 = vmatprep.subr.mxu0 0.0
  %251 = vmatpush1.msra.mxu0 0.0
  %252 = vmatprep.subr.mxu0 0.0
  %253 = vmatpush1.msra.mxu0 0.0
  %254 = vmatprep.subr.mxu0 0.0
  %255 = vmatpush1.msra.mxu0 0.0
  %256 = vmatprep.subr.mxu0 0.0
  %257 = vmatpush1.msra.mxu0 0.0
  %258 = vmatprep.subr.mxu0 0.0
  %259 = vmatpush1.msra.mxu0 0.0
  %260 = vmatprep.subr.mxu0 0.0
  %261 = vmatpush1.msra.mxu0 0.0
  %262 = vmatprep.subr.mxu0 0.0
  %263 = vmatpush1.msra.mxu0 0.0
  %264 = vmatprep.mubr.f32.mxu0 0.0
  %265 = vmatmul.mubr.f32.gmra.mrb[0].mxu0 %v198
  %v266 = vpop.f32.mrb[0].mxu0
  %v267 = vadd.f32 %v196, %v266
  %v268 = vpop.f32.mrb[0].mxu0
  %269 = vdwg.mxu0
  %v270 = vadd.f32 %v192, %v267
  %v271 = vxor.u32 %v270, 2147483648
  %v272 = vmul.f32 %v271, 1.442695
  %v273 = vpow.pop %v272
  %v274 = vadd.f32 %v273, 1.0
  %v275 = vrcp.pop %v274
  %v276 = vmul.f32 1.0, %v275
  %278 = vrot.lane.b32.xlu0 %v267, 96
  %v279 = vpop.permute.xlu0 %278
  %v281 = vmul.f32 %v276, %v279
  %283 = vrot.lane.b32.xlu0 %v281, 32
  %v284 = vpop.permute.xlu0 %283
  %v286 = vadd.f32 %v192, %v284
  %v287 = vtanh.pop %v286
  %v288 = vsub.f32 1.0, %v276
  %290 = vrot.lane.b32.xlu0 %v287, 112
  %v291 = vpop.permute.xlu0 %290
  %v293 = vmul.f32 %v288, %v291
  %v294 = vmul.f32 %v276, 0.0
  %v295 = vadd.f32 %v293, %v294
  %297 = vrot.lane.b32.xlu0 %v295, 112
  %v298 = vpop.permute.xlu0 %297
  %300 = vst.msk [vmem:[#allocation3] sm:$0xff] %vm50, %v298
  %v301 = vld [vmem:[#allocation2 + $0x8] sm:$0xff]
  %v302 = vsel %vm50, %v298, 0
  %304 = vmatprep.subr.mxu0 0.0
  %305 = vmatpush1.msra.mxu0 %v189
  %306 = vmatprep.subr.mxu0 0.0
  %307 = vmatpush1.msra.mxu0 %v190
  %308 = vmatprep.subr.mxu0 0.0
  %309 = vmatpush1.msra.mxu0 0.0
  %310 = vmatprep.subr.mxu0 0.0
  %311 = vmatpush1.msra.mxu0 0.0
  %312 = vmatprep.subr.mxu0 0.0
  %313 = vmatpush1.msra.mxu0 0.0
  %314 = vmatprep.subr.mxu0 0.0
  %315 = vmatpush1.msra.mxu0 0.0
  %316 = vmatprep.subr.mxu0 0.0
  %317 = vmatpush1.msra.mxu0 0.0
  %318 = vmatprep.subr.mxu0 0.0
  %319 = vmatpush1.msra.mxu0 0.0
  %320 = vmatprep.subr.mxu0 0.0
  %321 = vmatpush1.msra.mxu0 0.0
  %322 = vmatprep.subr.mxu0 0.0
  %323 = vmatpush1.msra.mxu0 0.0
  %324 = vmatprep.subr.mxu0 0.0
  %325 = vmatpush1.msra.mxu0 0.0
  %326 = vmatprep.subr.mxu0 0.0
  %327 = vmatpush1.msra.mxu0 0.0
  %328 = vmatprep.subr.mxu0 0.0
  %329 = vmatpush1.msra.mxu0 0.0
  %330 = vmatprep.subr.mxu0 0.0
  %331 = vmatpush1.msra.mxu0 0.0
  %332 = vmatprep.subr.mxu0 0.0
  %333 = vmatpush1.msra.mxu0 0.0
  %334 = vmatprep.subr.mxu0 0.0
  %335 = vmatpush1.msra.mxu0 0.0
  %336 = vmatprep.subr.mxu0 0.0
  %337 = vmatpush1.msra.mxu0 0.0
  %338 = vmatprep.subr.mxu0 0.0
  %339 = vmatpush1.msra.mxu0 0.0
  %340 = vmatprep.subr.mxu0 0.0
  %341 = vmatpush1.msra.mxu0 0.0
  %342 = vmatprep.subr.mxu0 0.0
  %343 = vmatpush1.msra.mxu0 0.0
  %344 = vmatprep.subr.mxu0 0.0
  %345 = vmatpush1.msra.mxu0 0.0
  %346 = vmatprep.subr.mxu0 0.0
  %347 = vmatpush1.msra.mxu0 0.0
  %348 = vmatprep.subr.mxu0 0.0
  %349 = vmatpush1.msra.mxu0 0.0
  %350 = vmatprep.subr.mxu0 0.0
  %351 = vmatpush1.msra.mxu0 0.0
  %352 = vmatprep.subr.mxu0 0.0
  %353 = vmatpush1.msra.mxu0 0.0
  %354 = vmatprep.subr.mxu0 0.0
  %355 = vmatpush1.msra.mxu0 0.0
  %356 = vmatprep.subr.mxu0 0.0
  %357 = vmatpush1.msra.mxu0 0.0
  %358 = vmatprep.subr.mxu0 0.0
  %359 = vmatpush1.msra.mxu0 0.0
  %360 = vmatprep.subr.mxu0 0.0
  %361 = vmatpush1.msra.mxu0 0.0
  %362 = vmatprep.subr.mxu0 0.0
  %363 = vmatpush1.msra.mxu0 0.0
  %364 = vmatprep.subr.mxu0 0.0
  %365 = vmatpush1.msra.mxu0 0.0
  %366 = vmatprep.subr.mxu0 0.0
  %367 = vmatpush1.msra.mxu0 0.0
  %368 = vmatprep.mubr.f32.mxu0 0.0
  %369 = vmatmul.mubr.f32.gmra.mrb[0].mxu0 %v302
  %v370 = vpop.f32.mrb[0].mxu0
  %v371 = vadd.f32 %v196, %v370
  %v372 = vpop.f32.mrb[0].mxu0
  %373 = vdwg.mxu0
  %v374 = vadd.f32 %v301, %v371
  %v375 = vxor.u32 %v374, 2147483648
  %v376 = vmul.f32 %v375, 1.442695
  %v377 = vpow.pop %v376
  %v378 = vadd.f32 %v377, 1.0
  %v379 = vrcp.pop %v378
  %v380 = vmul.f32 1.0, %v379
  %382 = vrot.lane.b32.xlu0 %v371, 96
  %v383 = vpop.permute.xlu0 %382
  %v385 = vmul.f32 %v380, %v383
  %387 = vrot.lane.b32.xlu0 %v385, 32
  %v388 = vpop.permute.xlu0 %387
  %v390 = vadd.f32 %v301, %v388
  %v391 = vtanh.pop %v390
  %v392 = vsub.f32 1.0, %v380
  %394 = vrot.lane.b32.xlu0 %v391, 112
  %v395 = vpop.permute.xlu0 %394
  %v397 = vmul.f32 %v392, %v395
  %v398 = vmul.f32 %v380, %v295
  %v399 = vadd.f32 %v397, %v398
  %401 = vrot.lane.b32.xlu0 %v399, 112
  %v402 = vpop.permute.xlu0 %401
  %404 = vst.msk [vmem:[#allocation3 + $0x8] sm:$0xff] %vm50, %v402
  %v405 = vld [vmem:[#allocation2 + $0x10] sm:$0xff]
  %v406 = vsel %vm50, %v402, 0
  %408 = vmatprep.subr.mxu0 0.0
  %409 = vmatpush1.msra.mxu0 %v189
  %410 = vmatprep.subr.mxu0 0.0
  %411 = vmatpush1.msra.mxu0 %v190
  %412 = vmatprep.subr.mxu0 0.0
  %413 = vmatpush1.msra.mxu0 0.0
  %414 = vmatprep.subr.mxu0 0.0
  %415 = vmatpush1.msra.mxu0 0.0
  %416 = vmatprep.subr.mxu0 0.0
  %417 = vmatpush1.msra.mxu0 0.0
  %418 = vmatprep.subr.mxu0 0.0
  %419 = vmatpush1.msra.mxu0 0.0
  %420 = vmatprep.subr.mxu0 0.0
  %421 = vmatpush1.msra.mxu0 0.0
  %422 = vmatprep.subr.mxu0 0.0
  %423 = vmatpush1.msra.mxu0 0.0
  %424 = vmatprep.subr.mxu0 0.0
  %425 = vmatpush1.msra.mxu0 0.0
  %426 = vmatprep.subr.mxu0 0.0
  %427 = vmatpush1.msra.mxu0 0.0
  %428 = vmatprep.subr.mxu0 0.0
  %429 = vmatpush1.msra.mxu0 0.0
  %430 = vmatprep.subr.mxu0 0.0
  %431 = vmatpush1.msra.mxu0 0.0
  %432 = vmatprep.subr.mxu0 0.0
  %433 = vmatpush1.msra.mxu0 0.0
  %434 = vmatprep.subr.mxu0 0.0
  %435 = vmatpush1.msra.mxu0 0.0
  %436 = vmatprep.subr.mxu0 0.0
  %437 = vmatpush1.msra.mxu0 0.0
  %438 = vmatprep.subr.mxu0 0.0
  %439 = vmatpush1.msra.mxu0 0.0
  %440 = vmatprep.subr.mxu0 0.0
  %441 = vmatpush1.msra.mxu0 0.0
  %442 = vmatprep.subr.mxu0 0.0
  %443 = vmatpush1.msra.mxu0 0.0
  %444 = vmatprep.subr.mxu0 0.0
  %445 = vmatpush1.msra.mxu0 0.0
  %446 = vmatprep.subr.mxu0 0.0
  %447 = vmatpush1.msra.mxu0 0.0
  %448 = vmatprep.subr.mxu0 0.0
  %449 = vmatpush1.msra.mxu0 0.0
  %450 = vmatprep.subr.mxu0 0.0
  %451 = vmatpush1.msra.mxu0 0.0
  %452 = vmatprep.subr.mxu0 0.0
  %453 = vmatpush1.msra.mxu0 0.0
  %454 = vmatprep.subr.mxu0 0.0
  %455 = vmatpush1.msra.mxu0 0.0
  %456 = vmatprep.subr.mxu0 0.0
  %457 = vmatpush1.msra.mxu0 0.0
  %458 = vmatprep.subr.mxu0 0.0
  %459 = vmatpush1.msra.mxu0 0.0
  %460 = vmatprep.subr.mxu0 0.0
  %461 = vmatpush1.msra.mxu0 0.0
  %462 = vmatprep.subr.mxu0 0.0
  %463 = vmatpush1.msra.mxu0 0.0
  %464 = vmatprep.subr.mxu0 0.0
  %465 = vmatpush1.msra.mxu0 0.0
  %466 = vmatprep.subr.mxu0 0.0
  %467 = vmatpush1.msra.mxu0 0.0
  %468 = vmatprep.subr.mxu0 0.0
  %469 = vmatpush1.msra.mxu0 0.0
  %470 = vmatprep.subr.mxu0 0.0
  %471 = vmatpush1.msra.mxu0 0.0
  %472 = vmatprep.mubr.f32.mxu0 0.0
  %473 = vmatmul.mubr.f32.gmra.mrb[0].mxu0 %v406
  %v474 = vpop.f32.mrb[0].mxu0
  %v475 = vadd.f32 %v196, %v474
  %v476 = vpop.f32.mrb[0].mxu0
  %477 = vdwg.mxu0
  %v478 = vadd.f32 %v405, %v475
  %v479 = vxor.u32 %v478, 2147483648
  %v480 = vmul.f32 %v479, 1.442695
  %v481 = vpow.pop %v480
  %v482 = vadd.f32 %v481, 1.0
  %v483 = vrcp.pop %v482
  %v484 = vmul.f32 1.0, %v483
  %486 = vrot.lane.b32.xlu0 %v475, 96
  %v487 = vpop.permute.xlu0 %486
  %v489 = vmul.f32 %v484, %v487
  %491 = vrot.lane.b32.xlu0 %v489, 32
  %v492 = vpop.permute.xlu0 %491
  %v494 = vadd.f32 %v405, %v492
  %v495 = vtanh.pop %v494
  %v496 = vsub.f32 1.0, %v484
  %498 = vrot.lane.b32.xlu0 %v495, 112
  %v499 = vpop.permute.xlu0 %498
  %v501 = vmul.f32 %v496, %v499
  %v502 = vmul.f32 %v484, %v399
  %v503 = vadd.f32 %v501, %v502
  %505 = vrot.lane.b32.xlu0 %v503, 112
  %v506 = vpop.permute.xlu0 %505
  %508 = vst.msk [vmem:[#allocation3 + $0x10] sm:$0xff] %vm50, %v506
  %v509 = vld [vmem:[#allocation2 + $0x18] sm:$0xff]
  %v510 = vsel %vm50, %v506, 0
  %512 = vmatprep.subr.mxu0 0.0
  %513 = vmatpush1.msra.mxu0 %v189
  %514 = vmatprep.subr.mxu0 0.0
  %515 = vmatpush1.msra.mxu0 %v190
  %516 = vmatprep.subr.mxu0 0.0
  %517 = vmatpush1.msra.mxu0 0.0
  %518 = vmatprep.subr.mxu0 0.0
  %519 = vmatpush1.msra.mxu0 0.0
  %520 = vmatprep.subr.mxu0 0.0
  %521 = vmatpush1.msra.mxu0 0.0
  %522 = vmatprep.subr.mxu0 0.0
  %523 = vmatpush1.msra.mxu0 0.0
  %524 = vmatprep.subr.mxu0 0.0
  %525 = vmatpush1.msra.mxu0 0.0
  %526 = vmatprep.subr.mxu0 0.0
  %527 = vmatpush1.msra.mxu0 0.0
  %528 = vmatprep.subr.mxu0 0.0
  %529 = vmatpush1.msra.mxu0 0.0
  %530 = vmatprep.subr.mxu0 0.0
  %531 = vmatpush1.msra.mxu0 0.0
  %532 = vmatprep.subr.mxu0 0.0
  %533 = vmatpush1.msra.mxu0 0.0
  %534 = vmatprep.subr.mxu0 0.0
  %535 = vmatpush1.msra.mxu0 0.0
  %536 = vmatprep.subr.mxu0 0.0
  %537 = vmatpush1.msra.mxu0 0.0
  %538 = vmatprep.subr.mxu0 0.0
  %539 = vmatpush1.msra.mxu0 0.0
  %540 = vmatprep.subr.mxu0 0.0
  %541 = vmatpush1.msra.mxu0 0.0
  %542 = vmatprep.subr.mxu0 0.0
  %543 = vmatpush1.msra.mxu0 0.0
  %544 = vmatprep.subr.mxu0 0.0
  %545 = vmatpush1.msra.mxu0 0.0
  %546 = vmatprep.subr.mxu0 0.0
  %547 = vmatpush1.msra.mxu0 0.0
  %548 = vmatprep.subr.mxu0 0.0
  %549 = vmatpush1.msra.mxu0 0.0
  %550 = vmatprep.subr.mxu0 0.0
  %551 = vmatpush1.msra.mxu0 0.0
  %552 = vmatprep.subr.mxu0 0.0
  %553 = vmatpush1.msra.mxu0 0.0
  %554 = vmatprep.subr.mxu0 0.0
  %555 = vmatpush1.msra.mxu0 0.0
  %556 = vmatprep.subr.mxu0 0.0
  %557 = vmatpush1.msra.mxu0 0.0
  %558 = vmatprep.subr.mxu0 0.0
  %559 = vmatpush1.msra.mxu0 0.0
  %560 = vmatprep.subr.mxu0 0.0
  %561 = vmatpush1.msra.mxu0 0.0
  %562 = vmatprep.subr.mxu0 0.0
  %563 = vmatpush1.msra.mxu0 0.0
  %564 = vmatprep.subr.mxu0 0.0
  %565 = vmatpush1.msra.mxu0 0.0
  %566 = vmatprep.subr.mxu0 0.0
  %567 = vmatpush1.msra.mxu0 0.0
  %568 = vmatprep.subr.mxu0 0.0
  %569 = vmatpush1.msra.mxu0 0.0
  %570 = vmatprep.subr.mxu0 0.0
  %571 = vmatpush1.msra.mxu0 0.0
  %572 = vmatprep.subr.mxu0 0.0
  %573 = vmatpush1.msra.mxu0 0.0
  %574 = vmatprep.subr.mxu0 0.0
  %575 = vmatpush1.msra.mxu0 0.0
  %576 = vmatprep.mubr.f32.mxu0 0.0
  %577 = vmatmul.mubr.f32.gmra.mrb[0].mxu0 %v510
  %v578 = vpop.f32.mrb[0].mxu0
  %v579 = vadd.f32 %v196, %v578
  %v580 = vpop.f32.mrb[0].mxu0
  %581 = vdwg.mxu0
  %v582 = vadd.f32 %v509, %v579
  %v583 = vxor.u32 %v582, 2147483648
  %v584 = vmul.f32 %v583, 1.442695
  %v585 = vpow.pop %v584
  %v586 = vadd.f32 %v585, 1.0
  %v587 = vrcp.pop %v586
  %v588 = vmul.f32 1.0, %v587
  %590 = vrot.lane.b32.xlu0 %v579, 96
  %v591 = vpop.permute.xlu0 %590
  %v593 = vmul.f32 %v588, %v591
  %595 = vrot.lane.b32.xlu0 %v593, 32
  %v596 = vpop.permute.xlu0 %595
  %v598 = vadd.f32 %v509, %v596
  %v599 = vtanh.pop %v598
  %v600 = vsub.f32 1.0, %v588
  %602 = vrot.lane.b32.xlu0 %v599, 112
  %v603 = vpop.permute.xlu0 %602
  %v605 = vmul.f32 %v600, %v603
  %v606 = vmul.f32 %v588, %v503
  %v607 = vadd.f32 %v605, %v606
  %609 = vrot.lane.b32.xlu0 %v607, 112
  %v610 = vpop.permute.xlu0 %609
  %612 = vst.msk [vmem:[#allocation3 + $0x18] sm:$0xff] %vm50, %v610
  %v613 = vld [vmem:[#allocation2 + $0x20] sm:$0xff]
  %v614 = vsel %vm50, %v610, 0
  %616 = vmatprep.subr.mxu0 0.0
  %617 = vmatpush1.msra.mxu0 %v189
  %618 = vmatprep.subr.mxu0 0.0
  %619 = vmatpush1.msra.mxu0 %v190
  %620 = vmatprep.subr.mxu0 0.0
  %621 = vmatpush1.msra.mxu0 0.0
  %622 = vmatprep.subr.mxu0 0.0
  %623 = vmatpush1.msra.mxu0 0.0
  %624 = vmatprep.subr.mxu0 0.0
  %625 = vmatpush1.msra.mxu0 0.0
  %626 = vmatprep.subr.mxu0 0.0
  %627 = vmatpush1.msra.mxu0 0.0
  %628 = vmatprep.subr.mxu0 0.0
  %629 = vmatpush1.msra.mxu0 0.0
  %630 = vmatprep.subr.mxu0 0.0
  %631 = vmatpush1.msra.mxu0 0.0
  %632 = vmatprep.subr.mxu0 0.0
  %633 = vmatpush1.msra.mxu0 0.0
  %634 = vmatprep.subr.mxu0 0.0
  %635 = vmatpush1.msra.mxu0 0.0
  %636 = vmatprep.subr.mxu0 0.0
  %637 = vmatpush1.msra.mxu0 0.0
  %638 = vmatprep.subr.mxu0 0.0
  %639 = vmatpush1.msra.mxu0 0.0
  %640 = vmatprep.subr.mxu0 0.0
  %641 = vmatpush1.msra.mxu0 0.0
  %642 = vmatprep.subr.mxu0 0.0
  %643 = vmatpush1.msra.mxu0 0.0
  %644 = vmatprep.subr.mxu0 0.0
  %645 = vmatpush1.msra.mxu0 0.0
  %646 = vmatprep.subr.mxu0 0.0
  %647 = vmatpush1.msra.mxu0 0.0
  %648 = vmatprep.subr.mxu0 0.0
  %649 = vmatpush1.msra.mxu0 0.0
  %650 = vmatprep.subr.mxu0 0.0
  %651 = vmatpush1.msra.mxu0 0.0
  %652 = vmatprep.subr.mxu0 0.0
  %653 = vmatpush1.msra.mxu0 0.0
  %654 = vmatprep.subr.mxu0 0.0
  %655 = vmatpush1.msra.mxu0 0.0
  %656 = vmatprep.subr.mxu0 0.0
  %657 = vmatpush1.msra.mxu0 0.0
  %658 = vmatprep.subr.mxu0 0.0
  %659 = vmatpush1.msra.mxu0 0.0
  %660 = vmatprep.subr.mxu0 0.0
  %661 = vmatpush1.msra.mxu0 0.0
  %662 = vmatprep.subr.mxu0 0.0
  %663 = vmatpush1.msra.mxu0 0.0
  %664 = vmatprep.subr.mxu0 0.0
  %665 = vmatpush1.msra.mxu0 0.0
  %666 = vmatprep.subr.mxu0 0.0
  %667 = vmatpush1.msra.mxu0 0.0
  %668 = vmatprep.subr.mxu0 0.0
  %669 = vmatpush1.msra.mxu0 0.0
  %670 = vmatprep.subr.mxu0 0.0
  %671 = vmatpush1.msra.mxu0 0.0
  %672 = vmatprep.subr.mxu0 0.0
  %673 = vmatpush1.msra.mxu0 0.0
  %674 = vmatprep.subr.mxu0 0.0
  %675 = vmatpush1.msra.mxu0 0.0
  %676 = vmatprep.subr.mxu0 0.0
  %677 = vmatpush1.msra.mxu0 0.0
  %678 = vmatprep.subr.mxu0 0.0
  %679 = vmatpush1.msra.mxu0 0.0
  %680 = vmatprep.mubr.f32.mxu0 0.0
  %681 = vmatmul.mubr.f32.gmra.mrb[0].mxu0 %v614
  %v682 = vpop.f32.mrb[0].mxu0
  %v683 = vadd.f32 %v196, %v682
  %v684 = vpop.f32.mrb[0].mxu0
  %685 = vdwg.mxu0
  %v686 = vadd.f32 %v613, %v683
  %v687 = vxor.u32 %v686, 2147483648
  %v688 = vmul.f32 %v687, 1.442695
  %v689 = vpow.pop %v688
  %v690 = vadd.f32 %v689, 1.0
  %v691 = vrcp.pop %v690
  %v692 = vmul.f32 1.0, %v691
  %694 = vrot.lane.b32.xlu0 %v683, 96
  %v695 = vpop.permute.xlu0 %694
  %v697 = vmul.f32 %v692, %v695
  %699 = vrot.lane.b32.xlu0 %v697, 32
  %v700 = vpop.permute.xlu0 %699
  %v702 = vadd.f32 %v613, %v700
  %v703 = vtanh.pop %v702
  %v704 = vsub.f32 1.0, %v692
  %706 = vrot.lane.b32.xlu0 %v703, 112
  %v707 = vpop.permute.xlu0 %706
  %v709 = vmul.f32 %v704, %v707
  %v710 = vmul.f32 %v692, %v607
  %v711 = vadd.f32 %v709, %v710
  %713 = vrot.lane.b32.xlu0 %v711, 112
  %v714 = vpop.permute.xlu0 %713
  %716 = vst.msk [vmem:[#allocation3 + $0x20] sm:$0xff] %vm50, %v714
  %v717 = vld [vmem:[#allocation2 + $0x28] sm:$0xff]
  %v718 = vsel %vm50, %v714, 0
  %720 = vmatprep.subr.mxu0 0.0
  %721 = vmatpush1.msra.mxu0 %v189
  %722 = vmatprep.subr.mxu0 0.0
  %723 = vmatpush1.msra.mxu0 %v190
  %724 = vmatprep.subr.mxu0 0.0
  %725 = vmatpush1.msra.mxu0 0.0
  %726 = vmatprep.subr.mxu0 0.0
  %727 = vmatpush1.msra.mxu0 0.0
  %728 = vmatprep.subr.mxu0 0.0
  %729 = vmatpush1.msra.mxu0 0.0
  %730 = vmatprep.subr.mxu0 0.0
  %731 = vmatpush1.msra.mxu0 0.0
  %732 = vmatprep.subr.mxu0 0.0
  %733 = vmatpush1.msra.mxu0 0.0
  %734 = vmatprep.subr.mxu0 0.0
  %735 = vmatpush1.msra.mxu0 0.0
  %736 = vmatprep.subr.mxu0 0.0
  %737 = vmatpush1.msra.mxu0 0.0
  %738 = vmatprep.subr.mxu0 0.0
  %739 = vmatpush1.msra.mxu0 0.0
  %740 = vmatprep.subr.mxu0 0.0
  %741 = vmatpush1.msra.mxu0 0.0
  %742 = vmatprep.subr.mxu0 0.0
  %743 = vmatpush1.msra.mxu0 0.0
  %744 = vmatprep.subr.mxu0 0.0
  %745 = vmatpush1.msra.mxu0 0.0
  %746 = vmatprep.subr.mxu0 0.0
  %747 = vmatpush1.msra.mxu0 0.0
  %748 = vmatprep.subr.mxu0 0.0
  %749 = vmatpush1.msra.mxu0 0.0
  %750 = vmatprep.subr.mxu0 0.0
  %751 = vmatpush1.msra.mxu0 0.0
  %752 = vmatprep.subr.mxu0 0.0
  %753 = vmatpush1.msra.mxu0 0.0
  %754 = vmatprep.subr.mxu0 0.0
  %755 = vmatpush1.msra.mxu0 0.0
  %756 = vmatprep.subr.mxu0 0.0
  %757 = vmatpush1.msra.mxu0 0.0
  %758 = vmatprep.subr.mxu0 0.0
  %759 = vmatpush1.msra.mxu0 0.0
  %760 = vmatprep.subr.mxu0 0.0
  %761 = vmatpush1.msra.mxu0 0.0
  %762 = vmatprep.subr.mxu0 0.0
  %763 = vmatpush1.msra.mxu0 0.0
  %764 = vmatprep.subr.mxu0 0.0
  %765 = vmatpush1.msra.mxu0 0.0
  %766 = vmatprep.subr.mxu0 0.0
  %767 = vmatpush1.msra.mxu0 0.0
  %768 = vmatprep.subr.mxu0 0.0
  %769 = vmatpush1.msra.mxu0 0.0
  %770 = vmatprep.subr.mxu0 0.0
  %771 = vmatpush1.msra.mxu0 0.0
  %772 = vmatprep.subr.mxu0 0.0
  %773 = vmatpush1.msra.mxu0 0.0
  %774 = vmatprep.subr.mxu0 0.0
  %775 = vmatpush1.msra.mxu0 0.0
  %776 = vmatprep.subr.mxu0 0.0
  %777 = vmatpush1.msra.mxu0 0.0
  %778 = vmatprep.subr.mxu0 0.0
  %779 = vmatpush1.msra.mxu0 0.0
  %780 = vmatprep.subr.mxu0 0.0
  %781 = vmatpush1.msra.mxu0 0.0
  %782 = vmatprep.subr.mxu0 0.0
  %783 = vmatpush1.msra.mxu0 0.0
  %784 = vmatprep.mubr.f32.mxu0 0.0
  %785 = vmatmul.mubr.f32.gmra.mrb[0].mxu0 %v718
  %v786 = vpop.f32.mrb[0].mxu0
  %v787 = vadd.f32 %v196, %v786
  %v788 = vpop.f32.mrb[0].mxu0
  %789 = vdwg.mxu0
  %v790 = vadd.f32 %v717, %v787
  %v791 = vxor.u32 %v790, 2147483648
  %v792 = vmul.f32 %v791, 1.442695
  %v793 = vpow.pop %v792
  %v794 = vadd.f32 %v793, 1.0
  %v795 = vrcp.pop %v794
  %v796 = vmul.f32 1.0, %v795
  %798 = vrot.lane.b32.xlu0 %v787, 96
  %v799 = vpop.permute.xlu0 %798
  %v801 = vmul.f32 %v796, %v799
  %803 = vrot.lane.b32.xlu0 %v801, 32
  %v804 = vpop.permute.xlu0 %803
  %v806 = vadd.f32 %v717, %v804
  %v807 = vtanh.pop %v806
  %v808 = vsub.f32 1.0, %v796
  %810 = vrot.lane.b32.xlu0 %v807, 112
  %v811 = vpop.permute.xlu0 %810
  %v813 = vmul.f32 %v808, %v811
  %v814 = vmul.f32 %v796, %v711
  %v815 = vadd.f32 %v813, %v814
  %817 = vrot.lane.b32.xlu0 %v815, 112
  %v818 = vpop.permute.xlu0 %817
  %820 = vst.msk [vmem:[#allocation3 + $0x28] sm:$0xff] %vm50, %v818
  %v821 = vld [vmem:[#allocation2 + $0x30] sm:$0xff]
  %v822 = vsel %vm50, %v818, 0
  %824 = vmatprep.subr.mxu0 0.0
  %825 = vmatpush1.msra.mxu0 %v189
  %826 = vmatprep.subr.mxu0 0.0
  %827 = vmatpush1.msra.mxu0 %v190
  %828 = vmatprep.subr.mxu0 0.0
  %829 = vmatpush1.msra.mxu0 0.0
  %830 = vmatprep.subr.mxu0 0.0
  %831 = vmatpush1.msra.mxu0 0.0
  %832 = vmatprep.subr.mxu0 0.0
  %833 = vmatpush1.msra.mxu0 0.0
  %834 = vmatprep.subr.mxu0 0.0
  %835 = vmatpush1.msra.mxu0 0.0
  %836 = vmatprep.subr.mxu0 0.0
  %837 = vmatpush1.msra.mxu0 0.0
  %838 = vmatprep.subr.mxu0 0.0
  %839 = vmatpush1.msra.mxu0 0.0
  %840 = vmatprep.subr.mxu0 0.0
  %841 = vmatpush1.msra.mxu0 0.0
  %842 = vmatprep.subr.mxu0 0.0
  %843 = vmatpush1.msra.mxu0 0.0
  %844 = vmatprep.subr.mxu0 0.0
  %845 = vmatpush1.msra.mxu0 0.0
  %846 = vmatprep.subr.mxu0 0.0
  %847 = vmatpush1.msra.mxu0 0.0
  %848 = vmatprep.subr.mxu0 0.0
  %849 = vmatpush1.msra.mxu0 0.0
  %850 = vmatprep.subr.mxu0 0.0
  %851 = vmatpush1.msra.mxu0 0.0
  %852 = vmatprep.subr.mxu0 0.0
  %853 = vmatpush1.msra.mxu0 0.0
  %854 = vmatprep.subr.mxu0 0.0
  %855 = vmatpush1.msra.mxu0 0.0
  %856 = vmatprep.subr.mxu0 0.0
  %857 = vmatpush1.msra.mxu0 0.0
  %858 = vmatprep.subr.mxu0 0.0
  %859 = vmatpush1.msra.mxu0 0.0
  %860 = vmatprep.subr.mxu0 0.0
  %861 = vmatpush1.msra.mxu0 0.0
  %862 = vmatprep.subr.mxu0 0.0
  %863 = vmatpush1.msra.mxu0 0.0
  %864 = vmatprep.subr.mxu0 0.0
  %865 = vmatpush1.msra.mxu0 0.0
  %866 = vmatprep.subr.mxu0 0.0
  %867 = vmatpush1.msra.mxu0 0.0
  %868 = vmatprep.subr.mxu0 0.0
  %869 = vmatpush1.msra.mxu0 0.0
  %870 = vmatprep.subr.mxu0 0.0
  %871 = vmatpush1.msra.mxu0 0.0
  %872 = vmatprep.subr.mxu0 0.0
  %873 = vmatpush1.msra.mxu0 0.0
  %874 = vmatprep.subr.mxu0 0.0
  %875 = vmatpush1.msra.mxu0 0.0
  %876 = vmatprep.subr.mxu0 0.0
  %877 = vmatpush1.msra.mxu0 0.0
  %878 = vmatprep.subr.mxu0 0.0
  %879 = vmatpush1.msra.mxu0 0.0
  %880 = vmatprep.subr.mxu0 0.0
  %881 = vmatpush1.msra.mxu0 0.0
  %882 = vmatprep.subr.mxu0 0.0
  %883 = vmatpush1.msra.mxu0 0.0
  %884 = vmatprep.subr.mxu0 0.0
  %885 = vmatpush1.msra.mxu0 0.0
  %886 = vmatprep.subr.mxu0 0.0
  %887 = vmatpush1.msra.mxu0 0.0
  %888 = vmatprep.mubr.f32.mxu0 0.0
  %889 = vmatmul.mubr.f32.gmra.mrb[0].mxu0 %v822
  %v890 = vpop.f32.mrb[0].mxu0
  %v891 = vadd.f32 %v196, %v890
  %v892 = vpop.f32.mrb[0].mxu0
  %893 = vdwg.mxu0
  %v894 = vadd.f32 %v821, %v891
  %v895 = vxor.u32 %v894, 2147483648
  %v896 = vmul.f32 %v895, 1.442695
  %v897 = vpow.pop %v896
  %v898 = vadd.f32 %v897, 1.0
  %v899 = vrcp.pop %v898
  %v900 = vmul.f32 1.0, %v899
  %902 = vrot.lane.b32.xlu0 %v891, 96
  %v903 = vpop.permute.xlu0 %902
  %v905 = vmul.f32 %v900, %v903
  %907 = vrot.lane.b32.xlu0 %v905, 32
  %v908 = vpop.permute.xlu0 %907
  %v910 = vadd.f32 %v821, %v908
  %v911 = vtanh.pop %v910
  %v912 = vsub.f32 1.0, %v900
  %914 = vrot.lane.b32.xlu0 %v911, 112
  %v915 = vpop.permute.xlu0 %914
  %v917 = vmul.f32 %v912, %v915
  %v918 = vmul.f32 %v900, %v815
  %v919 = vadd.f32 %v917, %v918
  %921 = vrot.lane.b32.xlu0 %v919, 112
  %v922 = vpop.permute.xlu0 %921
  %924 = vst.msk [vmem:[#allocation3 + $0x30] sm:$0xff] %vm50, %v922
  %v925 = vld [vmem:[#allocation2 + $0x38] sm:$0xff]
  %v926 = vsel %vm50, %v922, 0
  %928 = vmatprep.subr.mxu0 0.0
  %929 = vmatpush1.msra.mxu0 %v189
  %930 = vmatprep.subr.mxu0 0.0
  %931 = vmatpush1.msra.mxu0 %v190
  %932 = vmatprep.subr.mxu0 0.0
  %933 = vmatpush1.msra.mxu0 0.0
  %934 = vmatprep.subr.mxu0 0.0
  %935 = vmatpush1.msra.mxu0 0.0
  %936 = vmatprep.subr.mxu0 0.0
  %937 = vmatpush1.msra.mxu0 0.0
  %938 = vmatprep.subr.mxu0 0.0
  %939 = vmatpush1.msra.mxu0 0.0
  %940 = vmatprep.subr.mxu0 0.0
  %941 = vmatpush1.msra.mxu0 0.0
  %942 = vmatprep.subr.mxu0 0.0
  %943 = vmatpush1.msra.mxu0 0.0
  %944 = vmatprep.subr.mxu0 0.0
  %945 = vmatpush1.msra.mxu0 0.0
  %946 = vmatprep.subr.mxu0 0.0
  %947 = vmatpush1.msra.mxu0 0.0
  %948 = vmatprep.subr.mxu0 0.0
  %949 = vmatpush1.msra.mxu0 0.0
  %950 = vmatprep.subr.mxu0 0.0
  %951 = vmatpush1.msra.mxu0 0.0
  %952 = vmatprep.subr.mxu0 0.0
  %953 = vmatpush1.msra.mxu0 0.0
  %954 = vmatprep.subr.mxu0 0.0
  %955 = vmatpush1.msra.mxu0 0.0
  %956 = vmatprep.subr.mxu0 0.0
  %957 = vmatpush1.msra.mxu0 0.0
  %958 = vmatprep.subr.mxu0 0.0
  %959 = vmatpush1.msra.mxu0 0.0
  %960 = vmatprep.subr.mxu0 0.0
  %961 = vmatpush1.msra.mxu0 0.0
  %962 = vmatprep.subr.mxu0 0.0
  %963 = vmatpush1.msra.mxu0 0.0
  %964 = vmatprep.subr.mxu0 0.0
  %965 = vmatpush1.msra.mxu0 0.0
  %966 = vmatprep.subr.mxu0 0.0
  %967 = vmatpush1.msra.mxu0 0.0
  %968 = vmatprep.subr.mxu0 0.0
  %969 = vmatpush1.msra.mxu0 0.0
  %970 = vmatprep.subr.mxu0 0.0
  %971 = vmatpush1.msra.mxu0 0.0
  %972 = vmatprep.subr.mxu0 0.0
  %973 = vmatpush1.msra.mxu0 0.0
  %974 = vmatprep.subr.mxu0 0.0
  %975 = vmatpush1.msra.mxu0 0.0
  %976 = vmatprep.subr.mxu0 0.0
  %977 = vmatpush1.msra.mxu0 0.0
  %978 = vmatprep.subr.mxu0 0.0
  %979 = vmatpush1.msra.mxu0 0.0
  %980 = vmatprep.subr.mxu0 0.0
  %981 = vmatpush1.msra.mxu0 0.0
  %982 = vmatprep.subr.mxu0 0.0
  %983 = vmatpush1.msra.mxu0 0.0
  %984 = vmatprep.subr.mxu0 0.0
  %985 = vmatpush1.msra.mxu0 0.0
  %986 = vmatprep.subr.mxu0 0.0
  %987 = vmatpush1.msra.mxu0 0.0
  %988 = vmatprep.subr.mxu0 0.0
  %989 = vmatpush1.msra.mxu0 0.0
  %990 = vmatprep.subr.mxu0 0.0
  %991 = vmatpush1.msra.mxu0 0.0
  %992 = vmatprep.mubr.f32.mxu0 0.0
  %993 = vmatmul.mubr.f32.gmra.mrb[0].mxu0 %v926
  %v994 = vpop.f32.mrb[0].mxu0
  %v995 = vadd.f32 %v196, %v994
  %v996 = vpop.f32.mrb[0].mxu0
  %997 = vdwg.mxu0
  %v998 = vadd.f32 %v925, %v995
  %v999 = vxor.u32 %v998, 2147483648
  %v1000 = vmul.f32 %v999, 1.442695
  %v1001 = vpow.pop %v1000
  %v1002 = vadd.f32 %v1001, 1.0
  %v1003 = vrcp.pop %v1002
  %v1004 = vmul.f32 1.0, %v1003
  %1006 = vrot.lane.b32.xlu0 %v995, 96
  %v1007 = vpop.permute.xlu0 %1006
  %v1009 = vmul.f32 %v1004, %v1007
  %1011 = vrot.lane.b32.xlu0 %v1009, 32
  %v1012 = vpop.permute.xlu0 %1011
  %v1014 = vadd.f32 %v925, %v1012
  %v1015 = vtanh.pop %v1014
  %v1016 = vsub.f32 1.0, %v1004
  %1018 = vrot.lane.b32.xlu0 %v1015, 112
  %v1019 = vpop.permute.xlu0 %1018
  %v1021 = vmul.f32 %v1016, %v1019
  %v1022 = vmul.f32 %v1004, %v919
  %v1023 = vadd.f32 %v1021, %v1022
  %1025 = vrot.lane.b32.xlu0 %v1023, 112
  %v1026 = vpop.permute.xlu0 %1025
  %1028 = vst.msk [vmem:[#allocation3 + $0x38] sm:$0xff] %vm50, %v1026
  %v1029 = vld [vmem:[#allocation3] sm:$0xff]
  %v1030 = vld [vmem:[#allocation3 + $0x8] sm:$0xff]
  %v1031 = vld [vmem:[#allocation3 + $0x10] sm:$0xff]
  %v1032 = vld [vmem:[#allocation3 + $0x18] sm:$0xff]
  %v1033 = vld [vmem:[#allocation3 + $0x20] sm:$0xff]
  %v1034 = vld [vmem:[#allocation3 + $0x28] sm:$0xff]
  %v1035 = vld [vmem:[#allocation3 + $0x30] sm:$0xff]
  %v1036 = vld [vmem:[#allocation3 + $0x38] sm:$0xff]
  %v1037 = vld [vmem:[%s1] sm:$0xff]
  %v1038 = vld [vmem:[%s1 + $0x8] sm:$0xff]
  %v1039 = vld [vmem:[%s1 + $0x10] sm:$0xff]
  %v1040 = vld [vmem:[%s1 + $0x18] sm:$0xff]
  %v1041 = vld [vmem:[%s1 + $0x20] sm:$0xff]
  %v1042 = vld [vmem:[%s1 + $0x28] sm:$0xff]
  %v1043 = vld [vmem:[%s1 + $0x30] sm:$0xff]
  %v1044 = vld [vmem:[%s1 + $0x38] sm:$0xff]
  %1046 = vset.pattern.permute.xlu0 0
  %1047 = vperm.xlu0 %1046, %v1037
  %v1048 = vpop.permute.xlu0 %1047
  %1051 = vset.pattern.permute.xlu0 0
  %1052 = vperm.xlu0 %1051, %v1038
  %v1053 = vpop.permute.xlu0 %1052
  %1056 = vset.pattern.permute.xlu0 0
  %1057 = vperm.xlu0 %1056, %v1039
  %v1058 = vpop.permute.xlu0 %1057
  %1061 = vset.pattern.permute.xlu0 0
  %1062 = vperm.xlu0 %1061, %v1040
  %v1063 = vpop.permute.xlu0 %1062
  %1066 = vset.pattern.permute.xlu0 0
  %1067 = vperm.xlu0 %1066, %v1041
  %v1068 = vpop.permute.xlu0 %1067
  %1071 = vset.pattern.permute.xlu0 0
  %1072 = vperm.xlu0 %1071, %v1042
  %v1073 = vpop.permute.xlu0 %1072
  %1076 = vset.pattern.permute.xlu0 0
  %1077 = vperm.xlu0 %1076, %v1043
  %v1078 = vpop.permute.xlu0 %1077
  %1081 = vset.pattern.permute.xlu0 0
  %1082 = vperm.xlu0 %1081, %v1044
  %v1083 = vpop.permute.xlu0 %1082
  %v1085 = vmul.f32 %v1029, %v1048
  %v1086 = vmul.f32 %v1030, %v1053
  %v1087 = vmul.f32 %v1031, %v1058
  %v1088 = vmul.f32 %v1032, %v1063
  %v1089 = vmul.f32 %v1033, %v1068
  %v1090 = vmul.f32 %v1034, %v1073
  %v1091 = vmul.f32 %v1035, %v1078
  %v1092 = vmul.f32 %v1036, %v1083
  %v1093 = vld [vmem:[%s2] sm:$0xff]
  %v1094 = vld [vmem:[%s6] sm:$0xff]
  %v1095 = vld [vmem:[%s6 + $0x8] sm:$0xff]
  %v1097 = vsel %vm50, %v1085, 0
  %v1100 = vsel %vm50, %v1086, 0
  %v1103 = vsel %vm50, %v1087, 0
  %v1106 = vsel %vm50, %v1088, 0
  %v1109 = vsel %vm50, %v1089, 0
  %v1112 = vsel %vm50, %v1090, 0
  %v1115 = vsel %vm50, %v1091, 0
  %v1118 = vsel %vm50, %v1092, 0
  %1120 = vmatprep.subr.mxu0 0.0
  %1121 = vmatpush1.msra.mxu0 %v1094
  %1122 = vmatprep.subr.mxu0 0.0
  %1123 = vmatpush1.msra.mxu0 %v1095
  %1124 = vmatprep.subr.mxu0 0.0
  %1125 = vmatpush1.msra.mxu0 0.0
  %1126 = vmatprep.subr.mxu0 0.0
  %1127 = vmatpush1.msra.mxu0 0.0
  %1128 = vmatprep.subr.mxu0 0.0
  %1129 = vmatpush1.msra.mxu0 0.0
  %1130 = vmatprep.subr.mxu0 0.0
  %1131 = vmatpush1.msra.mxu0 0.0
  %1132 = vmatprep.subr.mxu0 0.0
  %1133 = vmatpush1.msra.mxu0 0.0
  %1134 = vmatprep.subr.mxu0 0.0
  %1135 = vmatpush1.msra.mxu0 0.0
  %1136 = vmatprep.subr.mxu0 0.0
  %1137 = vmatpush1.msra.mxu0 0.0
  %1138 = vmatprep.subr.mxu0 0.0
  %1139 = vmatpush1.msra.mxu0 0.0
  %1140 = vmatprep.subr.mxu0 0.0
  %1141 = vmatpush1.msra.mxu0 0.0
  %1142 = vmatprep.subr.mxu0 0.0
  %1143 = vmatpush1.msra.mxu0 0.0
  %1144 = vmatprep.subr.mxu0 0.0
  %1145 = vmatpush1.msra.mxu0 0.0
  %1146 = vmatprep.subr.mxu0 0.0
  %1147 = vmatpush1.msra.mxu0 0.0
  %1148 = vmatprep.subr.mxu0 0.0
  %1149 = vmatpush1.msra.mxu0 0.0
  %1150 = vmatprep.subr.mxu0 0.0
  %1151 = vmatpush1.msra.mxu0 0.0
  %1152 = vmatprep.subr.mxu0 0.0
  %1153 = vmatpush1.msra.mxu0 0.0
  %1154 = vmatprep.subr.mxu0 0.0
  %1155 = vmatpush1.msra.mxu0 0.0
  %1156 = vmatprep.subr.mxu0 0.0
  %1157 = vmatpush1.msra.mxu0 0.0
  %1158 = vmatprep.subr.mxu0 0.0
  %1159 = vmatpush1.msra.mxu0 0.0
  %1160 = vmatprep.subr.mxu0 0.0
  %1161 = vmatpush1.msra.mxu0 0.0
  %1162 = vmatprep.subr.mxu0 0.0
  %1163 = vmatpush1.msra.mxu0 0.0
  %1164 = vmatprep.subr.mxu0 0.0
  %1165 = vmatpush1.msra.mxu0 0.0
  %1166 = vmatprep.subr.mxu0 0.0
  %1167 = vmatpush1.msra.mxu0 0.0
  %1168 = vmatprep.subr.mxu0 0.0
  %1169 = vmatpush1.msra.mxu0 0.0
  %1170 = vmatprep.subr.mxu0 0.0
  %1171 = vmatpush1.msra.mxu0 0.0
  %1172 = vmatprep.subr.mxu0 0.0
  %1173 = vmatpush1.msra.mxu0 0.0
  %1174 = vmatprep.subr.mxu0 0.0
  %1175 = vmatpush1.msra.mxu0 0.0
  %1176 = vmatprep.subr.mxu0 0.0
  %1177 = vmatpush1.msra.mxu0 0.0
  %1178 = vmatprep.subr.mxu0 0.0
  %1179 = vmatpush1.msra.mxu0 0.0
  %1180 = vmatprep.subr.mxu0 0.0
  %1181 = vmatpush1.msra.mxu0 0.0
  %1182 = vmatprep.subr.mxu0 0.0
  %1183 = vmatpush1.msra.mxu0 0.0
  %1184 = vmatprep.mubr.f32.mxu0 0.0
  %1185 = vmatmul.mubr.f32.gmra.mrb[0].mxu0 %v1097
  %v1186 = vpop.f32.mrb[0].mxu0
  %v1187 = vadd.f32 0.0, %v1186
  %v1188 = vpop.f32.mrb[0].mxu0
  %1189 = vmatprep.mubr.f32.mxu0 0.0
  %1190 = vmatmul.mubr.f32.gmra.mrb[0].mxu0 %v1100
  %v1191 = vpop.f32.mrb[0].mxu0
  %v1192 = vadd.f32 0.0, %v1191
  %v1193 = vpop.f32.mrb[0].mxu0
  %1194 = vmatprep.mubr.f32.mxu0 0.0
  %1195 = vmatmul.mubr.f32.gmra.mrb[0].mxu0 %v1103
  %v1196 = vpop.f32.mrb[0].mxu0
  %v1197 = vadd.f32 0.0, %v1196
  %v1198 = vpop.f32.mrb[0].mxu0
  %1199 = vmatprep.mubr.f32.mxu0 0.0
  %1200 = vmatmul.mubr.f32.gmra.mrb[0].mxu0 %v1106
  %v1201 = vpop.f32.mrb[0].mxu0
  %v1202 = vadd.f32 0.0, %v1201
  %v1203 = vpop.f32.mrb[0].mxu0
  %1204 = vmatprep.mubr.f32.mxu0 0.0
  %1205 = vmatmul.mubr.f32.gmra.mrb[0].mxu0 %v1109
  %v1206 = vpop.f32.mrb[0].mxu0
  %v1207 = vadd.f32 0.0, %v1206
  %v1208 = vpop.f32.mrb[0].mxu0
  %1209 = vmatprep.mubr.f32.mxu0 0.0
  %1210 = vmatmul.mubr.f32.gmra.mrb[0].mxu0 %v1112
  %v1211 = vpop.f32.mrb[0].mxu0
  %v1212 = vadd.f32 0.0, %v1211
  %v1213 = vpop.f32.mrb[0].mxu0
  %1214 = vmatprep.mubr.f32.mxu0 0.0
  %1215 = vmatmul.mubr.f32.gmra.mrb[0].mxu0 %v1115
  %v1216 = vpop.f32.mrb[0].mxu0
  %v1217 = vadd.f32 0.0, %v1216
  %v1218 = vpop.f32.mrb[0].mxu0
  %1219 = vmatprep.mubr.f32.mxu0 0.0
  %1220 = vmatmul.mubr.f32.gmra.mrb[0].mxu0 %v1118
  %v1221 = vpop.f32.mrb[0].mxu0
  %v1222 = vadd.f32 0.0, %v1221
  %v1223 = vpop.f32.mrb[0].mxu0
  %1224 = vdwg.mxu0
  %v1225 = vlaneseq
  %v1226 = vshrl.u32 %v1225, 7
  %v1227 = vadd.s32 %v1226, 8
  %v1228 = vadd.s32 %v1226, 16
  %v1229 = vadd.s32 %v1226, 24
  %v1230 = vadd.s32 %v1226, 32
  %v1231 = vadd.s32 %v1226, 40
  %v1232 = vadd.s32 %v1226, 48
  %v1233 = vadd.s32 %v1226, 56
  %v1234 = vlaneseq
  %v1235 = vand.u32 %v1234, 127
  %v1236 = vmul.u32 %v1235, 16
  %vm1237 = vcmp.ge.s32.totalorder %v1226, %v1236
  %vm1238 = vcmp.ge.s32.totalorder %v1227, %v1236
  %vm1239 = vcmp.ge.s32.totalorder %v1228, %v1236
  %vm1240 = vcmp.ge.s32.totalorder %v1229, %v1236
  %vm1241 = vcmp.ge.s32.totalorder %v1230, %v1236
  %vm1242 = vcmp.ge.s32.totalorder %v1231, %v1236
  %vm1243 = vcmp.ge.s32.totalorder %v1232, %v1236
  %vm1244 = vcmp.ge.s32.totalorder %v1233, %v1236
  %v1245 = vadd.s32 %v1236, 16
  %vm1246 = vcmp.lt.s32.totalorder %v1226, %v1245
  %vm1247 = vcmp.lt.s32.totalorder %v1227, %v1245
  %vm1248 = vcmp.lt.s32.totalorder %v1228, %v1245
  %vm1249 = vcmp.lt.s32.totalorder %v1229, %v1245
  %vm1250 = vcmp.lt.s32.totalorder %v1230, %v1245
  %vm1251 = vcmp.lt.s32.totalorder %v1231, %v1245
  %vm1252 = vcmp.lt.s32.totalorder %v1232, %v1245
  %vm1253 = vcmp.lt.s32.totalorder %v1233, %v1245
  %vm1254 = vmand %vm1237, %vm1246
  %vm1255 = vmand %vm1238, %vm1247
  %vm1256 = vmand %vm1239, %vm1248
  %vm1257 = vmand %vm1240, %vm1249
  %vm1258 = vmand %vm1241, %vm1250
  %vm1259 = vmand %vm1242, %vm1251
  %vm1260 = vmand %vm1243, %vm1252
  %vm1261 = vmand %vm1244, %vm1253
  %v1262 = vsel %vm1254, 1, 0
  %v1263 = vsel %vm1255, 1, 0
  %v1264 = vsel %vm1256, 1, 0
  %v1265 = vsel %vm1257, 1, 0
  %v1266 = vsel %vm1258, 1, 0
  %v1267 = vsel %vm1259, 1, 0
  %v1268 = vsel %vm1260, 1, 0
  %v1269 = vsel %vm1261, 1, 0
  %v1270 = vcvt.s32.f32 %v1262
  %v1271 = vcvt.s32.f32 %v1263
  %v1272 = vcvt.s32.f32 %v1264
  %v1273 = vcvt.s32.f32 %v1265
  %v1274 = vcvt.s32.f32 %v1266
  %v1275 = vcvt.s32.f32 %v1267
  %v1276 = vcvt.s32.f32 %v1268
  %v1277 = vcvt.s32.f32 %v1269
  %v1278 = vmul.u32 %v1226, 16
  %vm1279 = vcmp.ge.s32.totalorder %v1235, %v1278
  %v1280 = vadd.s32 %v1278, 16
  %vm1281 = vcmp.lt.s32.totalorder %v1235, %v1280
  %vm1282 = vmand %vm1279, %vm1281
  %v1283 = vsel %vm1282, 1, 0
  %v1284 = vcvt.s32.f32 %v1283
  %vm1285 = vcmp.eq.s32.totalorder %v1226, %v1235
  %vm1286 = vcmp.eq.s32.totalorder %v1227, %v1235
  %v1287 = vsel %vm1285, 1, 0
  %v1288 = vsel %vm1286, 1, 0
  %v1289 = vcvt.s32.f32 %v1287
  %v1290 = vcvt.s32.f32 %v1288
  %v1291 = vmul.f32 %v1187, %v1093
  %v1292 = vmul.f32 %v1192, %v1093
  %v1293 = vmul.f32 %v1197, %v1093
  %v1294 = vmul.f32 %v1202, %v1093
  %v1295 = vmul.f32 %v1207, %v1093
  %v1296 = vmul.f32 %v1212, %v1093
  %v1297 = vmul.f32 %v1217, %v1093
  %v1298 = vmul.f32 %v1222, %v1093
  %vm1299 = vcmask 523264
  %v1301 = vsel %vm1299, %v1291, 0
  %v1304 = vsel %vm1299, %v1292, 0
  %v1307 = vsel %vm1299, %v1293, 0
  %v1310 = vsel %vm1299, %v1294, 0
  %v1313 = vsel %vm1299, %v1295, 0
  %v1316 = vsel %vm1299, %v1296, 0
  %v1319 = vsel %vm1299, %v1297, 0
  %v1322 = vsel %vm1299, %v1298, 0
  %1324 = vmatprep.subr.mxu0 0.0
  %1325 = vmatpush1.msra.mxu0 %v1270
  %1326 = vmatprep.subr.mxu0 0.0
  %1327 = vmatpush1.msra.mxu0 %v1271
  %1328 = vmatprep.subr.mxu0 0.0
  %1329 = vmatpush1.msra.mxu0 %v1272
  %1330 = vmatprep.subr.mxu0 0.0
  %1331 = vmatpush1.msra.mxu0 %v1273
  %1332 = vmatprep.subr.mxu0 0.0
  %1333 = vmatpush1.msra.mxu0 %v1274
  %1334 = vmatprep.subr.mxu0 0.0
  %1335 = vmatpush1.msra.mxu0 %v1275
  %1336 = vmatprep.subr.mxu0 0.0
  %1337 = vmatpush1.msra.mxu0 %v1276
  %1338 = vmatprep.subr.mxu0 0.0
  %1339 = vmatpush1.msra.mxu0 %v1277
  %1340 = vmatprep.subr.mxu0 0.0
  %1341 = vmatpush1.msra.mxu0 0.0
  %1342 = vmatprep.subr.mxu0 0.0
  %1343 = vmatpush1.msra.mxu0 0.0
  %1344 = vmatprep.subr.mxu0 0.0
  %1345 = vmatpush1.msra.mxu0 0.0
  %1346 = vmatprep.subr.mxu0 0.0
  %1347 = vmatpush1.msra.mxu0 0.0
  %1348 = vmatprep.subr.mxu0 0.0
  %1349 = vmatpush1.msra.mxu0 0.0
  %1350 = vmatprep.subr.mxu0 0.0
  %1351 = vmatpush1.msra.mxu0 0.0
  %1352 = vmatprep.subr.mxu0 0.0
  %1353 = vmatpush1.msra.mxu0 0.0
  %1354 = vmatprep.subr.mxu0 0.0
  %1355 = vmatpush1.msra.mxu0 0.0
  %1356 = vmatprep.subr.mxu0 0.0
  %1357 = vmatpush1.msra.mxu0 0.0
  %1358 = vmatprep.subr.mxu0 0.0
  %1359 = vmatpush1.msra.mxu0 0.0
  %1360 = vmatprep.subr.mxu0 0.0
  %1361 = vmatpush1.msra.mxu0 0.0
  %1362 = vmatprep.subr.mxu0 0.0
  %1363 = vmatpush1.msra.mxu0 0.0
  %1364 = vmatprep.subr.mxu0 0.0
  %1365 = vmatpush1.msra.mxu0 0.0
  %1366 = vmatprep.subr.mxu0 0.0
  %1367 = vmatpush1.msra.mxu0 0.0
  %1368 = vmatprep.subr.mxu0 0.0
  %1369 = vmatpush1.msra.mxu0 0.0
  %1370 = vmatprep.subr.mxu0 0.0
  %1371 = vmatpush1.msra.mxu0 0.0
  %1372 = vmatprep.subr.mxu0 0.0
  %1373 = vmatpush1.msra.mxu0 0.0
  %1374 = vmatprep.subr.mxu0 0.0
  %1375 = vmatpush1.msra.mxu0 0.0
  %1376 = vmatprep.subr.mxu0 0.0
  %1377 = vmatpush1.msra.mxu0 0.0
  %1378 = vmatprep.subr.mxu0 0.0
  %1379 = vmatpush1.msra.mxu0 0.0
  %1380 = vmatprep.subr.mxu0 0.0
  %1381 = vmatpush1.msra.mxu0 0.0
  %1382 = vmatprep.subr.mxu0 0.0
  %1383 = vmatpush1.msra.mxu0 0.0
  %1384 = vmatprep.subr.mxu0 0.0
  %1385 = vmatpush1.msra.mxu0 0.0
  %1386 = vmatprep.subr.mxu0 0.0
  %1387 = vmatpush1.msra.mxu0 0.0
  %1388 = vmatprep.mubr.f32.mxu0 0.0
  %1389 = vmatmul.mubr.f32.gmra.mrb[0].mxu0 %v1301
  %v1390 = vpop.f32.mrb[0].mxu0
  %v1391 = vadd.f32 0.0, %v1390
  %v1392 = vpop.f32.mrb[0].mxu0
  %1393 = vmatprep.mubr.f32.mxu0 0.0
  %1394 = vmatmul.mubr.f32.gmra.mrb[0].mxu0 %v1304
  %v1395 = vpop.f32.mrb[0].mxu0
  %v1396 = vadd.f32 0.0, %v1395
  %v1397 = vpop.f32.mrb[0].mxu0
  %1398 = vmatprep.mubr.f32.mxu0 0.0
  %1399 = vmatmul.mubr.f32.gmra.mrb[0].mxu0 %v1307
  %v1400 = vpop.f32.mrb[0].mxu0
  %v1401 = vadd.f32 0.0, %v1400
  %v1402 = vpop.f32.mrb[0].mxu0
  %1403 = vmatprep.mubr.f32.mxu0 0.0
  %1404 = vmatmul.mubr.f32.gmra.mrb[0].mxu0 %v1310
  %v1405 = vpop.f32.mrb[0].mxu0
  %v1406 = vadd.f32 0.0, %v1405
  %v1407 = vpop.f32.mrb[0].mxu0
  %1408 = vmatprep.mubr.f32.mxu0 0.0
  %1409 = vmatmul.mubr.f32.gmra.mrb[0].mxu0 %v1313
  %v1410 = vpop.f32.mrb[0].mxu0
  %v1411 = vadd.f32 0.0, %v1410
  %v1412 = vpop.f32.mrb[0].mxu0
  %1413 = vmatprep.mubr.f32.mxu0 0.0
  %1414 = vmatmul.mubr.f32.gmra.mrb[0].mxu0 %v1316
  %v1415 = vpop.f32.mrb[0].mxu0
  %v1416 = vadd.f32 0.0, %v1415
  %v1417 = vpop.f32.mrb[0].mxu0
  %1418 = vmatprep.mubr.f32.mxu0 0.0
  %1419 = vmatmul.mubr.f32.gmra.mrb[0].mxu0 %v1319
  %v1420 = vpop.f32.mrb[0].mxu0
  %v1421 = vadd.f32 0.0, %v1420
  %v1422 = vpop.f32.mrb[0].mxu0
  %1423 = vmatprep.mubr.f32.mxu0 0.0
  %1424 = vmatmul.mubr.f32.gmra.mrb[0].mxu0 %v1322
  %v1425 = vpop.f32.mrb[0].mxu0
  %v1426 = vadd.f32 0.0, %v1425
  %v1427 = vpop.f32.mrb[0].mxu0
  %1428 = vdwg.mxu0
  %vm1429 = vcmask 31744
  %v1430 = vsel %vm1429, %v1391, -inf
  %1431 = vmax.xlane.f32.xlu0 %v1430
  %v1432 = vpop.xlane.xlu0 %1431
  %v1433 = vsel %vm1429, %v1396, -inf
  %1434 = vmax.xlane.f32.xlu0 %v1433
  %v1435 = vpop.xlane.xlu0 %1434
  %v1436 = vsel %vm1429, %v1401, -inf
  %1437 = vmax.xlane.f32.xlu0 %v1436
  %v1438 = vpop.xlane.xlu0 %1437
  %v1439 = vsel %vm1429, %v1406, -inf
  %1440 = vmax.xlane.f32.xlu0 %v1439
  %v1441 = vpop.xlane.xlu0 %1440
  %v1442 = vsel %vm1429, %v1411, -inf
  %1443 = vmax.xlane.f32.xlu0 %v1442
  %v1444 = vpop.xlane.xlu0 %1443
  %v1445 = vsel %vm1429, %v1416, -inf
  %1446 = vmax.xlane.f32.xlu0 %v1445
  %v1447 = vpop.xlane.xlu0 %1446
  %v1448 = vsel %vm1429, %v1421, -inf
  %1449 = vmax.xlane.f32.xlu0 %v1448
  %v1450 = vpop.xlane.xlu0 %1449
  %v1451 = vsel %vm1429, %v1426, -inf
  %1452 = vmax.xlane.f32.xlu0 %v1451
  %v1453 = vpop.xlane.xlu0 %1452
  %v1454 = vsub.f32 %v1391, %v1432
  %v1455 = vsub.f32 %v1396, %v1435
  %v1456 = vsub.f32 %v1401, %v1438
  %v1457 = vsub.f32 %v1406, %v1441
  %v1458 = vsub.f32 %v1411, %v1444
  %v1459 = vsub.f32 %v1416, %v1447
  %v1460 = vsub.f32 %v1421, %v1450
  %v1461 = vsub.f32 %v1426, %v1453
  %v1462 = vmul.f32 %v1454, 1.442695
  %v1463 = vpow.pop %v1462
  %v1464 = vmul.f32 %v1455, 1.442695
  %v1465 = vpow.pop %v1464
  %v1466 = vmul.f32 %v1456, 1.442695
  %v1467 = vpow.pop %v1466
  %v1468 = vmul.f32 %v1457, 1.442695
  %v1469 = vpow.pop %v1468
  %v1470 = vmul.f32 %v1458, 1.442695
  %v1471 = vpow.pop %v1470
  %v1472 = vmul.f32 %v1459, 1.442695
  %v1473 = vpow.pop %v1472
  %v1474 = vmul.f32 %v1460, 1.442695
  %v1475 = vpow.pop %v1474
  %v1476 = vmul.f32 %v1461, 1.442695
  %v1477 = vpow.pop %v1476
  %v1478 = vsel %vm1429, %v1463, 0.0
  %1479 = vadd.xlane.f32.xlu0 %v1478
  %v1480 = vpop.xlane.xlu0 %1479
  %v1481 = vsel %vm1429, %v1465, 0.0
  %1482 = vadd.xlane.f32.xlu0 %v1481
  %v1483 = vpop.xlane.xlu0 %1482
  %v1484 = vsel %vm1429, %v1467, 0.0
  %1485 = vadd.xlane.f32.xlu0 %v1484
  %v1486 = vpop.xlane.xlu0 %1485
  %v1487 = vsel %vm1429, %v1469, 0.0
  %1488 = vadd.xlane.f32.xlu0 %v1487
  %v1489 = vpop.xlane.xlu0 %1488
  %v1490 = vsel %vm1429, %v1471, 0.0
  %1491 = vadd.xlane.f32.xlu0 %v1490
  %v1492 = vpop.xlane.xlu0 %1491
  %v1493 = vsel %vm1429, %v1473, 0.0
  %1494 = vadd.xlane.f32.xlu0 %v1493
  %v1495 = vpop.xlane.xlu0 %1494
  %v1496 = vsel %vm1429, %v1475, 0.0
  %1497 = vadd.xlane.f32.xlu0 %v1496
  %v1498 = vpop.xlane.xlu0 %1497
  %v1499 = vsel %vm1429, %v1477, 0.0
  %1500 = vadd.xlane.f32.xlu0 %v1499
  %v1501 = vpop.xlane.xlu0 %1500
  %v1502 = vrcp.pop %v1480
  %v1503 = vmul.f32 %v1463, %v1502
  %v1504 = vrcp.pop %v1483
  %v1505 = vmul.f32 %v1465, %v1504
  %v1506 = vrcp.pop %v1486
  %v1507 = vmul.f32 %v1467, %v1506
  %v1508 = vrcp.pop %v1489
  %v1509 = vmul.f32 %v1469, %v1508
  %v1510 = vrcp.pop %v1492
  %v1511 = vmul.f32 %v1471, %v1510
  %v1512 = vrcp.pop %v1495
  %v1513 = vmul.f32 %v1473, %v1512
  %v1514 = vrcp.pop %v1498
  %v1515 = vmul.f32 %v1475, %v1514
  %v1516 = vrcp.pop %v1501
  %v1517 = vmul.f32 %v1477, %v1516
  %v1519 = vsel %vm1429, %v1503, 0
  %v1522 = vsel %vm1429, %v1505, 0
  %v1525 = vsel %vm1429, %v1507, 0
  %v1528 = vsel %vm1429, %v1509, 0
  %v1531 = vsel %vm1429, %v1511, 0
  %v1534 = vsel %vm1429, %v1513, 0
  %v1537 = vsel %vm1429, %v1515, 0
  %v1540 = vsel %vm1429, %v1517, 0
  %vm1542 = vcmask 1043456
  %v1544 = vsel %vm1542, %v1284, 0
  %1546 = vmatprep.subr.mxu0 0.0
  %1547 = vmatpush1.msra.mxu0 %v1544
  %1548 = vmatprep.subr.mxu0 0.0
  %1549 = vmatpush1.msra.mxu0 0.0
  %1550 = vmatprep.subr.mxu0 0.0
  %1551 = vmatpush1.msra.mxu0 0.0
  %1552 = vmatprep.subr.mxu0 0.0
  %1553 = vmatpush1.msra.mxu0 0.0
  %1554 = vmatprep.subr.mxu0 0.0
  %1555 = vmatpush1.msra.mxu0 0.0
  %1556 = vmatprep.subr.mxu0 0.0
  %1557 = vmatpush1.msra.mxu0 0.0
  %1558 = vmatprep.subr.mxu0 0.0
  %1559 = vmatpush1.msra.mxu0 0.0
  %1560 = vmatprep.subr.mxu0 0.0
  %1561 = vmatpush1.msra.mxu0 0.0
  %1562 = vmatprep.subr.mxu0 0.0
  %1563 = vmatpush1.msra.mxu0 0.0
  %1564 = vmatprep.subr.mxu0 0.0
  %1565 = vmatpush1.msra.mxu0 0.0
  %1566 = vmatprep.subr.mxu0 0.0
  %1567 = vmatpush1.msra.mxu0 0.0
  %1568 = vmatprep.subr.mxu0 0.0
  %1569 = vmatpush1.msra.mxu0 0.0
  %1570 = vmatprep.subr.mxu0 0.0
  %1571 = vmatpush1.msra.mxu0 0.0
  %1572 = vmatprep.subr.mxu0 0.0
  %1573 = vmatpush1.msra.mxu0 0.0
  %1574 = vmatprep.subr.mxu0 0.0
  %1575 = vmatpush1.msra.mxu0 0.0
  %1576 = vmatprep.subr.mxu0 0.0
  %1577 = vmatpush1.msra.mxu0 0.0
  %1578 = vmatprep.subr.mxu0 0.0
  %1579 = vmatpush1.msra.mxu0 0.0
  %1580 = vmatprep.subr.mxu0 0.0
  %1581 = vmatpush1.msra.mxu0 0.0
  %1582 = vmatprep.subr.mxu0 0.0
  %1583 = vmatpush1.msra.mxu0 0.0
  %1584 = vmatprep.subr.mxu0 0.0
  %1585 = vmatpush1.msra.mxu0 0.0
  %1586 = vmatprep.subr.mxu0 0.0
  %1587 = vmatpush1.msra.mxu0 0.0
  %1588 = vmatprep.subr.mxu0 0.0
  %1589 = vmatpush1.msra.mxu0 0.0
  %1590 = vmatprep.subr.mxu0 0.0
  %1591 = vmatpush1.msra.mxu0 0.0
  %1592 = vmatprep.subr.mxu0 0.0
  %1593 = vmatpush1.msra.mxu0 0.0
  %1594 = vmatprep.subr.mxu0 0.0
  %1595 = vmatpush1.msra.mxu0 0.0
  %1596 = vmatprep.subr.mxu0 0.0
  %1597 = vmatpush1.msra.mxu0 0.0
  %1598 = vmatprep.subr.mxu0 0.0
  %1599 = vmatpush1.msra.mxu0 0.0
  %1600 = vmatprep.subr.mxu0 0.0
  %1601 = vmatpush1.msra.mxu0 0.0
  %1602 = vmatprep.subr.mxu0 0.0
  %1603 = vmatpush1.msra.mxu0 0.0
  %1604 = vmatprep.subr.mxu0 0.0
  %1605 = vmatpush1.msra.mxu0 0.0
  %1606 = vmatprep.subr.mxu0 0.0
  %1607 = vmatpush1.msra.mxu0 0.0
  %1608 = vmatprep.subr.mxu0 0.0
  %1609 = vmatpush1.msra.mxu0 0.0
  %1610 = vmatprep.mubr.f32.mxu0 0.0
  %1611 = vmatmul.mubr.f32.gmra.mrb[0].mxu0 %v1519
  %v1612 = vpop.f32.mrb[0].mxu0
  %v1613 = vadd.f32 0.0, %v1612
  %v1614 = vpop.f32.mrb[0].mxu0
  %1615 = vmatprep.mubr.f32.mxu0 0.0
  %1616 = vmatmul.mubr.f32.gmra.mrb[0].mxu0 %v1522
  %v1617 = vpop.f32.mrb[0].mxu0
  %v1618 = vadd.f32 0.0, %v1617
  %v1619 = vpop.f32.mrb[0].mxu0
  %1620 = vmatprep.mubr.f32.mxu0 0.0
  %1621 = vmatmul.mubr.f32.gmra.mrb[0].mxu0 %v1525
  %v1622 = vpop.f32.mrb[0].mxu0
  %v1623 = vadd.f32 0.0, %v1622
  %v1624 = vpop.f32.mrb[0].mxu0
  %1625 = vmatprep.mubr.f32.mxu0 0.0
  %1626 = vmatmul.mubr.f32.gmra.mrb[0].mxu0 %v1528
  %v1627 = vpop.f32.mrb[0].mxu0
  %v1628 = vadd.f32 0.0, %v1627
  %v1629 = vpop.f32.mrb[0].mxu0
  %1630 = vmatprep.mubr.f32.mxu0 0.0
  %1631 = vmatmul.mubr.f32.gmra.mrb[0].mxu0 %v1531
  %v1632 = vpop.f32.mrb[0].mxu0
  %v1633 = vadd.f32 0.0, %v1632
  %v1634 = vpop.f32.mrb[0].mxu0
  %1635 = vmatprep.mubr.f32.mxu0 0.0
  %1636 = vmatmul.mubr.f32.gmra.mrb[0].mxu0 %v1534
  %v1637 = vpop.f32.mrb[0].mxu0
  %v1638 = vadd.f32 0.0, %v1637
  %v1639 = vpop.f32.mrb[0].mxu0
  %1640 = vmatprep.mubr.f32.mxu0 0.0
  %1641 = vmatmul.mubr.f32.gmra.mrb[0].mxu0 %v1537
  %v1642 = vpop.f32.mrb[0].mxu0
  %v1643 = vadd.f32 0.0, %v1642
  %v1644 = vpop.f32.mrb[0].mxu0
  %1645 = vmatprep.mubr.f32.mxu0 0.0
  %1646 = vmatmul.mubr.f32.gmra.mrb[0].mxu0 %v1540
  %v1647 = vpop.f32.mrb[0].mxu0
  %v1648 = vadd.f32 0.0, %v1647
  %v1649 = vpop.f32.mrb[0].mxu0
  %1650 = vdwg.mxu0
  %v1651 = vmul.f32 %v1613, %v1093
  %v1652 = vmul.f32 %v1618, %v1093
  %v1653 = vmul.f32 %v1623, %v1093
  %v1654 = vmul.f32 %v1628, %v1093
  %v1655 = vmul.f32 %v1633, %v1093
  %v1656 = vmul.f32 %v1638, %v1093
  %v1657 = vmul.f32 %v1643, %v1093
  %v1658 = vmul.f32 %v1648, %v1093
  %v1660 = vsel %vm1299, %v1651, 0
  %v1663 = vsel %vm1299, %v1652, 0
  %v1666 = vsel %vm1299, %v1653, 0
  %v1669 = vsel %vm1299, %v1654, 0
  %v1672 = vsel %vm1299, %v1655, 0
  %v1675 = vsel %vm1299, %v1656, 0
  %v1678 = vsel %vm1299, %v1657, 0
  %v1681 = vsel %vm1299, %v1658, 0
  %1683 = vmatprep.subr.mxu0 0.0
  %1684 = vmatpush1.msra.mxu0 %v1289
  %1685 = vmatprep.subr.mxu0 0.0
  %1686 = vmatpush1.msra.mxu0 %v1290
  %1687 = vmatprep.subr.mxu0 0.0
  %1688 = vmatpush1.msra.mxu0 %v1289
  %1689 = vmatprep.subr.mxu0 0.0
  %1690 = vmatpush1.msra.mxu0 %v1290
  %1691 = vmatprep.subr.mxu0 0.0
  %1692 = vmatpush1.msra.mxu0 %v1289
  %1693 = vmatprep.subr.mxu0 0.0
  %1694 = vmatpush1.msra.mxu0 %v1290
  %1695 = vmatprep.subr.mxu0 0.0
  %1696 = vmatpush1.msra.mxu0 %v1289
  %1697 = vmatprep.subr.mxu0 0.0
  %1698 = vmatpush1.msra.mxu0 %v1290
  %1699 = vmatprep.subr.mxu0 0.0
  %1700 = vmatpush1.msra.mxu0 0.0
  %1701 = vmatprep.subr.mxu0 0.0
  %1702 = vmatpush1.msra.mxu0 0.0
  %1703 = vmatprep.subr.mxu0 0.0
  %1704 = vmatpush1.msra.mxu0 0.0
  %1705 = vmatprep.subr.mxu0 0.0
  %1706 = vmatpush1.msra.mxu0 0.0
  %1707 = vmatprep.subr.mxu0 0.0
  %1708 = vmatpush1.msra.mxu0 0.0
  %1709 = vmatprep.subr.mxu0 0.0
  %1710 = vmatpush1.msra.mxu0 0.0
  %1711 = vmatprep.subr.mxu0 0.0
  %1712 = vmatpush1.msra.mxu0 0.0
  %1713 = vmatprep.subr.mxu0 0.0
  %1714 = vmatpush1.msra.mxu0 0.0
  %1715 = vmatprep.subr.mxu0 0.0
  %1716 = vmatpush1.msra.mxu0 0.0
  %1717 = vmatprep.subr.mxu0 0.0
  %1718 = vmatpush1.msra.mxu0 0.0
  %1719 = vmatprep.subr.mxu0 0.0
  %1720 = vmatpush1.msra.mxu0 0.0
  %1721 = vmatprep.subr.mxu0 0.0
  %1722 = vmatpush1.msra.mxu0 0.0
  %1723 = vmatprep.subr.mxu0 0.0
  %1724 = vmatpush1.msra.mxu0 0.0
  %1725 = vmatprep.subr.mxu0 0.0
  %1726 = vmatpush1.msra.mxu0 0.0
  %1727 = vmatprep.subr.mxu0 0.0
  %1728 = vmatpush1.msra.mxu0 0.0
  %1729 = vmatprep.subr.mxu0 0.0
  %1730 = vmatpush1.msra.mxu0 0.0
  %1731 = vmatprep.subr.mxu0 0.0
  %1732 = vmatpush1.msra.mxu0 0.0
  %1733 = vmatprep.subr.mxu0 0.0
  %1734 = vmatpush1.msra.mxu0 0.0
  %1735 = vmatprep.subr.mxu0 0.0
  %1736 = vmatpush1.msra.mxu0 0.0
  %1737 = vmatprep.subr.mxu0 0.0
  %1738 = vmatpush1.msra.mxu0 0.0
  %1739 = vmatprep.subr.mxu0 0.0
  %1740 = vmatpush1.msra.mxu0 0.0
  %1741 = vmatprep.subr.mxu0 0.0
  %1742 = vmatpush1.msra.mxu0 0.0
  %1743 = vmatprep.subr.mxu0 0.0
  %1744 = vmatpush1.msra.mxu0 0.0
  %1745 = vmatprep.subr.mxu0 0.0
  %1746 = vmatpush1.msra.mxu0 0.0
  %1747 = vmatprep.mubr.f32.mxu0 0.0
  %1748 = vmatmul.mubr.f32.gmra.mrb[0].mxu0 %v1660
  %v1749 = vpop.f32.mrb[0].mxu0
  %v1750 = vadd.f32 0.0, %v1749
  %v1751 = vpop.f32.mrb[0].mxu0
  %1752 = vmatprep.mubr.f32.mxu0 0.0
  %1753 = vmatmul.mubr.f32.gmra.mrb[0].mxu0 %v1663
  %v1754 = vpop.f32.mrb[0].mxu0
  %v1755 = vadd.f32 0.0, %v1754
  %v1756 = vpop.f32.mrb[0].mxu0
  %1757 = vmatprep.mubr.f32.mxu0 0.0
  %1758 = vmatmul.mubr.f32.gmra.mrb[0].mxu0 %v1666
  %v1759 = vpop.f32.mrb[0].mxu0
  %v1760 = vadd.f32 0.0, %v1759
  %v1761 = vpop.f32.mrb[0].mxu0
  %1762 = vmatprep.mubr.f32.mxu0 0.0
  %1763 = vmatmul.mubr.f32.gmra.mrb[0].mxu0 %v1669
  %v1764 = vpop.f32.mrb[0].mxu0
  %v1765 = vadd.f32 0.0, %v1764
  %v1766 = vpop.f32.mrb[0].mxu0
  %1767 = vmatprep.mubr.f32.mxu0 0.0
  %1768 = vmatmul.mubr.f32.gmra.mrb[0].mxu0 %v1672
  %v1769 = vpop.f32.mrb[0].mxu0
  %v1770 = vadd.f32 0.0, %v1769
  %v1771 = vpop.f32.mrb[0].mxu0
  %1772 = vmatprep.mubr.f32.mxu0 0.0
  %1773 = vmatmul.mubr.f32.gmra.mrb[0].mxu0 %v1675
  %v1774 = vpop.f32.mrb[0].mxu0
  %v1775 = vadd.f32 0.0, %v1774
  %v1776 = vpop.f32.mrb[0].mxu0
  %1777 = vmatprep.mubr.f32.mxu0 0.0
  %1778 = vmatmul.mubr.f32.gmra.mrb[0].mxu0 %v1678
  %v1779 = vpop.f32.mrb[0].mxu0
  %v1780 = vadd.f32 0.0, %v1779
  %v1781 = vpop.f32.mrb[0].mxu0
  %1782 = vmatprep.mubr.f32.mxu0 0.0
  %1783 = vmatmul.mubr.f32.gmra.mrb[0].mxu0 %v1681
  %v1784 = vpop.f32.mrb[0].mxu0
  %v1785 = vadd.f32 0.0, %v1784
  %v1786 = vpop.f32.mrb[0].mxu0
  %1787 = vdwg.mxu0
  %vm1788 = vcmp.ge.s32.totalorder %v1226, 8
  %vm1789 = vcmp.ge.s32.totalorder %v1227, 8
  %vm1790 = vcmp.ge.s32.totalorder %v1228, 8
  %vm1791 = vcmp.ge.s32.totalorder %v1229, 8
  %vm1792 = vcmp.ge.s32.totalorder %v1230, 8
  %vm1793 = vcmp.ge.s32.totalorder %v1231, 8
  %vm1794 = vcmp.ge.s32.totalorder %v1232, 8
  %vm1795 = vcmp.ge.s32.totalorder %v1233, 8
  %v1796 = vsel %vm1788, 1, 0
  %v1797 = vsel %vm1789, 1, 0
  %v1798 = vsel %vm1790, 1, 0
  %v1799 = vsel %vm1791, 1, 0
  %v1800 = vsel %vm1792, 1, 0
  %v1801 = vsel %vm1793, 1, 0
  %v1802 = vsel %vm1794, 1, 0
  %v1803 = vsel %vm1795, 1, 0
  %v1804 = vcvt.s32.f32 %v1796
  %v1805 = vcvt.s32.f32 %v1797
  %v1806 = vcvt.s32.f32 %v1798
  %v1807 = vcvt.s32.f32 %v1799
  %v1808 = vcvt.s32.f32 %v1800
  %v1809 = vcvt.s32.f32 %v1801
  %v1810 = vcvt.s32.f32 %v1802
  %v1811 = vcvt.s32.f32 %v1803
  %v1812 = vmul.f32 %v1750, %v1804
  %v1813 = vmul.f32 %v1755, %v1805
  %v1814 = vmul.f32 %v1760, %v1806
  %v1815 = vmul.f32 %v1765, %v1807
  %v1816 = vmul.f32 %v1770, %v1808
  %v1817 = vmul.f32 %v1775, %v1809
  %v1818 = vmul.f32 %v1780, %v1810
  %v1819 = vmul.f32 %v1785, %v1811
  %v1820 = vld [vmem:[%s7] sm:$0xff]
  %v1821 = vld [vmem:[%s7 + $0x8] sm:$0xff]
  %v1822 = vld [vmem:[%s8] sm:$0xff]
  %v1823 = vld [vmem:[%s8 + $0x8] sm:$0xff]
  %v1825 = vsel %vm50, %v1812, 0
  %v1828 = vsel %vm50, %v1813, 0
  %v1831 = vsel %vm50, %v1814, 0
  %v1834 = vsel %vm50, %v1815, 0
  %v1837 = vsel %vm50, %v1816, 0
  %v1840 = vsel %vm50, %v1817, 0
  %v1843 = vsel %vm50, %v1818, 0
  %v1846 = vsel %vm50, %v1819, 0
  %1848 = vmatprep.subr.mxu0 0.0
  %1849 = vmatpush1.msra.mxu0 %v1822
  %1850 = vmatprep.subr.mxu0 0.0
  %1851 = vmatpush1.msra.mxu0 %v1823
  %1852 = vmatprep.subr.mxu0 0.0
  %1853 = vmatpush1.msra.mxu0 0.0
  %1854 = vmatprep.subr.mxu0 0.0
  %1855 = vmatpush1.msra.mxu0 0.0
  %1856 = vmatprep.subr.mxu0 0.0
  %1857 = vmatpush1.msra.mxu0 0.0
  %1858 = vmatprep.subr.mxu0 0.0
  %1859 = vmatpush1.msra.mxu0 0.0
  %1860 = vmatprep.subr.mxu0 0.0
  %1861 = vmatpush1.msra.mxu0 0.0
  %1862 = vmatprep.subr.mxu0 0.0
  %1863 = vmatpush1.msra.mxu0 0.0
  %1864 = vmatprep.subr.mxu0 0.0
  %1865 = vmatpush1.msra.mxu0 0.0
  %1866 = vmatprep.subr.mxu0 0.0
  %1867 = vmatpush1.msra.mxu0 0.0
  %1868 = vmatprep.subr.mxu0 0.0
  %1869 = vmatpush1.msra.mxu0 0.0
  %1870 = vmatprep.subr.mxu0 0.0
  %1871 = vmatpush1.msra.mxu0 0.0
  %1872 = vmatprep.subr.mxu0 0.0
  %1873 = vmatpush1.msra.mxu0 0.0
  %1874 = vmatprep.subr.mxu0 0.0
  %1875 = vmatpush1.msra.mxu0 0.0
  %1876 = vmatprep.subr.mxu0 0.0
  %1877 = vmatpush1.msra.mxu0 0.0
  %1878 = vmatprep.subr.mxu0 0.0
  %1879 = vmatpush1.msra.mxu0 0.0
  %1880 = vmatprep.subr.mxu0 0.0
  %1881 = vmatpush1.msra.mxu0 0.0
  %1882 = vmatprep.subr.mxu0 0.0
  %1883 = vmatpush1.msra.mxu0 0.0
  %1884 = vmatprep.subr.mxu0 0.0
  %1885 = vmatpush1.msra.mxu0 0.0
  %1886 = vmatprep.subr.mxu0 0.0
  %1887 = vmatpush1.msra.mxu0 0.0
  %1888 = vmatprep.subr.mxu0 0.0
  %1889 = vmatpush1.msra.mxu0 0.0
  %1890 = vmatprep.subr.mxu0 0.0
  %1891 = vmatpush1.msra.mxu0 0.0
  %1892 = vmatprep.subr.mxu0 0.0
  %1893 = vmatpush1.msra.mxu0 0.0
  %1894 = vmatprep.subr.mxu0 0.0
  %1895 = vmatpush1.msra.mxu0 0.0
  %1896 = vmatprep.subr.mxu0 0.0
  %1897 = vmatpush1.msra.mxu0 0.0
  %1898 = vmatprep.subr.mxu0 0.0
  %1899 = vmatpush1.msra.mxu0 0.0
  %1900 = vmatprep.subr.mxu0 0.0
  %1901 = vmatpush1.msra.mxu0 0.0
  %1902 = vmatprep.subr.mxu0 0.0
  %1903 = vmatpush1.msra.mxu0 0.0
  %1904 = vmatprep.subr.mxu0 0.0
  %1905 = vmatpush1.msra.mxu0 0.0
  %1906 = vmatprep.subr.mxu0 0.0
  %1907 = vmatpush1.msra.mxu0 0.0
  %1908 = vmatprep.subr.mxu0 0.0
  %1909 = vmatpush1.msra.mxu0 0.0
  %1910 = vmatprep.subr.mxu0 0.0
  %1911 = vmatpush1.msra.mxu0 0.0
  %1912 = vmatprep.mubr.f32.mxu0 0.0
  %1913 = vmatmul.mubr.f32.gmra.mrb[0].mxu0 %v1825
  %v1914 = vpop.f32.mrb[0].mxu0
  %v1915 = vadd.f32 0.0, %v1914
  %v1916 = vpop.f32.mrb[0].mxu0
  %1917 = vmatprep.mubr.f32.mxu0 0.0
  %1918 = vmatmul.mubr.f32.gmra.mrb[0].mxu0 %v1828
  %v1919 = vpop.f32.mrb[0].mxu0
  %v1920 = vadd.f32 0.0, %v1919
  %v1921 = vpop.f32.mrb[0].mxu0
  %1922 = vmatprep.mubr.f32.mxu0 0.0
  %1923 = vmatmul.mubr.f32.gmra.mrb[0].mxu0 %v1831
  %v1924 = vpop.f32.mrb[0].mxu0
  %v1925 = vadd.f32 0.0, %v1924
  %v1926 = vpop.f32.mrb[0].mxu0
  %1927 = vmatprep.mubr.f32.mxu0 0.0
  %1928 = vmatmul.mubr.f32.gmra.mrb[0].mxu0 %v1834
  %v1929 = vpop.f32.mrb[0].mxu0
  %v1930 = vadd.f32 0.0, %v1929
  %v1931 = vpop.f32.mrb[0].mxu0
  %1932 = vmatprep.mubr.f32.mxu0 0.0
  %1933 = vmatmul.mubr.f32.gmra.mrb[0].mxu0 %v1837
  %v1934 = vpop.f32.mrb[0].mxu0
  %v1935 = vadd.f32 0.0, %v1934
  %v1936 = vpop.f32.mrb[0].mxu0
  %1937 = vmatprep.mubr.f32.mxu0 0.0
  %1938 = vmatmul.mubr.f32.gmra.mrb[0].mxu0 %v1840
  %v1939 = vpop.f32.mrb[0].mxu0
  %v1940 = vadd.f32 0.0, %v1939
  %v1941 = vpop.f32.mrb[0].mxu0
  %1942 = vmatprep.mubr.f32.mxu0 0.0
  %1943 = vmatmul.mubr.f32.gmra.mrb[0].mxu0 %v1843
  %v1944 = vpop.f32.mrb[0].mxu0
  %v1945 = vadd.f32 0.0, %v1944
  %v1946 = vpop.f32.mrb[0].mxu0
  %1947 = vmatprep.mubr.f32.mxu0 0.0
  %1948 = vmatmul.mubr.f32.gmra.mrb[0].mxu0 %v1846
  %v1949 = vpop.f32.mrb[0].mxu0
  %v1950 = vadd.f32 0.0, %v1949
  %v1951 = vpop.f32.mrb[0].mxu0
  %1952 = vdwg.mxu0
  %1953 = vmatprep.subr.mxu0 0.0
  %1954 = vmatpush1.msra.mxu0 %v1820
  %1955 = vmatprep.subr.mxu0 0.0
  %1956 = vmatpush1.msra.mxu0 %v1821
  %1957 = vmatprep.subr.mxu0 0.0
  %1958 = vmatpush1.msra.mxu0 0.0
  %1959 = vmatprep.subr.mxu0 0.0
  %1960 = vmatpush1.msra.mxu0 0.0
  %1961 = vmatprep.subr.mxu0 0.0
  %1962 = vmatpush1.msra.mxu0 0.0
  %1963 = vmatprep.subr.mxu0 0.0
  %1964 = vmatpush1.msra.mxu0 0.0
  %1965 = vmatprep.subr.mxu0 0.0
  %1966 = vmatpush1.msra.mxu0 0.0
  %1967 = vmatprep.subr.mxu0 0.0
  %1968 = vmatpush1.msra.mxu0 0.0
  %1969 = vmatprep.subr.mxu0 0.0
  %1970 = vmatpush1.msra.mxu0 0.0
  %1971 = vmatprep.subr.mxu0 0.0
  %1972 = vmatpush1.msra.mxu0 0.0
  %1973 = vmatprep.subr.mxu0 0.0
  %1974 = vmatpush1.msra.mxu0 0.0
  %1975 = vmatprep.subr.mxu0 0.0
  %1976 = vmatpush1.msra.mxu0 0.0
  %1977 = vmatprep.subr.mxu0 0.0
  %1978 = vmatpush1.msra.mxu0 0.0
  %1979 = vmatprep.subr.mxu0 0.0
  %1980 = vmatpush1.msra.mxu0 0.0
  %1981 = vmatprep.subr.mxu0 0.0
  %1982 = vmatpush1.msra.mxu0 0.0
  %1983 = vmatprep.subr.mxu0 0.0
  %1984 = vmatpush1.msra.mxu0 0.0
  %1985 = vmatprep.subr.mxu0 0.0
  %1986 = vmatpush1.msra.mxu0 0.0
  %1987 = vmatprep.subr.mxu0 0.0
  %1988 = vmatpush1.msra.mxu0 0.0
  %1989 = vmatprep.subr.mxu0 0.0
  %1990 = vmatpush1.msra.mxu0 0.0
  %1991 = vmatprep.subr.mxu0 0.0
  %1992 = vmatpush1.msra.mxu0 0.0
  %1993 = vmatprep.subr.mxu0 0.0
  %1994 = vmatpush1.msra.mxu0 0.0
  %1995 = vmatprep.subr.mxu0 0.0
  %1996 = vmatpush1.msra.mxu0 0.0
  %1997 = vmatprep.subr.mxu0 0.0
  %1998 = vmatpush1.msra.mxu0 0.0
  %1999 = vmatprep.subr.mxu0 0.0
  %2000 = vmatpush1.msra.mxu0 0.0
  %2001 = vmatprep.subr.mxu0 0.0
  %2002 = vmatpush1.msra.mxu0 0.0
  %2003 = vmatprep.subr.mxu0 0.0
  %2004 = vmatpush1.msra.mxu0 0.0
  %2005 = vmatprep.subr.mxu0 0.0
  %2006 = vmatpush1.msra.mxu0 0.0
  %2007 = vmatprep.subr.mxu0 0.0
  %2008 = vmatpush1.msra.mxu0 0.0
  %2009 = vmatprep.subr.mxu0 0.0
  %2010 = vmatpush1.msra.mxu0 0.0
  %2011 = vmatprep.subr.mxu0 0.0
  %2012 = vmatpush1.msra.mxu0 0.0
  %2013 = vmatprep.subr.mxu0 0.0
  %2014 = vmatpush1.msra.mxu0 0.0
  %2015 = vmatprep.subr.mxu0 0.0
  %2016 = vmatpush1.msra.mxu0 0.0
  %2017 = vmatprep.mubr.f32.mxu0 0.0
  %2018 = vmatmul.mubr.f32.gmra.mrb[0].mxu0 %v1097
  %v2019 = vpop.f32.mrb[0].mxu0
  %v2020 = vadd.f32 %v1915, %v2019
  %v2021 = vpop.f32.mrb[0].mxu0
  %2022 = vmatprep.mubr.f32.mxu0 0.0
  %2023 = vmatmul.mubr.f32.gmra.mrb[0].mxu0 %v1100
  %v2024 = vpop.f32.mrb[0].mxu0
  %v2025 = vadd.f32 %v1920, %v2024
  %v2026 = vpop.f32.mrb[0].mxu0
  %2027 = vmatprep.mubr.f32.mxu0 0.0
  %2028 = vmatmul.mubr.f32.gmra.mrb[0].mxu0 %v1103
  %v2029 = vpop.f32.mrb[0].mxu0
  %v2030 = vadd.f32 %v1925, %v2029
  %v2031 = vpop.f32.mrb[0].mxu0
  %2032 = vmatprep.mubr.f32.mxu0 0.0
  %2033 = vmatmul.mubr.f32.gmra.mrb[0].mxu0 %v1106
  %v2034 = vpop.f32.mrb[0].mxu0
  %v2035 = vadd.f32 %v1930, %v2034
  %v2036 = vpop.f32.mrb[0].mxu0
  %2037 = vmatprep.mubr.f32.mxu0 0.0
  %2038 = vmatmul.mubr.f32.gmra.mrb[0].mxu0 %v1109
  %v2039 = vpop.f32.mrb[0].mxu0
  %v2040 = vadd.f32 %v1935, %v2039
  %v2041 = vpop.f32.mrb[0].mxu0
  %2042 = vmatprep.mubr.f32.mxu0 0.0
  %2043 = vmatmul.mubr.f32.gmra.mrb[0].mxu0 %v1112
  %v2044 = vpop.f32.mrb[0].mxu0
  %v2045 = vadd.f32 %v1940, %v2044
  %v2046 = vpop.f32.mrb[0].mxu0
  %2047 = vmatprep.mubr.f32.mxu0 0.0
  %2048 = vmatmul.mubr.f32.gmra.mrb[0].mxu0 %v1115
  %v2049 = vpop.f32.mrb[0].mxu0
  %v2050 = vadd.f32 %v1945, %v2049
  %v2051 = vpop.f32.mrb[0].mxu0
  %2052 = vmatprep.mubr.f32.mxu0 0.0
  %2053 = vmatmul.mubr.f32.gmra.mrb[0].mxu0 %v1118
  %v2054 = vpop.f32.mrb[0].mxu0
  %v2055 = vadd.f32 %v1950, %v2054
  %v2056 = vpop.f32.mrb[0].mxu0
  %2057 = vdwg.mxu0
  %v2058 = vld [vmem:[%s9] sm:$0x1]
  %v2060 = vlaneseq
  %v2061 = vshrl.u32 %v2060, 7
  %v2062 = vsub.s32 0, %v2061
  %v2063 = vrot.slane %v2058, %v2062
  %v2065 = vadd.f32 %v2020, %v2063
  %v2066 = vadd.f32 %v2025, %v2063
  %v2067 = vadd.f32 %v2030, %v2063
  %v2068 = vadd.f32 %v2035, %v2063
  %v2069 = vadd.f32 %v2040, %v2063
  %v2070 = vadd.f32 %v2045, %v2063
  %v2071 = vadd.f32 %v2050, %v2063
  %v2072 = vadd.f32 %v2055, %v2063
  %vm2073 = vcmask 261120
  %2074 = vst.msk [vmem:[%s10] sm:$0xff] %vm2073, %v2065
  %2075 = vst.msk [vmem:[%s10 + $0x8] sm:$0xff] %vm2073, %v2066
  %2076 = vst.msk [vmem:[%s10 + $0x10] sm:$0xff] %vm2073, %v2067
  %2077 = vst.msk [vmem:[%s10 + $0x18] sm:$0xff] %vm2073, %v2068
  %2078 = vst.msk [vmem:[%s10 + $0x20] sm:$0xff] %vm2073, %v2069
  %2079 = vst.msk [vmem:[%s10 + $0x28] sm:$0xff] %vm2073, %v2070
  %2080 = vst.msk [vmem:[%s10 + $0x30] sm:$0xff] %vm2073, %v2071
  %2081 = vst.msk [vmem:[%s10 + $0x38] sm:$0xff] %vm2073, %v2072
  // Predicated region
  $region42: #{forward.1} parent=0 // pred_check
    _
  $region43: #{forward.1} parent=0 // pred_check_branch
    %2083 = sbr.rel (0) target = $region45
  $region44: #{forward.1} parent=0 // pred_region
    _
  $region45: #{forward.1} parent=0 // pred_fallthru
    _
  // Predicated region
  $region46: #{forward.1} parent=0 // pred_check
    _
  $region47: #{forward.1} parent=0 // pred_check_branch
    %2085 = sbr.rel (0) target = $region49
  $region48: #{forward.1} parent=0 // pred_region
    _
  $region49: #{forward.1} parent=0 // pred_fallthru
    _

</llo_original>
